<compile_context>
chip_gen: v6e
topology: v6e:2x2x1
jax: 0.10.0
libtpu: 0.0.40
codegen_flags: <defaults>
</compile_context>

<pallas_src>
import jax
import jax.numpy as jnp
from jax import lax
from jax.experimental import pallas as pl
from jax.experimental.pallas import tpu as pltpu

# ----------------------- model configuration (small) -----------------------
BATCH = 2
CONTEXT_LEN = 16        # context_len
MODEL_DIM = 128         # model_dim
NUM_HEADS = 4           # att_heads
HEAD_DIM = MODEL_DIM // NUM_HEADS
FF_HIDDEN = 256         # ff_hidden_dim
NUM_LAYERS = 2          # num_layers
OUTPUT_DICT = 64        # output_dict_size
VPAD = 128              # lane-dense padded predictor width
LN_EPS = 1e-5           # nn.LayerNorm default eps


# ------------------------------- kernel --------------------------------------
def fused_kernel(x_ref, pw_ref, posb_ref, weff_ref, ln1g_ref, ln1b_ref,
                 w1_ref, b1_ref, w2_ref, b2_ref, ln2g_ref, ln2b_ref,
                 wp_ref, bp_ref, o_ref, flat_ref):
    f32 = jnp.float32
    bf16 = jnp.bfloat16

    # ---- positional encoding: Linear(1 -> D)(x) + positional matrix (bias folded) ----
    x2 = x_ref[...] * pw_ref[...] + posb_ref[...]                  # (T, D) f32

    def layer_norm(h, gamma, beta):
        # nn.LayerNorm(normalized_shape=[T, D]): stats over the whole block
        # (this grid step = one batch element).  Two-pass form for accuracy.
        n = float(CONTEXT_LEN * MODEL_DIM)
        mean = jnp.sum(jnp.sum(h, axis=1, keepdims=True),
                       axis=0, keepdims=True) / n                  # (1, 1)
        d = h - mean
        var = jnp.sum(jnp.sum(d * d, axis=1, keepdims=True),
                      axis=0, keepdims=True) / n                   # biased var
        return d * lax.rsqrt(var + LN_EPS) * gamma + beta

    for l in range(NUM_LAYERS):
        # ---- multi-head attention block: reduces exactly to x @ (Wv_cat @ Wo) ----
        mha = jnp.dot(x2.astype(bf16), weff_ref[l], preferred_element_type=f32)
        x2 = layer_norm(x2 + mha, ln1g_ref[l], ln1b_ref[l])

        # ---- feed-forward ----
        h1 = jnp.dot(x2.astype(bf16), w1_ref[l],
                     preferred_element_type=f32) + b1_ref[l]
        h1 = jnp.maximum(h1, 0.0)
        h2 = jnp.dot(h1.astype(bf16), w2_ref[l],
                     preferred_element_type=f32) + b2_ref[l]
        x2 = layer_norm(x2 + h2, ln2g_ref[l], ln2b_ref[l])

    # ---- word predictor: flatten (T, D) -> (1, T*D), one K = T*D contraction ----
    for t in range(CONTEXT_LEN):
        flat_ref[:, t * MODEL_DIM:(t + 1) * MODEL_DIM] = x2[t:t + 1, :]
    logits = jnp.dot(flat_ref[...].astype(bf16), wp_ref[...],
                     preferred_element_type=f32)                   # (1, VPAD)
    o_ref[...] = logits + bp_ref[...]


# ------------------------------ wrapper ---------------------------------------
def _cost_estimate():
    T, D, F, L, B = CONTEXT_LEN, MODEL_DIM, FF_HIDDEN, NUM_LAYERS, BATCH
    per_batch = L * (2 * T * D * D + 4 * T * D * F) + 2 * (T * D) * VPAD
    flops = B * per_batch
    transcendentals = B * L * 2          # one rsqrt per LayerNorm
    return int(flops), int(transcendentals)


@jax.jit
def transformer_forward(x, params):
    T, D, F, L = CONTEXT_LEN, MODEL_DIM, FF_HIDDEN, NUM_LAYERS
    x3 = x.reshape(BATCH, T, 1).astype(jnp.float32)
    operands = (x3, params["pw"], params["posb"], params["weff"],
                params["ln1g"], params["ln1b"], params["w1"], params["b1"],
                params["w2"], params["b2"], params["ln2g"], params["ln2b"],
                params["wp"], params["bp"])

    def fixed(shape):
        nd = len(shape)
        return pl.BlockSpec(shape, lambda b, _nd=nd: (0,) * _nd)

    in_specs = [
        pl.BlockSpec((None, T, 1), lambda b: (b, 0, 0)),   # x: one batch element
        fixed((1, D)),                                     # pos-enc proj weight
        fixed((T, D)),                                     # pos matrix + proj bias
        fixed((L, D, D)),                                  # fused Wv_cat @ Wo (bf16)
        fixed((L, T, D)), fixed((L, T, D)),                # LayerNorm1 gamma/beta
        fixed((L, D, F)), fixed((L, 1, F)),                # ff1 weight/bias
        fixed((L, F, D)), fixed((L, 1, D)),                # ff2 weight/bias
        fixed((L, T, D)), fixed((L, T, D)),                # LayerNorm2 gamma/beta
        fixed((T * D, VPAD)),                              # predictor weight (flat)
        fixed((1, VPAD)),                                  # predictor bias (padded)
    ]
    flops, transcendentals = _cost_estimate()
    bytes_accessed = sum(int(a.size) * jnp.dtype(a.dtype).itemsize
                         for a in operands) + BATCH * VPAD * 4

    out = pl.pallas_call(
        fused_kernel,
        out_shape=jax.ShapeDtypeStruct((BATCH, 1, VPAD), jnp.float32),
        grid=(BATCH,),
        in_specs=in_specs,
        out_specs=pl.BlockSpec((None, 1, VPAD), lambda b: (b, 0, 0)),
        scratch_shapes=[pltpu.VMEM((1, T * D), jnp.float32)],
        compiler_params=pltpu.CompilerParams(
            dimension_semantics=("parallel",)),
        cost_estimate=pl.CostEstimate(flops=flops,
                                      transcendentals=transcendentals,
                                      bytes_accessed=int(bytes_accessed)),
    )(*operands)
    return out.reshape(BATCH, VPAD)[:, :OUTPUT_DICT]


# ------------------------------ parameters ------------------------------------
def make_positional_matrix(T, D):
    pos = jnp.arange(T, dtype=jnp.float32)[:, None]
    i = jnp.arange(D // 2, dtype=jnp.float32)[None, :]
    angle = pos / (10000.0 ** (2.0 * i / D))
    pm = jnp.zeros((T, D), jnp.float32)
    pm = pm.at[:, 0::2].set(jnp.sin(angle))
    pm = pm.at[:, 1::2].set(jnp.cos(angle))
    return pm


def init_params(key):
    T, D, F, L = CONTEXT_LEN, MODEL_DIM, FF_HIDDEN, NUM_LAYERS
    s = 0.05  # small deterministic init scale

    def split():
        nonlocal key
        key, sub = jax.random.split(key)
        return sub

    def rnd(shape):
        return s * jax.random.normal(split(), shape, jnp.float32)

    # PositionalEncoding: nn.Linear(1, D); bias folded into the positional matrix.
    proj_w = rnd((1, D))
    proj_b = rnd((1, D))
    posb = make_positional_matrix(T, D) + proj_b                    # (T, D)

    # Per-head projections (stored (in, out), heads concatenated along out) and
    # the MHA output projection.  Q/K provably never influence the output (the
    # masked-before-softmax row sums are exactly 1), so the kernel only needs
    # the offline-fused Wv_cat @ Wo; Q/K are kept for the f32 reference model.
    wq = rnd((L, D, D))
    wk = rnd((L, D, D))
    wv = rnd((L, D, D))
    wo = rnd((L, D, D))
    weff = jnp.einsum('lij,ljk->lik', wv, wo).astype(jnp.bfloat16)

    w1 = rnd((L, D, F)).astype(jnp.bfloat16)
    b1 = rnd((L, 1, F))
    w2 = rnd((L, F, D)).astype(jnp.bfloat16)
    b2 = rnd((L, 1, D))

    # Word predictor nn.Linear(T*D, V): weight pre-flattened/transposed to
    # (T*D, V) and lane-padded to VPAD so the kernel output stays lane-dense.
    wp = jnp.pad(rnd((T * D, OUTPUT_DICT)).astype(jnp.bfloat16),
                 ((0, 0), (0, VPAD - OUTPUT_DICT)))
    bp = jnp.pad(rnd((1, OUTPUT_DICT)), ((0, 0), (0, VPAD - OUTPUT_DICT)))

    return {
        "pw": proj_w, "posb": posb,
        "weff": weff,
        "ln1g": jnp.ones((L, T, D), jnp.float32),
        "ln1b": jnp.zeros((L, T, D), jnp.float32),
        "w1": w1, "b1": b1, "w2": w2, "b2": b2,
        "ln2g": jnp.ones((L, T, D), jnp.float32),
        "ln2b": jnp.zeros((L, T, D), jnp.float32),
        "wp": wp, "bp": bp,
        # f32 un-fused weights, used only by the pure-JAX reference model:
        "wq_ref": wq, "wk_ref": wk, "wv_ref": wv, "wo_ref": wo,
    }


# ------------------------- pure-JAX reference model ----------------------------
def reference_forward(x, params):
    """Faithful f32 re-implementation of the PyTorch module, including the full
    per-head Q/K masked-softmax `par_attention` path (values broadcast at the
    query position), used to validate the algebraic eliminations in the kernel."""
    T, D, H, Dh = CONTEXT_LEN, MODEL_DIM, NUM_HEADS, HEAD_DIM
    f32 = jnp.float32

    h = x[:, :, None] * params["pw"] + params["posb"][None]        # (B, T, D)

    def layer_norm(z, gamma, beta):
        mean = jnp.mean(z, axis=(1, 2), keepdims=True)
        var = jnp.mean((z - mean) ** 2, axis=(1, 2), keepdims=True)
        return (z - mean) * lax.rsqrt(var + LN_EPS) * gamma[None] + beta[None]

    causal = jnp.tril(jnp.ones((T, T), f32))
    for l in range(NUM_LAYERS):
        q = h @ params["wq_ref"][l]
        k = h @ params["wk_ref"][l]
        v = h @ params["wv_ref"][l]
        heads = []
        for hh in range(H):
            sl = slice(hh * Dh, (hh + 1) * Dh)
            raw = jnp.einsum('bid,bjd->bij', q[..., sl], k[..., sl])
            raw = jnp.where(causal == 0, -jnp.inf, raw)
            w = jax.nn.softmax(raw / jnp.sqrt(float(Dh)), axis=2)
            # par_attention quirk: V broadcast at the query position, summed over keys
            heads.append(jnp.sum(w[..., None] * v[..., sl][:, :, None, :], axis=2))
        mha = jnp.concatenate(heads, axis=-1) @ params["wo_ref"][l]
        h = layer_norm(h + mha, params["ln1g"][l], params["ln1b"][l])

        h1 = jnp.maximum(h @ params["w1"][l].astype(f32) + params["b1"][l], 0.0)
        h2 = h1 @ params["w2"][l].astype(f32) + params["b2"][l]
        h = layer_norm(h + h2, params["ln2g"][l], params["ln2b"][l])

    logits = h.reshape(BATCH, T * D) @ params["wp"].astype(f32) + params["bp"]
    return logits[:, :OUTPUT_DICT]


# -------------------------------- main -----------------------------------------
if __name__ == "__main__":
    key = jax.random.PRNGKey(0)
    kx, kp = jax.random.split(key)
    # PositionalEncoding consumes one scalar per position: x is (batch, context_len)
    x = jax.random.normal(kx, (BATCH, CONTEXT_LEN), dtype=jnp.float32)
    params = init_params(kp)

    out = transformer_forward(x, params)
    out = jax.block_until_ready(out)

    assert out.shape == (BATCH, OUTPUT_DICT), out.shape
    assert bool(jnp.all(jnp.isfinite(out)))

    # Validate against the faithful f32 reference (bf16 weights + fused Wv@Wo in
    # the kernel give small numeric differences; structural errors would be O(1)).
    ref = reference_forward(x, params)
    err = float(jnp.max(jnp.abs(out - ref)))
    assert err < 0.25, f"kernel/reference mismatch: max abs err = {err}"

    print("KERNEL_OK")
</pallas_src>

<mosaic_0001>
module attributes {stable_mosaic.version = 11 : i64} {
  func.func @fused_kernel(%arg0: i32, %arg1: memref<1x16x1xf32, #tpu.memory_space<vmem>>, %arg2: memref<1x128xf32, #tpu.memory_space<vmem>>, %arg3: memref<16x128xf32, #tpu.memory_space<vmem>>, %arg4: memref<2x128x128xbf16, #tpu.memory_space<vmem>>, %arg5: memref<2x16x128xf32, #tpu.memory_space<vmem>>, %arg6: memref<2x16x128xf32, #tpu.memory_space<vmem>>, %arg7: memref<2x128x256xbf16, #tpu.memory_space<vmem>>, %arg8: memref<2x1x256xf32, #tpu.memory_space<vmem>>, %arg9: memref<2x256x128xbf16, #tpu.memory_space<vmem>>, %arg10: memref<2x1x128xf32, #tpu.memory_space<vmem>>, %arg11: memref<2x16x128xf32, #tpu.memory_space<vmem>>, %arg12: memref<2x16x128xf32, #tpu.memory_space<vmem>>, %arg13: memref<2048x128xbf16, #tpu.memory_space<vmem>>, %arg14: memref<1x128xf32, #tpu.memory_space<vmem>>, %arg15: memref<1x1x128xf32, #tpu.memory_space<vmem>>, %arg16: memref<1x2048xf32, #tpu.memory_space<vmem>>) attributes {dimension_semantics = [#tpu.dimension_semantics<parallel>], iteration_bounds = array<i64: 2>, scalar_prefetch = 0 : i64, scratch_operands = 1 : i64, tpu.core_type = #tpu.core_type<tc>, window_params = [{transform_indices = @transform_0, window_bounds = array<i64: 1, 16, 1>}, {pipeline_mode = #tpu.pipeline_mode<synchronous>, transform_indices = @transform_1, window_bounds = array<i64: 1, 128>}, {pipeline_mode = #tpu.pipeline_mode<synchronous>, transform_indices = @transform_2, window_bounds = array<i64: 16, 128>}, {pipeline_mode = #tpu.pipeline_mode<synchronous>, transform_indices = @transform_3, window_bounds = array<i64: 2, 128, 128>}, {pipeline_mode = #tpu.pipeline_mode<synchronous>, transform_indices = @transform_4, window_bounds = array<i64: 2, 16, 128>}, {pipeline_mode = #tpu.pipeline_mode<synchronous>, transform_indices = @transform_5, window_bounds = array<i64: 2, 16, 128>}, {pipeline_mode = #tpu.pipeline_mode<synchronous>, transform_indices = @transform_6, window_bounds = array<i64: 2, 128, 256>}, {pipeline_mode = #tpu.pipeline_mode<synchronous>, transform_indices = @transform_7, window_bounds = array<i64: 2, 1, 256>}, {pipeline_mode = #tpu.pipeline_mode<synchronous>, transform_indices = @transform_8, window_bounds = array<i64: 2, 256, 128>}, {pipeline_mode = #tpu.pipeline_mode<synchronous>, transform_indices = @transform_9, window_bounds = array<i64: 2, 1, 128>}, {pipeline_mode = #tpu.pipeline_mode<synchronous>, transform_indices = @transform_10, window_bounds = array<i64: 2, 16, 128>}, {pipeline_mode = #tpu.pipeline_mode<synchronous>, transform_indices = @transform_11, window_bounds = array<i64: 2, 16, 128>}, {pipeline_mode = #tpu.pipeline_mode<synchronous>, transform_indices = @transform_12, window_bounds = array<i64: 2048, 128>}, {pipeline_mode = #tpu.pipeline_mode<synchronous>, transform_indices = @transform_13, window_bounds = array<i64: 1, 128>}, {transform_indices = @transform_14, window_bounds = array<i64: 1, 1, 128>}]} {
    %c0 = arith.constant 0 : index
    %c0_0 = arith.constant 0 : index
    %c0_1 = arith.constant 0 : index
    %0 = vector.load %arg1[%c0, %c0_0, %c0_1] : memref<1x16x1xf32, #tpu.memory_space<vmem>>, vector<1x16x1xf32>
    %1 = vector.shape_cast %0 : vector<1x16x1xf32> to vector<16x1xf32>
    %c0_2 = arith.constant 0 : index
    %c0_3 = arith.constant 0 : index
    %2 = vector.load %arg2[%c0_2, %c0_3] : memref<1x128xf32, #tpu.memory_space<vmem>>, vector<1x128xf32>
    %3 = vector.broadcast %1 : vector<16x1xf32> to vector<16x128xf32>
    %4 = vector.broadcast %2 : vector<1x128xf32> to vector<16x128xf32>
    %5 = arith.mulf %3, %4 : vector<16x128xf32>
    %c0_4 = arith.constant 0 : index
    %c0_5 = arith.constant 0 : index
    %6 = vector.load %arg3[%c0_4, %c0_5] : memref<16x128xf32, #tpu.memory_space<vmem>>, vector<16x128xf32>
    %7 = arith.addf %5, %6 : vector<16x128xf32>
    %8 = arith.truncf %7 : vector<16x128xf32> to vector<16x128xbf16>
    %c0_6 = arith.constant 0 : index
    %c0_7 = arith.constant 0 : index
    %c0_8 = arith.constant 0 : index
    %9 = vector.load %arg4[%c0_6, %c0_7, %c0_8] : memref<2x128x128xbf16, #tpu.memory_space<vmem>>, vector<1x128x128xbf16>
    %10 = vector.shape_cast %9 : vector<1x128x128xbf16> to vector<128x128xbf16>
    %cst = arith.constant dense<0.000000e+00> : vector<16x128xf32>
    %11 = tpu.matmul %8, %10, %cst {dimension_numbers = #tpu.dot_dimension_numbers<[1], [0], [0], [1], [0, 0, 1, 1], [], []>} : vector<16x128xbf16>, vector<128x128xbf16>, vector<16x128xf32> -> vector<16x128xf32>
    %12 = arith.addf %7, %11 : vector<16x128xf32>
    %c0_9 = arith.constant 0 : index
    %c0_10 = arith.constant 0 : index
    %c0_11 = arith.constant 0 : index
    %13 = vector.load %arg5[%c0_9, %c0_10, %c0_11] : memref<2x16x128xf32, #tpu.memory_space<vmem>>, vector<1x16x128xf32>
    %14 = vector.shape_cast %13 : vector<1x16x128xf32> to vector<16x128xf32>
    %c0_12 = arith.constant 0 : index
    %c0_13 = arith.constant 0 : index
    %c0_14 = arith.constant 0 : index
    %15 = vector.load %arg6[%c0_12, %c0_13, %c0_14] : memref<2x16x128xf32, #tpu.memory_space<vmem>>, vector<1x16x128xf32>
    %16 = vector.shape_cast %15 : vector<1x16x128xf32> to vector<16x128xf32>
    %cst_15 = arith.constant dense<0.000000e+00> : vector<16xf32>
    %17 = vector.multi_reduction <add>, %12, %cst_15 [1] : vector<16x128xf32> to vector<16xf32>
    %18 = vector.shape_cast %17 : vector<16xf32> to vector<16x1xf32>
    %cst_16 = arith.constant dense<0.000000e+00> : vector<1xf32>
    %19 = vector.multi_reduction <add>, %18, %cst_16 [0] : vector<16x1xf32> to vector<1xf32>
    %20 = vector.shape_cast %19 : vector<1xf32> to vector<1x1xf32>
    %cst_17 = arith.constant 2.048000e+03 : f32
    %21 = vector.broadcast %cst_17 : f32 to vector<1x1xf32>
    %22 = arith.divf %20, %21 : vector<1x1xf32>
    %23 = vector.broadcast %22 : vector<1x1xf32> to vector<16x128xf32>
    %24 = arith.subf %12, %23 : vector<16x128xf32>
    %25 = arith.mulf %24, %24 : vector<16x128xf32>
    %cst_18 = arith.constant dense<0.000000e+00> : vector<16xf32>
    %26 = vector.multi_reduction <add>, %25, %cst_18 [1] : vector<16x128xf32> to vector<16xf32>
    %27 = vector.shape_cast %26 : vector<16xf32> to vector<16x1xf32>
    %cst_19 = arith.constant dense<0.000000e+00> : vector<1xf32>
    %28 = vector.multi_reduction <add>, %27, %cst_19 [0] : vector<16x1xf32> to vector<1xf32>
    %29 = vector.shape_cast %28 : vector<1xf32> to vector<1x1xf32>
    %cst_20 = arith.constant 2.048000e+03 : f32
    %30 = vector.broadcast %cst_20 : f32 to vector<1x1xf32>
    %31 = arith.divf %29, %30 : vector<1x1xf32>
    %cst_21 = arith.constant 9.99999974E-6 : f32
    %32 = vector.broadcast %cst_21 : f32 to vector<1x1xf32>
    %33 = arith.addf %31, %32 : vector<1x1xf32>
    %34 = math.rsqrt %33 : vector<1x1xf32>
    %35 = vector.broadcast %34 : vector<1x1xf32> to vector<16x128xf32>
    %36 = arith.mulf %24, %35 : vector<16x128xf32>
    %37 = arith.mulf %36, %14 : vector<16x128xf32>
    %38 = arith.addf %37, %16 : vector<16x128xf32>
    %39 = arith.truncf %38 : vector<16x128xf32> to vector<16x128xbf16>
    %c0_22 = arith.constant 0 : index
    %c0_23 = arith.constant 0 : index
    %c0_24 = arith.constant 0 : index
    %40 = vector.load %arg7[%c0_22, %c0_23, %c0_24] : memref<2x128x256xbf16, #tpu.memory_space<vmem>>, vector<1x128x256xbf16>
    %41 = vector.shape_cast %40 : vector<1x128x256xbf16> to vector<128x256xbf16>
    %cst_25 = arith.constant dense<0.000000e+00> : vector<16x256xf32>
    %42 = tpu.matmul %39, %41, %cst_25 {dimension_numbers = #tpu.dot_dimension_numbers<[1], [0], [0], [1], [0, 0, 1, 1], [], []>} : vector<16x128xbf16>, vector<128x256xbf16>, vector<16x256xf32> -> vector<16x256xf32>
    %c0_26 = arith.constant 0 : index
    %c0_27 = arith.constant 0 : index
    %c0_28 = arith.constant 0 : index
    %43 = vector.load %arg8[%c0_26, %c0_27, %c0_28] : memref<2x1x256xf32, #tpu.memory_space<vmem>>, vector<1x1x256xf32>
    %44 = vector.shape_cast %43 : vector<1x1x256xf32> to vector<1x256xf32>
    %45 = vector.broadcast %44 : vector<1x256xf32> to vector<16x256xf32>
    %46 = arith.addf %42, %45 : vector<16x256xf32>
    %cst_29 = arith.constant 0.000000e+00 : f32
    %47 = vector.broadcast %cst_29 : f32 to vector<16x256xf32>
    %48 = arith.maximumf %46, %47 : vector<16x256xf32>
    %49 = arith.truncf %48 : vector<16x256xf32> to vector<16x256xbf16>
    %c0_30 = arith.constant 0 : index
    %c0_31 = arith.constant 0 : index
    %c0_32 = arith.constant 0 : index
    %50 = vector.load %arg9[%c0_30, %c0_31, %c0_32] : memref<2x256x128xbf16, #tpu.memory_space<vmem>>, vector<1x256x128xbf16>
    %51 = vector.shape_cast %50 : vector<1x256x128xbf16> to vector<256x128xbf16>
    %cst_33 = arith.constant dense<0.000000e+00> : vector<16x128xf32>
    %52 = tpu.matmul %49, %51, %cst_33 {dimension_numbers = #tpu.dot_dimension_numbers<[1], [0], [0], [1], [0, 0, 1, 1], [], []>} : vector<16x256xbf16>, vector<256x128xbf16>, vector<16x128xf32> -> vector<16x128xf32>
    %c0_34 = arith.constant 0 : index
    %c0_35 = arith.constant 0 : index
    %c0_36 = arith.constant 0 : index
    %53 = vector.load %arg10[%c0_34, %c0_35, %c0_36] : memref<2x1x128xf32, #tpu.memory_space<vmem>>, vector<1x1x128xf32>
    %54 = vector.shape_cast %53 : vector<1x1x128xf32> to vector<1x128xf32>
    %55 = vector.broadcast %54 : vector<1x128xf32> to vector<16x128xf32>
    %56 = arith.addf %52, %55 : vector<16x128xf32>
    %57 = arith.addf %38, %56 : vector<16x128xf32>
    %c0_37 = arith.constant 0 : index
    %c0_38 = arith.constant 0 : index
    %c0_39 = arith.constant 0 : index
    %58 = vector.load %arg11[%c0_37, %c0_38, %c0_39] : memref<2x16x128xf32, #tpu.memory_space<vmem>>, vector<1x16x128xf32>
    %59 = vector.shape_cast %58 : vector<1x16x128xf32> to vector<16x128xf32>
    %c0_40 = arith.constant 0 : index
    %c0_41 = arith.constant 0 : index
    %c0_42 = arith.constant 0 : index
    %60 = vector.load %arg12[%c0_40, %c0_41, %c0_42] : memref<2x16x128xf32, #tpu.memory_space<vmem>>, vector<1x16x128xf32>
    %61 = vector.shape_cast %60 : vector<1x16x128xf32> to vector<16x128xf32>
    %cst_43 = arith.constant dense<0.000000e+00> : vector<16xf32>
    %62 = vector.multi_reduction <add>, %57, %cst_43 [1] : vector<16x128xf32> to vector<16xf32>
    %63 = vector.shape_cast %62 : vector<16xf32> to vector<16x1xf32>
    %cst_44 = arith.constant dense<0.000000e+00> : vector<1xf32>
    %64 = vector.multi_reduction <add>, %63, %cst_44 [0] : vector<16x1xf32> to vector<1xf32>
    %65 = vector.shape_cast %64 : vector<1xf32> to vector<1x1xf32>
    %cst_45 = arith.constant 2.048000e+03 : f32
    %66 = vector.broadcast %cst_45 : f32 to vector<1x1xf32>
    %67 = arith.divf %65, %66 : vector<1x1xf32>
    %68 = vector.broadcast %67 : vector<1x1xf32> to vector<16x128xf32>
    %69 = arith.subf %57, %68 : vector<16x128xf32>
    %70 = arith.mulf %69, %69 : vector<16x128xf32>
    %cst_46 = arith.constant dense<0.000000e+00> : vector<16xf32>
    %71 = vector.multi_reduction <add>, %70, %cst_46 [1] : vector<16x128xf32> to vector<16xf32>
    %72 = vector.shape_cast %71 : vector<16xf32> to vector<16x1xf32>
    %cst_47 = arith.constant dense<0.000000e+00> : vector<1xf32>
    %73 = vector.multi_reduction <add>, %72, %cst_47 [0] : vector<16x1xf32> to vector<1xf32>
    %74 = vector.shape_cast %73 : vector<1xf32> to vector<1x1xf32>
    %cst_48 = arith.constant 2.048000e+03 : f32
    %75 = vector.broadcast %cst_48 : f32 to vector<1x1xf32>
    %76 = arith.divf %74, %75 : vector<1x1xf32>
    %cst_49 = arith.constant 9.99999974E-6 : f32
    %77 = vector.broadcast %cst_49 : f32 to vector<1x1xf32>
    %78 = arith.addf %76, %77 : vector<1x1xf32>
    %79 = math.rsqrt %78 : vector<1x1xf32>
    %80 = vector.broadcast %79 : vector<1x1xf32> to vector<16x128xf32>
    %81 = arith.mulf %69, %80 : vector<16x128xf32>
    %82 = arith.mulf %81, %59 : vector<16x128xf32>
    %83 = arith.addf %82, %61 : vector<16x128xf32>
    %84 = arith.truncf %83 : vector<16x128xf32> to vector<16x128xbf16>
    %c1 = arith.constant 1 : index
    %c0_50 = arith.constant 0 : index
    %c0_51 = arith.constant 0 : index
    %85 = vector.load %arg4[%c1, %c0_50, %c0_51] : memref<2x128x128xbf16, #tpu.memory_space<vmem>>, vector<1x128x128xbf16>
    %86 = vector.shape_cast %85 : vector<1x128x128xbf16> to vector<128x128xbf16>
    %cst_52 = arith.constant dense<0.000000e+00> : vector<16x128xf32>
    %87 = tpu.matmul %84, %86, %cst_52 {dimension_numbers = #tpu.dot_dimension_numbers<[1], [0], [0], [1], [0, 0, 1, 1], [], []>} : vector<16x128xbf16>, vector<128x128xbf16>, vector<16x128xf32> -> vector<16x128xf32>
    %88 = arith.addf %83, %87 : vector<16x128xf32>
    %c1_53 = arith.constant 1 : index
    %c0_54 = arith.constant 0 : index
    %c0_55 = arith.constant 0 : index
    %89 = vector.load %arg5[%c1_53, %c0_54, %c0_55] : memref<2x16x128xf32, #tpu.memory_space<vmem>>, vector<1x16x128xf32>
    %90 = vector.shape_cast %89 : vector<1x16x128xf32> to vector<16x128xf32>
    %c1_56 = arith.constant 1 : index
    %c0_57 = arith.constant 0 : index
    %c0_58 = arith.constant 0 : index
    %91 = vector.load %arg6[%c1_56, %c0_57, %c0_58] : memref<2x16x128xf32, #tpu.memory_space<vmem>>, vector<1x16x128xf32>
    %92 = vector.shape_cast %91 : vector<1x16x128xf32> to vector<16x128xf32>
    %cst_59 = arith.constant dense<0.000000e+00> : vector<16xf32>
    %93 = vector.multi_reduction <add>, %88, %cst_59 [1] : vector<16x128xf32> to vector<16xf32>
    %94 = vector.shape_cast %93 : vector<16xf32> to vector<16x1xf32>
    %cst_60 = arith.constant dense<0.000000e+00> : vector<1xf32>
    %95 = vector.multi_reduction <add>, %94, %cst_60 [0] : vector<16x1xf32> to vector<1xf32>
    %96 = vector.shape_cast %95 : vector<1xf32> to vector<1x1xf32>
    %cst_61 = arith.constant 2.048000e+03 : f32
    %97 = vector.broadcast %cst_61 : f32 to vector<1x1xf32>
    %98 = arith.divf %96, %97 : vector<1x1xf32>
    %99 = vector.broadcast %98 : vector<1x1xf32> to vector<16x128xf32>
    %100 = arith.subf %88, %99 : vector<16x128xf32>
    %101 = arith.mulf %100, %100 : vector<16x128xf32>
    %cst_62 = arith.constant dense<0.000000e+00> : vector<16xf32>
    %102 = vector.multi_reduction <add>, %101, %cst_62 [1] : vector<16x128xf32> to vector<16xf32>
    %103 = vector.shape_cast %102 : vector<16xf32> to vector<16x1xf32>
    %cst_63 = arith.constant dense<0.000000e+00> : vector<1xf32>
    %104 = vector.multi_reduction <add>, %103, %cst_63 [0] : vector<16x1xf32> to vector<1xf32>
    %105 = vector.shape_cast %104 : vector<1xf32> to vector<1x1xf32>
    %cst_64 = arith.constant 2.048000e+03 : f32
    %106 = vector.broadcast %cst_64 : f32 to vector<1x1xf32>
    %107 = arith.divf %105, %106 : vector<1x1xf32>
    %cst_65 = arith.constant 9.99999974E-6 : f32
    %108 = vector.broadcast %cst_65 : f32 to vector<1x1xf32>
    %109 = arith.addf %107, %108 : vector<1x1xf32>
    %110 = math.rsqrt %109 : vector<1x1xf32>
    %111 = vector.broadcast %110 : vector<1x1xf32> to vector<16x128xf32>
    %112 = arith.mulf %100, %111 : vector<16x128xf32>
    %113 = arith.mulf %112, %90 : vector<16x128xf32>
    %114 = arith.addf %113, %92 : vector<16x128xf32>
    %115 = arith.truncf %114 : vector<16x128xf32> to vector<16x128xbf16>
    %c1_66 = arith.constant 1 : index
    %c0_67 = arith.constant 0 : index
    %c0_68 = arith.constant 0 : index
    %116 = vector.load %arg7[%c1_66, %c0_67, %c0_68] : memref<2x128x256xbf16, #tpu.memory_space<vmem>>, vector<1x128x256xbf16>
    %117 = vector.shape_cast %116 : vector<1x128x256xbf16> to vector<128x256xbf16>
    %cst_69 = arith.constant dense<0.000000e+00> : vector<16x256xf32>
    %118 = tpu.matmul %115, %117, %cst_69 {dimension_numbers = #tpu.dot_dimension_numbers<[1], [0], [0], [1], [0, 0, 1, 1], [], []>} : vector<16x128xbf16>, vector<128x256xbf16>, vector<16x256xf32> -> vector<16x256xf32>
    %c1_70 = arith.constant 1 : index
    %c0_71 = arith.constant 0 : index
    %c0_72 = arith.constant 0 : index
    %119 = vector.load %arg8[%c1_70, %c0_71, %c0_72] : memref<2x1x256xf32, #tpu.memory_space<vmem>>, vector<1x1x256xf32>
    %120 = vector.shape_cast %119 : vector<1x1x256xf32> to vector<1x256xf32>
    %121 = vector.broadcast %120 : vector<1x256xf32> to vector<16x256xf32>
    %122 = arith.addf %118, %121 : vector<16x256xf32>
    %cst_73 = arith.constant 0.000000e+00 : f32
    %123 = vector.broadcast %cst_73 : f32 to vector<16x256xf32>
    %124 = arith.maximumf %122, %123 : vector<16x256xf32>
    %125 = arith.truncf %124 : vector<16x256xf32> to vector<16x256xbf16>
    %c1_74 = arith.constant 1 : index
    %c0_75 = arith.constant 0 : index
    %c0_76 = arith.constant 0 : index
    %126 = vector.load %arg9[%c1_74, %c0_75, %c0_76] : memref<2x256x128xbf16, #tpu.memory_space<vmem>>, vector<1x256x128xbf16>
    %127 = vector.shape_cast %126 : vector<1x256x128xbf16> to vector<256x128xbf16>
    %cst_77 = arith.constant dense<0.000000e+00> : vector<16x128xf32>
    %128 = tpu.matmul %125, %127, %cst_77 {dimension_numbers = #tpu.dot_dimension_numbers<[1], [0], [0], [1], [0, 0, 1, 1], [], []>} : vector<16x256xbf16>, vector<256x128xbf16>, vector<16x128xf32> -> vector<16x128xf32>
    %c1_78 = arith.constant 1 : index
    %c0_79 = arith.constant 0 : index
    %c0_80 = arith.constant 0 : index
    %129 = vector.load %arg10[%c1_78, %c0_79, %c0_80] : memref<2x1x128xf32, #tpu.memory_space<vmem>>, vector<1x1x128xf32>
    %130 = vector.shape_cast %129 : vector<1x1x128xf32> to vector<1x128xf32>
    %131 = vector.broadcast %130 : vector<1x128xf32> to vector<16x128xf32>
    %132 = arith.addf %128, %131 : vector<16x128xf32>
    %133 = arith.addf %114, %132 : vector<16x128xf32>
    %c1_81 = arith.constant 1 : index
    %c0_82 = arith.constant 0 : index
    %c0_83 = arith.constant 0 : index
    %134 = vector.load %arg11[%c1_81, %c0_82, %c0_83] : memref<2x16x128xf32, #tpu.memory_space<vmem>>, vector<1x16x128xf32>
    %135 = vector.shape_cast %134 : vector<1x16x128xf32> to vector<16x128xf32>
    %c1_84 = arith.constant 1 : index
    %c0_85 = arith.constant 0 : index
    %c0_86 = arith.constant 0 : index
    %136 = vector.load %arg12[%c1_84, %c0_85, %c0_86] : memref<2x16x128xf32, #tpu.memory_space<vmem>>, vector<1x16x128xf32>
    %137 = vector.shape_cast %136 : vector<1x16x128xf32> to vector<16x128xf32>
    %cst_87 = arith.constant dense<0.000000e+00> : vector<16xf32>
    %138 = vector.multi_reduction <add>, %133, %cst_87 [1] : vector<16x128xf32> to vector<16xf32>
    %139 = vector.shape_cast %138 : vector<16xf32> to vector<16x1xf32>
    %cst_88 = arith.constant dense<0.000000e+00> : vector<1xf32>
    %140 = vector.multi_reduction <add>, %139, %cst_88 [0] : vector<16x1xf32> to vector<1xf32>
    %141 = vector.shape_cast %140 : vector<1xf32> to vector<1x1xf32>
    %cst_89 = arith.constant 2.048000e+03 : f32
    %142 = vector.broadcast %cst_89 : f32 to vector<1x1xf32>
    %143 = arith.divf %141, %142 : vector<1x1xf32>
    %144 = vector.broadcast %143 : vector<1x1xf32> to vector<16x128xf32>
    %145 = arith.subf %133, %144 : vector<16x128xf32>
    %146 = arith.mulf %145, %145 : vector<16x128xf32>
    %cst_90 = arith.constant dense<0.000000e+00> : vector<16xf32>
    %147 = vector.multi_reduction <add>, %146, %cst_90 [1] : vector<16x128xf32> to vector<16xf32>
    %148 = vector.shape_cast %147 : vector<16xf32> to vector<16x1xf32>
    %cst_91 = arith.constant dense<0.000000e+00> : vector<1xf32>
    %149 = vector.multi_reduction <add>, %148, %cst_91 [0] : vector<16x1xf32> to vector<1xf32>
    %150 = vector.shape_cast %149 : vector<1xf32> to vector<1x1xf32>
    %cst_92 = arith.constant 2.048000e+03 : f32
    %151 = vector.broadcast %cst_92 : f32 to vector<1x1xf32>
    %152 = arith.divf %150, %151 : vector<1x1xf32>
    %cst_93 = arith.constant 9.99999974E-6 : f32
    %153 = vector.broadcast %cst_93 : f32 to vector<1x1xf32>
    %154 = arith.addf %152, %153 : vector<1x1xf32>
    %155 = math.rsqrt %154 : vector<1x1xf32>
    %156 = vector.broadcast %155 : vector<1x1xf32> to vector<16x128xf32>
    %157 = arith.mulf %145, %156 : vector<16x128xf32>
    %158 = arith.mulf %157, %135 : vector<16x128xf32>
    %159 = arith.addf %158, %137 : vector<16x128xf32>
    %160 = vector.extract_strided_slice %159 {offsets = [0, 0], sizes = [1, 128], strides = [1, 1]} : vector<16x128xf32> to vector<1x128xf32>
    %c0_94 = arith.constant 0 : index
    %c0_95 = arith.constant 0 : index
    %161 = vector.load %arg16[%c0_94, %c0_95] : memref<1x2048xf32, #tpu.memory_space<vmem>>, vector<1x128xf32>
    tpu.vector_store %arg16[%c0_94, %c0_95], %160 {strides = array<i32>} : memref<1x2048xf32, #tpu.memory_space<vmem>>, vector<1x128xf32>,
    %162 = vector.extract_strided_slice %159 {offsets = [1, 0], sizes = [1, 128], strides = [1, 1]} : vector<16x128xf32> to vector<1x128xf32>
    %c0_96 = arith.constant 0 : index
    %c128 = arith.constant 128 : index
    %163 = vector.load %arg16[%c0_96, %c128] : memref<1x2048xf32, #tpu.memory_space<vmem>>, vector<1x128xf32>
    tpu.vector_store %arg16[%c0_96, %c128], %162 {strides = array<i32>} : memref<1x2048xf32, #tpu.memory_space<vmem>>, vector<1x128xf32>,
    %164 = vector.extract_strided_slice %159 {offsets = [2, 0], sizes = [1, 128], strides = [1, 1]} : vector<16x128xf32> to vector<1x128xf32>
    %c0_97 = arith.constant 0 : index
    %c256 = arith.constant 256 : index
    %165 = vector.load %arg16[%c0_97, %c256] : memref<1x2048xf32, #tpu.memory_space<vmem>>, vector<1x128xf32>
    tpu.vector_store %arg16[%c0_97, %c256], %164 {strides = array<i32>} : memref<1x2048xf32, #tpu.memory_space<vmem>>, vector<1x128xf32>,
    %166 = vector.extract_strided_slice %159 {offsets = [3, 0], sizes = [1, 128], strides = [1, 1]} : vector<16x128xf32> to vector<1x128xf32>
    %c0_98 = arith.constant 0 : index
    %c384 = arith.constant 384 : index
    %167 = vector.load %arg16[%c0_98, %c384] : memref<1x2048xf32, #tpu.memory_space<vmem>>, vector<1x128xf32>
    tpu.vector_store %arg16[%c0_98, %c384], %166 {strides = array<i32>} : memref<1x2048xf32, #tpu.memory_space<vmem>>, vector<1x128xf32>,
    %168 = vector.extract_strided_slice %159 {offsets = [4, 0], sizes = [1, 128], strides = [1, 1]} : vector<16x128xf32> to vector<1x128xf32>
    %c0_99 = arith.constant 0 : index
    %c512 = arith.constant 512 : index
    %169 = vector.load %arg16[%c0_99, %c512] : memref<1x2048xf32, #tpu.memory_space<vmem>>, vector<1x128xf32>
    tpu.vector_store %arg16[%c0_99, %c512], %168 {strides = array<i32>} : memref<1x2048xf32, #tpu.memory_space<vmem>>, vector<1x128xf32>,
    %170 = vector.extract_strided_slice %159 {offsets = [5, 0], sizes = [1, 128], strides = [1, 1]} : vector<16x128xf32> to vector<1x128xf32>
    %c0_100 = arith.constant 0 : index
    %c640 = arith.constant 640 : index
    %171 = vector.load %arg16[%c0_100, %c640] : memref<1x2048xf32, #tpu.memory_space<vmem>>, vector<1x128xf32>
    tpu.vector_store %arg16[%c0_100, %c640], %170 {strides = array<i32>} : memref<1x2048xf32, #tpu.memory_space<vmem>>, vector<1x128xf32>,
    %172 = vector.extract_strided_slice %159 {offsets = [6, 0], sizes = [1, 128], strides = [1, 1]} : vector<16x128xf32> to vector<1x128xf32>
    %c0_101 = arith.constant 0 : index
    %c768 = arith.constant 768 : index
    %173 = vector.load %arg16[%c0_101, %c768] : memref<1x2048xf32, #tpu.memory_space<vmem>>, vector<1x128xf32>
    tpu.vector_store %arg16[%c0_101, %c768], %172 {strides = array<i32>} : memref<1x2048xf32, #tpu.memory_space<vmem>>, vector<1x128xf32>,
    %174 = vector.extract_strided_slice %159 {offsets = [7, 0], sizes = [1, 128], strides = [1, 1]} : vector<16x128xf32> to vector<1x128xf32>
    %c0_102 = arith.constant 0 : index
    %c896 = arith.constant 896 : index
    %175 = vector.load %arg16[%c0_102, %c896] : memref<1x2048xf32, #tpu.memory_space<vmem>>, vector<1x128xf32>
    tpu.vector_store %arg16[%c0_102, %c896], %174 {strides = array<i32>} : memref<1x2048xf32, #tpu.memory_space<vmem>>, vector<1x128xf32>,
    %176 = vector.extract_strided_slice %159 {offsets = [8, 0], sizes = [1, 128], strides = [1, 1]} : vector<16x128xf32> to vector<1x128xf32>
    %c0_103 = arith.constant 0 : index
    %c1024 = arith.constant 1024 : index
    %177 = vector.load %arg16[%c0_103, %c1024] : memref<1x2048xf32, #tpu.memory_space<vmem>>, vector<1x128xf32>
    tpu.vector_store %arg16[%c0_103, %c1024], %176 {strides = array<i32>} : memref<1x2048xf32, #tpu.memory_space<vmem>>, vector<1x128xf32>,
    %178 = vector.extract_strided_slice %159 {offsets = [9, 0], sizes = [1, 128], strides = [1, 1]} : vector<16x128xf32> to vector<1x128xf32>
    %c0_104 = arith.constant 0 : index
    %c1152 = arith.constant 1152 : index
    %179 = vector.load %arg16[%c0_104, %c1152] : memref<1x2048xf32, #tpu.memory_space<vmem>>, vector<1x128xf32>
    tpu.vector_store %arg16[%c0_104, %c1152], %178 {strides = array<i32>} : memref<1x2048xf32, #tpu.memory_space<vmem>>, vector<1x128xf32>,
    %180 = vector.extract_strided_slice %159 {offsets = [10, 0], sizes = [1, 128], strides = [1, 1]} : vector<16x128xf32> to vector<1x128xf32>
    %c0_105 = arith.constant 0 : index
    %c1280 = arith.constant 1280 : index
    %181 = vector.load %arg16[%c0_105, %c1280] : memref<1x2048xf32, #tpu.memory_space<vmem>>, vector<1x128xf32>
    tpu.vector_store %arg16[%c0_105, %c1280], %180 {strides = array<i32>} : memref<1x2048xf32, #tpu.memory_space<vmem>>, vector<1x128xf32>,
    %182 = vector.extract_strided_slice %159 {offsets = [11, 0], sizes = [1, 128], strides = [1, 1]} : vector<16x128xf32> to vector<1x128xf32>
    %c0_106 = arith.constant 0 : index
    %c1408 = arith.constant 1408 : index
    %183 = vector.load %arg16[%c0_106, %c1408] : memref<1x2048xf32, #tpu.memory_space<vmem>>, vector<1x128xf32>
    tpu.vector_store %arg16[%c0_106, %c1408], %182 {strides = array<i32>} : memref<1x2048xf32, #tpu.memory_space<vmem>>, vector<1x128xf32>,
    %184 = vector.extract_strided_slice %159 {offsets = [12, 0], sizes = [1, 128], strides = [1, 1]} : vector<16x128xf32> to vector<1x128xf32>
    %c0_107 = arith.constant 0 : index
    %c1536 = arith.constant 1536 : index
    %185 = vector.load %arg16[%c0_107, %c1536] : memref<1x2048xf32, #tpu.memory_space<vmem>>, vector<1x128xf32>
    tpu.vector_store %arg16[%c0_107, %c1536], %184 {strides = array<i32>} : memref<1x2048xf32, #tpu.memory_space<vmem>>, vector<1x128xf32>,
    %186 = vector.extract_strided_slice %159 {offsets = [13, 0], sizes = [1, 128], strides = [1, 1]} : vector<16x128xf32> to vector<1x128xf32>
    %c0_108 = arith.constant 0 : index
    %c1664 = arith.constant 1664 : index
    %187 = vector.load %arg16[%c0_108, %c1664] : memref<1x2048xf32, #tpu.memory_space<vmem>>, vector<1x128xf32>
    tpu.vector_store %arg16[%c0_108, %c1664], %186 {strides = array<i32>} : memref<1x2048xf32, #tpu.memory_space<vmem>>, vector<1x128xf32>,
    %188 = vector.extract_strided_slice %159 {offsets = [14, 0], sizes = [1, 128], strides = [1, 1]} : vector<16x128xf32> to vector<1x128xf32>
    %c0_109 = arith.constant 0 : index
    %c1792 = arith.constant 1792 : index
    %189 = vector.load %arg16[%c0_109, %c1792] : memref<1x2048xf32, #tpu.memory_space<vmem>>, vector<1x128xf32>
    tpu.vector_store %arg16[%c0_109, %c1792], %188 {strides = array<i32>} : memref<1x2048xf32, #tpu.memory_space<vmem>>, vector<1x128xf32>,
    %190 = vector.extract_strided_slice %159 {offsets = [15, 0], sizes = [1, 128], strides = [1, 1]} : vector<16x128xf32> to vector<1x128xf32>
    %c0_110 = arith.constant 0 : index
    %c1920 = arith.constant 1920 : index
    %191 = vector.load %arg16[%c0_110, %c1920] : memref<1x2048xf32, #tpu.memory_space<vmem>>, vector<1x128xf32>
    tpu.vector_store %arg16[%c0_110, %c1920], %190 {strides = array<i32>} : memref<1x2048xf32, #tpu.memory_space<vmem>>, vector<1x128xf32>,
    %c0_111 = arith.constant 0 : index
    %c0_112 = arith.constant 0 : index
    %192 = vector.load %arg16[%c0_111, %c0_112] : memref<1x2048xf32, #tpu.memory_space<vmem>>, vector<1x2048xf32>
    %193 = arith.truncf %192 : vector<1x2048xf32> to vector<1x2048xbf16>
    %c0_113 = arith.constant 0 : index
    %c0_114 = arith.constant 0 : index
    %194 = vector.load %arg13[%c0_113, %c0_114] : memref<2048x128xbf16, #tpu.memory_space<vmem>>, vector<2048x128xbf16>
    %cst_115 = arith.constant dense<0.000000e+00> : vector<1x128xf32>
    %195 = tpu.matmul %193, %194, %cst_115 {dimension_numbers = #tpu.dot_dimension_numbers<[1], [0], [0], [1], [0, 0, 1, 1], [], []>} : vector<1x2048xbf16>, vector<2048x128xbf16>, vector<1x128xf32> -> vector<1x128xf32>
    %c0_116 = arith.constant 0 : index
    %c0_117 = arith.constant 0 : index
    %196 = vector.load %arg14[%c0_116, %c0_117] : memref<1x128xf32, #tpu.memory_space<vmem>>, vector<1x128xf32>
    %197 = arith.addf %195, %196 : vector<1x128xf32>
    %c0_118 = arith.constant 0 : index
    %c0_119 = arith.constant 0 : index
    %c0_120 = arith.constant 0 : index
    %198 = vector.load %arg15[%c0_118, %c0_119, %c0_120] : memref<1x1x128xf32, #tpu.memory_space<vmem>>, vector<1x1x128xf32>
    %199 = vector.shape_cast %198 : vector<1x1x128xf32> to vector<1x128xf32>
    %200 = vector.shape_cast %197 : vector<1x128xf32> to vector<1x1x128xf32>
    tpu.vector_store %arg15[%c0_118, %c0_119, %c0_120], %200 {strides = array<i32>} : memref<1x1x128xf32, #tpu.memory_space<vmem>>, vector<1x1x128xf32>,
    return
  }
  func.func @transform_0(%arg0: i32) -> (i32, i32, i32) {
    %c0_i32 = arith.constant 0 : i32
    %c0_i32_0 = arith.constant 0 : i32
    %c0_i32_1 = arith.constant 0 : i32
    return %arg0, %c0_i32, %c0_i32_0 : i32, i32, i32
  }
  func.func @transform_1(%arg0: i32) -> (i32, i32) {
    %c0_i32 = arith.constant 0 : i32
    %c0_i32_0 = arith.constant 0 : i32
    %c0_i32_1 = arith.constant 0 : i32
    return %c0_i32, %c0_i32_0 : i32, i32
  }
  func.func @transform_2(%arg0: i32) -> (i32, i32) {
    %c0_i32 = arith.constant 0 : i32
    %c0_i32_0 = arith.constant 0 : i32
    %c0_i32_1 = arith.constant 0 : i32
    return %c0_i32, %c0_i32_0 : i32, i32
  }
  func.func @transform_3(%arg0: i32) -> (i32, i32, i32) {
    %c0_i32 = arith.constant 0 : i32
    %c0_i32_0 = arith.constant 0 : i32
    %c0_i32_1 = arith.constant 0 : i32
    %c0_i32_2 = arith.constant 0 : i32
    return %c0_i32, %c0_i32_0, %c0_i32_1 : i32, i32, i32
  }
  func.func @transform_4(%arg0: i32) -> (i32, i32, i32) {
    %c0_i32 = arith.constant 0 : i32
    %c0_i32_0 = arith.constant 0 : i32
    %c0_i32_1 = arith.constant 0 : i32
    %c0_i32_2 = arith.constant 0 : i32
    return %c0_i32, %c0_i32_0, %c0_i32_1 : i32, i32, i32
  }
  func.func @transform_5(%arg0: i32) -> (i32, i32, i32) {
    %c0_i32 = arith.constant 0 : i32
    %c0_i32_0 = arith.constant 0 : i32
    %c0_i32_1 = arith.constant 0 : i32
    %c0_i32_2 = arith.constant 0 : i32
    return %c0_i32, %c0_i32_0, %c0_i32_1 : i32, i32, i32
  }
  func.func @transform_6(%arg0: i32) -> (i32, i32, i32) {
    %c0_i32 = arith.constant 0 : i32
    %c0_i32_0 = arith.constant 0 : i32
    %c0_i32_1 = arith.constant 0 : i32
    %c0_i32_2 = arith.constant 0 : i32
    return %c0_i32, %c0_i32_0, %c0_i32_1 : i32, i32, i32
  }
  func.func @transform_7(%arg0: i32) -> (i32, i32, i32) {
    %c0_i32 = arith.constant 0 : i32
    %c0_i32_0 = arith.constant 0 : i32
    %c0_i32_1 = arith.constant 0 : i32
    %c0_i32_2 = arith.constant 0 : i32
    return %c0_i32, %c0_i32_0, %c0_i32_1 : i32, i32, i32
  }
  func.func @transform_8(%arg0: i32) -> (i32, i32, i32) {
    %c0_i32 = arith.constant 0 : i32
    %c0_i32_0 = arith.constant 0 : i32
    %c0_i32_1 = arith.constant 0 : i32
    %c0_i32_2 = arith.constant 0 : i32
    return %c0_i32, %c0_i32_0, %c0_i32_1 : i32, i32, i32
  }
  func.func @transform_9(%arg0: i32) -> (i32, i32, i32) {
    %c0_i32 = arith.constant 0 : i32
    %c0_i32_0 = arith.constant 0 : i32
    %c0_i32_1 = arith.constant 0 : i32
    %c0_i32_2 = arith.constant 0 : i32
    return %c0_i32, %c0_i32_0, %c0_i32_1 : i32, i32, i32
  }
  func.func @transform_10(%arg0: i32) -> (i32, i32, i32) {
    %c0_i32 = arith.constant 0 : i32
    %c0_i32_0 = arith.constant 0 : i32
    %c0_i32_1 = arith.constant 0 : i32
    %c0_i32_2 = arith.constant 0 : i32
    return %c0_i32, %c0_i32_0, %c0_i32_1 : i32, i32, i32
  }
  func.func @transform_11(%arg0: i32) -> (i32, i32, i32) {
    %c0_i32 = arith.constant 0 : i32
    %c0_i32_0 = arith.constant 0 : i32
    %c0_i32_1 = arith.constant 0 : i32
    %c0_i32_2 = arith.constant 0 : i32
    return %c0_i32, %c0_i32_0, %c0_i32_1 : i32, i32, i32
  }
  func.func @transform_12(%arg0: i32) -> (i32, i32) {
    %c0_i32 = arith.constant 0 : i32
    %c0_i32_0 = arith.constant 0 : i32
    %c0_i32_1 = arith.constant 0 : i32
    return %c0_i32, %c0_i32_0 : i32, i32
  }
  func.func @transform_13(%arg0: i32) -> (i32, i32) {
    %c0_i32 = arith.constant 0 : i32
    %c0_i32_0 = arith.constant 0 : i32
    %c0_i32_1 = arith.constant 0 : i32
    return %c0_i32, %c0_i32_0 : i32, i32
  }
  func.func @transform_14(%arg0: i32) -> (i32, i32, i32) {
    %c0_i32 = arith.constant 0 : i32
    %c0_i32_0 = arith.constant 0 : i32
    %c0_i32_1 = arith.constant 0 : i32
    return %arg0, %c0_i32, %c0_i32_0 : i32, i32, i32
  }
}

</mosaic_0001>

<llo_original>
// kernel: transformer_forward.1
$region0: #{transformer_forward.1}
  #allocation0 [shape = 'u32[]', space=smem, size = 0x4, offset = 0x4, fixed_abs, tag = 'smem constant byte address 0x4 - core index']
  #allocation1 [shape = 'u32[144,128]{1,0:T(1,128)}', space=vmem, size = 0x12000, scoped, tag = 'internal scratch']
  #allocation2 [shape = 'f32[1,2048]{1,0:T(1,128)}', space=vmem, size = 0x2000, scoped, tag = 'scratch operand']
  %s0 = inlined_call_operand.vmem [shape: f32[2,16,1], index: 0, kind: input, shape index: {}]
  %s1 = inlined_call_operand.vmem [shape: f32[1,128], index: 1, kind: input, shape index: {}]
  %s2 = inlined_call_operand.vmem [shape: f32[16,128], index: 2, kind: input, shape index: {}]
  %s3 = inlined_call_operand.hbm [shape: bf16[2,128,128], index: 3, kind: input, shape index: {}]
  %s4 = inlined_call_operand.vmem [shape: f32[2,16,128], index: 4, kind: input, shape index: {}]
  %s5 = inlined_call_operand.hbm [shape: f32[2,16,128], index: 5, kind: input, shape index: {}]
  %s6 = inlined_call_operand.hbm [shape: bf16[2,128,256], index: 6, kind: input, shape index: {}]
  %s7 = inlined_call_operand.hbm [shape: f32[2,1,256], index: 7, kind: input, shape index: {}]
  %s8 = inlined_call_operand.hbm [shape: bf16[2,256,128], index: 8, kind: input, shape index: {}]
  %s9 = inlined_call_operand.hbm [shape: f32[2,1,128], index: 9, kind: input, shape index: {}]
  %s10 = inlined_call_operand.hbm [shape: f32[2,16,128], index: 10, kind: input, shape index: {}]
  %s11 = inlined_call_operand.hbm [shape: f32[2,16,128], index: 11, kind: input, shape index: {}]
  %s12 = inlined_call_operand.hbm [shape: bf16[2048,128], index: 12, kind: input, shape index: {}]
  %s13 = inlined_call_operand.hbm [shape: f32[1,128], index: 13, kind: input, shape index: {}]
  %s14 = inlined_call_operand.hbm [shape: f32[2,1,128], index: 14, kind: output, shape index: {}]
  %s15 = sld [smem:[#allocation0]]
  $region129: #{transformer_forward.1} parent=0
    _
  %s17 = ssub.s32 1, %s15
  %s18 = scalar_select 0, %s17, %s15
  $region1: #{transformer_forward.1} parent=0
    #allocation3 [shape = 'u8[65536]{0}', space=vmem, size = 0x10000, scoped, tag = 'input window, operand 3, single buffered']
    #allocation4 [shape = 's32[2]{0}', space=sflag, size = 0x8, scoped, tag = 'scoped memory for transformer_forward.1']
    #allocation5 [shape = 's32[2]{0}', space=sflag, size = 0x8, scoped, tag = 'scoped memory for transformer_forward.1']
    #allocation6 [shape = 'u8[16384]{0}', space=vmem, size = 0x4000, scoped, tag = 'input window, operand 5, single buffered']
    #allocation7 [shape = 's32[1]{0}', space=sflag, size = 0x4, scoped, tag = 'scoped memory for transformer_forward.1']
    #allocation8 [shape = 'u8[131072]{0}', space=vmem, size = 0x20000, scoped, tag = 'input window, operand 6, single buffered']
    #allocation9 [shape = 'u8[2048]{0}', space=vmem, size = 0x800, scoped, tag = 'input window, operand 7, single buffered']
    #allocation10 [shape = 's32[1]{0}', space=sflag, size = 0x4, scoped, tag = 'scoped memory for transformer_forward.1']
    #allocation11 [shape = 'u8[131072]{0}', space=vmem, size = 0x20000, scoped, tag = 'input window, operand 8, single buffered']
    #allocation12 [shape = 'u8[1024]{0}', space=vmem, size = 0x400, scoped, tag = 'input window, operand 9, single buffered']
    #allocation13 [shape = 's32[1]{0}', space=sflag, size = 0x4, scoped, tag = 'scoped memory for transformer_forward.1']
    #allocation14 [shape = 'u8[16384]{0}', space=vmem, size = 0x4000, scoped, tag = 'input window, operand 10, single buffered']
    #allocation15 [shape = 'u8[16384]{0}', space=vmem, size = 0x4000, scoped, tag = 'input window, operand 11, single buffered']
    #allocation16 [shape = 's32[1]{0}', space=sflag, size = 0x4, scoped, tag = 'scoped memory for transformer_forward.1']
    #allocation17 [shape = 'u8[524288]{0}', space=vmem, size = 0x80000, scoped, tag = 'input window, operand 12, single buffered']
    #allocation18 [shape = 'u8[512]{0}', space=vmem, size = 0x400, scoped, tag = 'input window, operand 13, single buffered']
    #allocation19 [shape = 's32[1]{0}', space=sflag, size = 0x4, scoped, tag = 'scoped memory for transformer_forward.1']
    #allocation20 [shape = 'u8[1024]{0}', space=vmem, size = 0x400, scoped, tag = 'output window, operand 0']
    %19 = vsyncpa [#allocation4], 0
    %20 = vsyncpa [#allocation7], 0
    %21 = vsyncpa [#allocation10], 0
    %22 = vsyncpa [#allocation13], 0
    %23 = vsyncpa [#allocation16], 0
    %24 = vsyncpa [#allocation19], 0
    %25 = vsyncpa [#allocation5], 0
    %s26 = scalar_lea.sflag [#allocation5], 1
    %27 = vsyncpa %s26, 0
    loop: start=0, step=1, limit=4
    $region2: #{transformer_forward.1} parent=1 // loop_pre_header
      _
    $region3: #{transformer_forward.1} parent=1 // loop_header
      %s29 = sphi 0, %s33
      %p30 = scmp.ge.s32.totalorder %s29, 4
      %s39 = sphi 0, %s41
      %s42 = sphi 0, %s39
      %s43 = sphi 0, %s42
      %s59 = sphi 0, %s43
      %s63 = sphi 0, %s63
      %s65 = sphi 0, %s63
      %s66 = sphi 0, %s65
      %s80 = sphi 0, %s66
      %s84 = sphi 0, %s84
      %s86 = sphi 0, %s84
      %s87 = sphi 0, %s86
      %s101 = sphi 0, %s87
      %s105 = sphi 0, %s105
      %s107 = sphi 0, %s105
      %s108 = sphi 0, %s107
      %s122 = sphi 0, %s108
      %s126 = sphi 0, %s126
      %s128 = sphi 0, %s126
      %s129 = sphi 0, %s128
      %s143 = sphi 0, %s129
      %s147 = sphi 0, %s147
      %s149 = sphi 0, %s147
      %s150 = sphi 0, %s149
      %s164 = sphi 0, %s150
      %s168 = sphi 0, %s168
      %s170 = sphi 0, %s168
      %s171 = sphi 0, %s170
      %s185 = sphi 0, %s171
      %s189 = sphi 0, %s189
      %s191 = sphi 0, %s189
      %s192 = sphi 0, %s191
      %s206 = sphi 0, %s192
      %s210 = sphi 0, %s210
      %s212 = sphi 0, %s210
      %s213 = sphi 0, %s212
      %s227 = sphi 0, %s213
      %s231 = sphi 0, %s231
      %s233 = sphi 0, %s231
      %s234 = sphi 0, %s233
      %s248 = sphi 0, %s234
      %s252 = sphi 0, %s252
      %s254 = sphi 0, %s252
      %s255 = sphi 0, %s254
      %s269 = sphi 0, %s255
      %s273 = sphi 0, %s273
      %s275 = sphi 0, %s273
      %s276 = sphi 0, %s275
      %s290 = sphi 0, %s276
      %s294 = sphi 0, %s294
      %s296 = sphi 0, %s294
      %s297 = sphi 0, %s296
      %s311 = sphi 0, %s297
      %s315 = sphi 0, %s315
      %s317 = sphi 0, %s315
      %s318 = sphi 0, %s317
      %s332 = sphi 0, %s318
      %s338 = sphi 0, %s340
      %s341 = sphi 0, %s338
      %s342 = sphi 0, %s341
      %s358 = sphi 0, %s342
    $region4: #{transformer_forward.1} parent=1 // loop_header_branch
      %32 = sbr.rel (%p30) target = $region8
    $region5: #{transformer_forward.1} parent=1 // loop_body
      %s34 = ssub.s32 %s29, 1
      %s35 = ssub.s32 %s29, 2
      %s36 = sadd.s32 %s29, 1
      %s37 = ssub.s32 %s29, %s36
      %p38 = scmp.eq.s32.totalorder %s37, 0
      %s40 = sadd.s32 %s39, 1
      %s41 = scalar_select %p38, %s39, %s40
      %p44 = pneg %p38
      %p45 = scmp.eq.s32.totalorder %s29, 1
      %p46 = por %p44, %p45
      %p47 = scmp.ne.s32.totalorder %s39, %s42
      %p48 = scmp.eq.s32.totalorder %s29, 0
      %p49 = por %p47, %p48
      %p50 = scmp.ne.s32.totalorder %s39, %s42
      %p51 = scmp.eq.s32.totalorder %s34, 1
      %p52 = por %p50, %p51
      %p53 = scmp.ne.s32.totalorder %s42, %s43
      %p54 = scmp.eq.s32.totalorder %s34, 0
      %p55 = por %p53, %p54
      %p56 = scmp.ne.s32.totalorder %s42, %s43
      %p57 = scmp.eq.s32.totalorder %s35, 1
      %p58 = por %p56, %p57
      %p60 = scmp.ne.s32.totalorder %s43, %s59
      %p61 = scmp.eq.s32.totalorder %s35, 0
      %p62 = por %p60, %p61
      %s64 = sadd.s32 %s63, 1
      %p67 = scmp.eq.s32.totalorder %s29, 1
      %p68 = scmp.ne.s32.totalorder %s63, %s65
      %p69 = scmp.eq.s32.totalorder %s29, 0
      %p70 = por %p68, %p69
      %p71 = scmp.ne.s32.totalorder %s63, %s65
      %p72 = scmp.eq.s32.totalorder %s34, 1
      %p73 = por %p71, %p72
      %p74 = scmp.ne.s32.totalorder %s65, %s66
      %p75 = scmp.eq.s32.totalorder %s34, 0
      %p76 = por %p74, %p75
      %p77 = scmp.ne.s32.totalorder %s65, %s66
      %p78 = scmp.eq.s32.totalorder %s35, 1
      %p79 = por %p77, %p78
      %p81 = scmp.ne.s32.totalorder %s66, %s80
      %p82 = scmp.eq.s32.totalorder %s35, 0
      %p83 = por %p81, %p82
      %s85 = sadd.s32 %s84, 1
      %p88 = scmp.eq.s32.totalorder %s29, 1
      %p89 = scmp.ne.s32.totalorder %s84, %s86
      %p90 = scmp.eq.s32.totalorder %s29, 0
      %p91 = por %p89, %p90
      %p92 = scmp.ne.s32.totalorder %s84, %s86
      %p93 = scmp.eq.s32.totalorder %s34, 1
      %p94 = por %p92, %p93
      %p95 = scmp.ne.s32.totalorder %s86, %s87
      %p96 = scmp.eq.s32.totalorder %s34, 0
      %p97 = por %p95, %p96
      %p98 = scmp.ne.s32.totalorder %s86, %s87
      %p99 = scmp.eq.s32.totalorder %s35, 1
      %p100 = por %p98, %p99
      %p102 = scmp.ne.s32.totalorder %s87, %s101
      %p103 = scmp.eq.s32.totalorder %s35, 0
      %p104 = por %p102, %p103
      %s106 = sadd.s32 %s105, 1
      %p109 = scmp.eq.s32.totalorder %s29, 1
      %p110 = scmp.ne.s32.totalorder %s105, %s107
      %p111 = scmp.eq.s32.totalorder %s29, 0
      %p112 = por %p110, %p111
      %p113 = scmp.ne.s32.totalorder %s105, %s107
      %p114 = scmp.eq.s32.totalorder %s34, 1
      %p115 = por %p113, %p114
      %p116 = scmp.ne.s32.totalorder %s107, %s108
      %p117 = scmp.eq.s32.totalorder %s34, 0
      %p118 = por %p116, %p117
      %p119 = scmp.ne.s32.totalorder %s107, %s108
      %p120 = scmp.eq.s32.totalorder %s35, 1
      %p121 = por %p119, %p120
      %p123 = scmp.ne.s32.totalorder %s108, %s122
      %p124 = scmp.eq.s32.totalorder %s35, 0
      %p125 = por %p123, %p124
      %s127 = sadd.s32 %s126, 1
      %p130 = scmp.eq.s32.totalorder %s29, 1
      %p131 = scmp.ne.s32.totalorder %s126, %s128
      %p132 = scmp.eq.s32.totalorder %s29, 0
      %p133 = por %p131, %p132
      %p134 = scmp.ne.s32.totalorder %s126, %s128
      %p135 = scmp.eq.s32.totalorder %s34, 1
      %p136 = por %p134, %p135
      %p137 = scmp.ne.s32.totalorder %s128, %s129
      %p138 = scmp.eq.s32.totalorder %s34, 0
      %p139 = por %p137, %p138
      %p140 = scmp.ne.s32.totalorder %s128, %s129
      %p141 = scmp.eq.s32.totalorder %s35, 1
      %p142 = por %p140, %p141
      %p144 = scmp.ne.s32.totalorder %s129, %s143
      %p145 = scmp.eq.s32.totalorder %s35, 0
      %p146 = por %p144, %p145
      %s148 = sadd.s32 %s147, 1
      %p151 = scmp.eq.s32.totalorder %s29, 1
      %p152 = scmp.ne.s32.totalorder %s147, %s149
      %p153 = scmp.eq.s32.totalorder %s29, 0
      %p154 = por %p152, %p153
      %p155 = scmp.ne.s32.totalorder %s147, %s149
      %p156 = scmp.eq.s32.totalorder %s34, 1
      %p157 = por %p155, %p156
      %p158 = scmp.ne.s32.totalorder %s149, %s150
      %p159 = scmp.eq.s32.totalorder %s34, 0
      %p160 = por %p158, %p159
      %p161 = scmp.ne.s32.totalorder %s149, %s150
      %p162 = scmp.eq.s32.totalorder %s35, 1
      %p163 = por %p161, %p162
      %p165 = scmp.ne.s32.totalorder %s150, %s164
      %p166 = scmp.eq.s32.totalorder %s35, 0
      %p167 = por %p165, %p166
      %s169 = sadd.s32 %s168, 1
      %p172 = scmp.eq.s32.totalorder %s29, 1
      %p173 = scmp.ne.s32.totalorder %s168, %s170
      %p174 = scmp.eq.s32.totalorder %s29, 0
      %p175 = por %p173, %p174
      %p176 = scmp.ne.s32.totalorder %s168, %s170
      %p177 = scmp.eq.s32.totalorder %s34, 1
      %p178 = por %p176, %p177
      %p179 = scmp.ne.s32.totalorder %s170, %s171
      %p180 = scmp.eq.s32.totalorder %s34, 0
      %p181 = por %p179, %p180
      %p182 = scmp.ne.s32.totalorder %s170, %s171
      %p183 = scmp.eq.s32.totalorder %s35, 1
      %p184 = por %p182, %p183
      %p186 = scmp.ne.s32.totalorder %s171, %s185
      %p187 = scmp.eq.s32.totalorder %s35, 0
      %p188 = por %p186, %p187
      %s190 = sadd.s32 %s189, 1
      %p193 = scmp.eq.s32.totalorder %s29, 1
      %p194 = scmp.ne.s32.totalorder %s189, %s191
      %p195 = scmp.eq.s32.totalorder %s29, 0
      %p196 = por %p194, %p195
      %p197 = scmp.ne.s32.totalorder %s189, %s191
      %p198 = scmp.eq.s32.totalorder %s34, 1
      %p199 = por %p197, %p198
      %p200 = scmp.ne.s32.totalorder %s191, %s192
      %p201 = scmp.eq.s32.totalorder %s34, 0
      %p202 = por %p200, %p201
      %p203 = scmp.ne.s32.totalorder %s191, %s192
      %p204 = scmp.eq.s32.totalorder %s35, 1
      %p205 = por %p203, %p204
      %p207 = scmp.ne.s32.totalorder %s192, %s206
      %p208 = scmp.eq.s32.totalorder %s35, 0
      %p209 = por %p207, %p208
      %s211 = sadd.s32 %s210, 1
      %p214 = scmp.eq.s32.totalorder %s29, 1
      %p215 = scmp.ne.s32.totalorder %s210, %s212
      %p216 = scmp.eq.s32.totalorder %s29, 0
      %p217 = por %p215, %p216
      %p218 = scmp.ne.s32.totalorder %s210, %s212
      %p219 = scmp.eq.s32.totalorder %s34, 1
      %p220 = por %p218, %p219
      %p221 = scmp.ne.s32.totalorder %s212, %s213
      %p222 = scmp.eq.s32.totalorder %s34, 0
      %p223 = por %p221, %p222
      %p224 = scmp.ne.s32.totalorder %s212, %s213
      %p225 = scmp.eq.s32.totalorder %s35, 1
      %p226 = por %p224, %p225
      %p228 = scmp.ne.s32.totalorder %s213, %s227
      %p229 = scmp.eq.s32.totalorder %s35, 0
      %p230 = por %p228, %p229
      %s232 = sadd.s32 %s231, 1
      %p235 = scmp.eq.s32.totalorder %s29, 1
      %p236 = scmp.ne.s32.totalorder %s231, %s233
      %p237 = scmp.eq.s32.totalorder %s29, 0
      %p238 = por %p236, %p237
      %p239 = scmp.ne.s32.totalorder %s231, %s233
      %p240 = scmp.eq.s32.totalorder %s34, 1
      %p241 = por %p239, %p240
      %p242 = scmp.ne.s32.totalorder %s233, %s234
      %p243 = scmp.eq.s32.totalorder %s34, 0
      %p244 = por %p242, %p243
      %p245 = scmp.ne.s32.totalorder %s233, %s234
      %p246 = scmp.eq.s32.totalorder %s35, 1
      %p247 = por %p245, %p246
      %p249 = scmp.ne.s32.totalorder %s234, %s248
      %p250 = scmp.eq.s32.totalorder %s35, 0
      %p251 = por %p249, %p250
      %s253 = sadd.s32 %s252, 1
      %p256 = scmp.eq.s32.totalorder %s29, 1
      %p257 = scmp.ne.s32.totalorder %s252, %s254
      %p258 = scmp.eq.s32.totalorder %s29, 0
      %p259 = por %p257, %p258
      %p260 = scmp.ne.s32.totalorder %s252, %s254
      %p261 = scmp.eq.s32.totalorder %s34, 1
      %p262 = por %p260, %p261
      %p263 = scmp.ne.s32.totalorder %s254, %s255
      %p264 = scmp.eq.s32.totalorder %s34, 0
      %p265 = por %p263, %p264
      %p266 = scmp.ne.s32.totalorder %s254, %s255
      %p267 = scmp.eq.s32.totalorder %s35, 1
      %p268 = por %p266, %p267
      %p270 = scmp.ne.s32.totalorder %s255, %s269
      %p271 = scmp.eq.s32.totalorder %s35, 0
      %p272 = por %p270, %p271
      %s274 = sadd.s32 %s273, 1
      %p277 = scmp.eq.s32.totalorder %s29, 1
      %p278 = scmp.ne.s32.totalorder %s273, %s275
      %p279 = scmp.eq.s32.totalorder %s29, 0
      %p280 = por %p278, %p279
      %p281 = scmp.ne.s32.totalorder %s273, %s275
      %p282 = scmp.eq.s32.totalorder %s34, 1
      %p283 = por %p281, %p282
      %p284 = scmp.ne.s32.totalorder %s275, %s276
      %p285 = scmp.eq.s32.totalorder %s34, 0
      %p286 = por %p284, %p285
      %p287 = scmp.ne.s32.totalorder %s275, %s276
      %p288 = scmp.eq.s32.totalorder %s35, 1
      %p289 = por %p287, %p288
      %p291 = scmp.ne.s32.totalorder %s276, %s290
      %p292 = scmp.eq.s32.totalorder %s35, 0
      %p293 = por %p291, %p292
      %s295 = sadd.s32 %s294, 1
      %p298 = scmp.eq.s32.totalorder %s29, 1
      %p299 = scmp.ne.s32.totalorder %s294, %s296
      %p300 = scmp.eq.s32.totalorder %s29, 0
      %p301 = por %p299, %p300
      %p302 = scmp.ne.s32.totalorder %s294, %s296
      %p303 = scmp.eq.s32.totalorder %s34, 1
      %p304 = por %p302, %p303
      %p305 = scmp.ne.s32.totalorder %s296, %s297
      %p306 = scmp.eq.s32.totalorder %s34, 0
      %p307 = por %p305, %p306
      %p308 = scmp.ne.s32.totalorder %s296, %s297
      %p309 = scmp.eq.s32.totalorder %s35, 1
      %p310 = por %p308, %p309
      %p312 = scmp.ne.s32.totalorder %s297, %s311
      %p313 = scmp.eq.s32.totalorder %s35, 0
      %p314 = por %p312, %p313
      %s316 = sadd.s32 %s315, 1
      %p319 = scmp.eq.s32.totalorder %s29, 1
      %p320 = scmp.ne.s32.totalorder %s315, %s317
      %p321 = scmp.eq.s32.totalorder %s29, 0
      %p322 = por %p320, %p321
      %p323 = scmp.ne.s32.totalorder %s315, %s317
      %p324 = scmp.eq.s32.totalorder %s34, 1
      %p325 = por %p323, %p324
      %p326 = scmp.ne.s32.totalorder %s317, %s318
      %p327 = scmp.eq.s32.totalorder %s34, 0
      %p328 = por %p326, %p327
      %p329 = scmp.ne.s32.totalorder %s317, %s318
      %p330 = scmp.eq.s32.totalorder %s35, 1
      %p331 = por %p329, %p330
      %p333 = scmp.ne.s32.totalorder %s318, %s332
      %p334 = scmp.eq.s32.totalorder %s35, 0
      %p335 = por %p333, %p334
      %s336 = ssub.s32 %s29, %s36
      %p337 = scmp.eq.s32.totalorder %s336, 0
      %s339 = sadd.s32 %s338, 1
      %s340 = scalar_select %p337, %s338, %s339
      %p343 = pneg %p337
      %p344 = scmp.eq.s32.totalorder %s29, 1
      %p345 = por %p343, %p344
      %p346 = scmp.ne.s32.totalorder %s338, %s341
      %p347 = scmp.eq.s32.totalorder %s29, 0
      %p348 = por %p346, %p347
      %p349 = scmp.ne.s32.totalorder %s338, %s341
      %p350 = scmp.eq.s32.totalorder %s34, 1
      %p351 = por %p349, %p350
      %p352 = scmp.ne.s32.totalorder %s341, %s342
      %p353 = scmp.eq.s32.totalorder %s34, 0
      %p354 = por %p352, %p353
      %p355 = scmp.ne.s32.totalorder %s341, %s342
      %p356 = scmp.eq.s32.totalorder %s35, 1
      %p357 = por %p355, %p356
      %p359 = scmp.ne.s32.totalorder %s342, %s358
      %p360 = scmp.eq.s32.totalorder %s35, 0
      %p361 = por %p359, %p360
      %p362 = scmp.le.s32.totalorder 1, %s29
      %p363 = scmp.lt.s32.totalorder %s29, 3
      %p364 = pnand %p362, %p363
      %p365 = pneg %p364
      // Predicated region
      $region9: #{transformer_forward.1} parent=5 // pred_check
        _
      $region10: #{transformer_forward.1} parent=5 // pred_check_branch
        %367 = sbr.rel (%p364) target = $region12
      $region11: #{transformer_forward.1} parent=5 // pred_region
        %s368 = ssub.s32 %s29, 1
        // Predicated region
        $region13: #{transformer_forward.1} parent=11 // pred_check
          %p369 = pneg %p76
        $region14: #{transformer_forward.1} parent=11 // pred_check_branch
          %371 = sbr.rel (%p369) target = $region16
        $region15: #{transformer_forward.1} parent=11 // pred_region
          _
        $region16: #{transformer_forward.1} parent=11 // pred_fallthru
          _
        // Predicated region
        $region17: #{transformer_forward.1} parent=11 // pred_check
          %p372 = pneg %p97
        $region18: #{transformer_forward.1} parent=11 // pred_check_branch
          %374 = sbr.rel (%p372) target = $region20
        $region19: #{transformer_forward.1} parent=11 // pred_region
          _
        $region20: #{transformer_forward.1} parent=11 // pred_fallthru
          _
        // Predicated region
        $region21: #{transformer_forward.1} parent=11 // pred_check
          %p375 = pneg %p118
        $region22: #{transformer_forward.1} parent=11 // pred_check_branch
          %377 = sbr.rel (%p375) target = $region24
        $region23: #{transformer_forward.1} parent=11 // pred_region
          %s379 = ssub.s32 2048, 2048
          %380 = vsyncadd [#allocation4], %s379
          %s381 = sshll.u32 [#allocation3], 4
          %s382 = int_to_ptr.vmem [resolvable:$true] %s381
          %387 = dma.hbm_to_vmem [thread:$0]  %s3, 2048, %s382, [#allocation4], 64, 64, 4
        $region24: #{transformer_forward.1} parent=11 // pred_fallthru
          _
        // Predicated region
        $region25: #{transformer_forward.1} parent=11 // pred_check
          %p388 = pneg %p139
        $region26: #{transformer_forward.1} parent=11 // pred_check_branch
          %390 = sbr.rel (%p388) target = $region28
        $region27: #{transformer_forward.1} parent=11 // pred_region
          _
        $region28: #{transformer_forward.1} parent=11 // pred_fallthru
          _
        // Predicated region
        $region29: #{transformer_forward.1} parent=11 // pred_check
          %p391 = pneg %p160
        $region30: #{transformer_forward.1} parent=11 // pred_check_branch
          %393 = sbr.rel (%p391) target = $region32
        $region31: #{transformer_forward.1} parent=11 // pred_region
          %s395 = ssub.s32 512, 512
          %396 = vsyncadd [#allocation7], %s395
          %s397 = sshll.u32 [#allocation6], 4
          %s398 = int_to_ptr.vmem [resolvable:$true] %s397
          %403 = dma.hbm_to_vmem [thread:$0]  %s5, 512, %s398, [#allocation7], 128, 128, 8
        $region32: #{transformer_forward.1} parent=11 // pred_fallthru
          _
        // Predicated region
        $region33: #{transformer_forward.1} parent=11 // pred_check
          %p404 = pneg %p181
        $region34: #{transformer_forward.1} parent=11 // pred_check_branch
          %406 = sbr.rel (%p404) target = $region36
        $region35: #{transformer_forward.1} parent=11 // pred_region
          %s408 = ssub.s32 4096, 4096
          %409 = vsyncadd [#allocation7], %s408
          %s410 = sshll.u32 [#allocation8], 4
          %s411 = int_to_ptr.vmem [resolvable:$true] %s410
          %416 = dma.hbm_to_vmem [thread:$0]  %s6, 4096, %s411, [#allocation7], 128, 128, 8
        $region36: #{transformer_forward.1} parent=11 // pred_fallthru
          _
        // Predicated region
        $region37: #{transformer_forward.1} parent=11 // pred_check
          %p417 = pneg %p202
        $region38: #{transformer_forward.1} parent=11 // pred_check_branch
          %419 = sbr.rel (%p417) target = $region40
        $region39: #{transformer_forward.1} parent=11 // pred_region
          %s421 = ssub.s32 64, 64
          %422 = vsyncadd [#allocation10], %s421
          %s423 = sshll.u32 [#allocation9], 4
          %s424 = int_to_ptr.vmem [resolvable:$true] %s423
          %429 = dma.hbm_to_vmem [thread:$0]  %s7, 64, %s424, [#allocation10], 32, 32, 2
        $region40: #{transformer_forward.1} parent=11 // pred_fallthru
          _
        // Predicated region
        $region41: #{transformer_forward.1} parent=11 // pred_check
          %p430 = pneg %p223
        $region42: #{transformer_forward.1} parent=11 // pred_check_branch
          %432 = sbr.rel (%p430) target = $region44
        $region43: #{transformer_forward.1} parent=11 // pred_region
          %s434 = ssub.s32 4096, 4096
          %435 = vsyncadd [#allocation10], %s434
          %s436 = sshll.u32 [#allocation11], 4
          %s437 = int_to_ptr.vmem [resolvable:$true] %s436
          %442 = dma.hbm_to_vmem [thread:$0]  %s8, 4096, %s437, [#allocation10], 64, 64, 4
        $region44: #{transformer_forward.1} parent=11 // pred_fallthru
          _
        // Predicated region
        $region45: #{transformer_forward.1} parent=11 // pred_check
          %p443 = pneg %p244
        $region46: #{transformer_forward.1} parent=11 // pred_check_branch
          %445 = sbr.rel (%p443) target = $region48
        $region47: #{transformer_forward.1} parent=11 // pred_region
          %s447 = ssub.s32 32, 32
          %448 = vsyncadd [#allocation13], %s447
          %s449 = sshll.u32 [#allocation12], 4
          %s450 = int_to_ptr.vmem [resolvable:$true] %s449
          %455 = dma.hbm_to_vmem [thread:$0]  %s9, 32, %s450, [#allocation13], 16, 16, 1
        $region48: #{transformer_forward.1} parent=11 // pred_fallthru
          _
        // Predicated region
        $region49: #{transformer_forward.1} parent=11 // pred_check
          %p456 = pneg %p265
        $region50: #{transformer_forward.1} parent=11 // pred_check_branch
          %458 = sbr.rel (%p456) target = $region52
        $region51: #{transformer_forward.1} parent=11 // pred_region
          %s460 = ssub.s32 512, 512
          %461 = vsyncadd [#allocation13], %s460
          %s462 = sshll.u32 [#allocation14], 4
          %s463 = int_to_ptr.vmem [resolvable:$true] %s462
          %468 = dma.hbm_to_vmem [thread:$0]  %s10, 512, %s463, [#allocation13], 128, 128, 8
        $region52: #{transformer_forward.1} parent=11 // pred_fallthru
          _
        // Predicated region
        $region53: #{transformer_forward.1} parent=11 // pred_check
          %p469 = pneg %p286
        $region54: #{transformer_forward.1} parent=11 // pred_check_branch
          %471 = sbr.rel (%p469) target = $region56
        $region55: #{transformer_forward.1} parent=11 // pred_region
          %s473 = ssub.s32 512, 512
          %474 = vsyncadd [#allocation16], %s473
          %s475 = sshll.u32 [#allocation15], 4
          %s476 = int_to_ptr.vmem [resolvable:$true] %s475
          %481 = dma.hbm_to_vmem [thread:$0]  %s11, 512, %s476, [#allocation16], 128, 128, 8
        $region56: #{transformer_forward.1} parent=11 // pred_fallthru
          _
        // Predicated region
        $region57: #{transformer_forward.1} parent=11 // pred_check
          %p482 = pneg %p307
        $region58: #{transformer_forward.1} parent=11 // pred_check_branch
          %484 = sbr.rel (%p482) target = $region60
        $region59: #{transformer_forward.1} parent=11 // pred_region
          %s486 = ssub.s32 16384, 16384
          %487 = vsyncadd [#allocation16], %s486
          %s488 = sshll.u32 [#allocation17], 4
          %s489 = int_to_ptr.vmem [resolvable:$true] %s488
          %494 = dma.hbm_to_vmem [thread:$0]  %s12, 16384, %s489, [#allocation16], 64, 64, 4
        $region60: #{transformer_forward.1} parent=11 // pred_fallthru
          _
        // Predicated region
        $region61: #{transformer_forward.1} parent=11 // pred_check
          %p495 = pneg %p328
        $region62: #{transformer_forward.1} parent=11 // pred_check_branch
          %497 = sbr.rel (%p495) target = $region64
        $region63: #{transformer_forward.1} parent=11 // pred_region
          %s499 = ssub.s32 16, 16
          %500 = vsyncadd [#allocation19], %s499
          %s502 = sshll.u32 [#allocation18], 4
          %s503 = int_to_ptr.vmem [resolvable:$true] %s502
          %505 = dma.hbm_to_vmem [thread:$0]  %s13, 16, %s503, [#allocation19]
        $region64: #{transformer_forward.1} parent=11 // pred_fallthru
          _
      $region12: #{transformer_forward.1} parent=5 // pred_fallthru
        _
      %p506 = scmp.lt.s32.totalorder %s29, 2
      // Predicated region
      $region65: #{transformer_forward.1} parent=5 // pred_check
        %p507 = pneg %p506
      $region66: #{transformer_forward.1} parent=5 // pred_check_branch
        %509 = sbr.rel (%p507) target = $region68
      $region67: #{transformer_forward.1} parent=5 // pred_region
        // Predicated region
        $region69: #{transformer_forward.1} parent=67 // pred_check
          %p510 = pneg %p49
        $region70: #{transformer_forward.1} parent=67 // pred_check_branch
          %512 = sbr.rel (%p510) target = $region72
        $region71: #{transformer_forward.1} parent=67 // pred_region
          %p513 = scmp.lt.s32.totalorder %s29, 1
          %s514 = scalar_select %p513, %s29, 1
          %s515 = smul.addr %s514, 2
          %s516 = smul.addr %s515, 8
          %s517 = scalar_lea.vmem %s0, %s516
        $region72: #{transformer_forward.1} parent=67 // pred_fallthru
          _
      $region68: #{transformer_forward.1} parent=5 // pred_fallthru
        _
      %p518 = scmp.le.s32.totalorder 1, %s29
      %p519 = scmp.lt.s32.totalorder %s29, 3
      %p520 = pnand %p518, %p519
      %p521 = pneg %p520
      // Predicated region
      $region73: #{transformer_forward.1} parent=5 // pred_check
        _
      $region74: #{transformer_forward.1} parent=5 // pred_check_branch
        %523 = sbr.rel (%p520) target = $region76
      $region75: #{transformer_forward.1} parent=5 // pred_region
        %s524 = ssub.s32 %s29, 1
        // Predicated region
        $region77: #{transformer_forward.1} parent=75 // pred_check
          %p525 = pneg %p118
        $region78: #{transformer_forward.1} parent=75 // pred_check_branch
          %527 = sbr.rel (%p525) target = $region80
        $region79: #{transformer_forward.1} parent=75 // pred_region
          %528 = dma.done [#allocation4], 2048
        $region80: #{transformer_forward.1} parent=75 // pred_fallthru
          _
        // Predicated region
        $region81: #{transformer_forward.1} parent=75 // pred_check
          %p529 = pneg %p160
        $region82: #{transformer_forward.1} parent=75 // pred_check_branch
          %531 = sbr.rel (%p529) target = $region84
        $region83: #{transformer_forward.1} parent=75 // pred_region
          %532 = dma.done [#allocation7], 512
        $region84: #{transformer_forward.1} parent=75 // pred_fallthru
          _
        // Predicated region
        $region85: #{transformer_forward.1} parent=75 // pred_check
          %p533 = pneg %p181
        $region86: #{transformer_forward.1} parent=75 // pred_check_branch
          %535 = sbr.rel (%p533) target = $region88
        $region87: #{transformer_forward.1} parent=75 // pred_region
          %536 = dma.done [#allocation7], 4096
        $region88: #{transformer_forward.1} parent=75 // pred_fallthru
          _
        // Predicated region
        $region89: #{transformer_forward.1} parent=75 // pred_check
          %p537 = pneg %p202
        $region90: #{transformer_forward.1} parent=75 // pred_check_branch
          %539 = sbr.rel (%p537) target = $region92
        $region91: #{transformer_forward.1} parent=75 // pred_region
          %540 = dma.done [#allocation10], 64
        $region92: #{transformer_forward.1} parent=75 // pred_fallthru
          _
        // Predicated region
        $region93: #{transformer_forward.1} parent=75 // pred_check
          %p541 = pneg %p223
        $region94: #{transformer_forward.1} parent=75 // pred_check_branch
          %543 = sbr.rel (%p541) target = $region96
        $region95: #{transformer_forward.1} parent=75 // pred_region
          %544 = dma.done [#allocation10], 4096
        $region96: #{transformer_forward.1} parent=75 // pred_fallthru
          _
        // Predicated region
        $region97: #{transformer_forward.1} parent=75 // pred_check
          %p545 = pneg %p244
        $region98: #{transformer_forward.1} parent=75 // pred_check_branch
          %547 = sbr.rel (%p545) target = $region100
        $region99: #{transformer_forward.1} parent=75 // pred_region
          %548 = dma.done [#allocation13], 32
        $region100: #{transformer_forward.1} parent=75 // pred_fallthru
          _
        // Predicated region
        $region101: #{transformer_forward.1} parent=75 // pred_check
          %p549 = pneg %p265
        $region102: #{transformer_forward.1} parent=75 // pred_check_branch
          %551 = sbr.rel (%p549) target = $region104
        $region103: #{transformer_forward.1} parent=75 // pred_region
          %552 = dma.done [#allocation13], 512
        $region104: #{transformer_forward.1} parent=75 // pred_fallthru
          _
        // Predicated region
        $region105: #{transformer_forward.1} parent=75 // pred_check
          %p553 = pneg %p286
        $region106: #{transformer_forward.1} parent=75 // pred_check_branch
          %555 = sbr.rel (%p553) target = $region108
        $region107: #{transformer_forward.1} parent=75 // pred_region
          %556 = dma.done [#allocation16], 512
        $region108: #{transformer_forward.1} parent=75 // pred_fallthru
          _
        // Predicated region
        $region109: #{transformer_forward.1} parent=75 // pred_check
          %p557 = pneg %p307
        $region110: #{transformer_forward.1} parent=75 // pred_check_branch
          %559 = sbr.rel (%p557) target = $region112
        $region111: #{transformer_forward.1} parent=75 // pred_region
          %560 = dma.done [#allocation16], 16384
        $region112: #{transformer_forward.1} parent=75 // pred_fallthru
          _
        // Predicated region
        $region113: #{transformer_forward.1} parent=75 // pred_check
          %p561 = pneg %p328
        $region114: #{transformer_forward.1} parent=75 // pred_check_branch
          %563 = sbr.rel (%p561) target = $region116
        $region115: #{transformer_forward.1} parent=75 // pred_region
          %564 = dma.done [#allocation19], 16
        $region116: #{transformer_forward.1} parent=75 // pred_fallthru
          _
        %p565 = scmp.lt.s32.totalorder %s34, 1
        %s566 = scalar_select %p565, %s34, 1
        %s567 = smul.addr %s566, 2
        %s568 = smul.addr %s567, 8
        %s569 = scalar_lea.vmem %s0, %s568
        %p570 = pneg %p55
        %p571 = pneg %p52
        %p572 = pneg %p76
        %p573 = pneg %p73
        %p574 = pneg %p97
        %p575 = pneg %p94
        %p576 = pneg %p118
        %p577 = pneg %p115
        %p578 = pneg %p139
        %p579 = pneg %p136
        %p580 = pneg %p160
        %p581 = pneg %p157
        %p582 = pneg %p181
        %p583 = pneg %p178
        %p584 = pneg %p202
        %p585 = pneg %p199
        %p586 = pneg %p223
        %p587 = pneg %p220
        %p588 = pneg %p244
        %p589 = pneg %p241
        %p590 = pneg %p265
        %p591 = pneg %p262
        %p592 = pneg %p286
        %p593 = pneg %p283
        %p594 = pneg %p307
        %p595 = pneg %p304
        %p596 = pneg %p328
        %p597 = pneg %p325
        %p598 = pneg %p354
        %p599 = pneg %p351
        %s600 = sand.u32 %s341, 1
        %s601 = scalar_lea.sflag [#allocation5], %s600
        %s602 = sand.u32 %s341, 1
        %s603 = scalar_lea.vmem [#allocation20], %s602
        %p604 = scmp.lt.s32.totalorder %s34, 1
        %s605 = scalar_select %p604, %s34, 1
        %s606 = smul.addr %s605, 2
        %s607 = smul.addr %s606, 8
        %s608 = scalar_lea.vmem %s0, %s607
        %v610 = vld [vmem:[%s608] sm:$0xff]
        %v611 = vld [vmem:[%s608 + $0x8] sm:$0xff]
        %v612 = vld [vmem:[%s1] sm:$0x1]
        %614 = vset.pattern.permute.xlu0 0
        %615 = vperm.xlu0 %614, %v610
        %v616 = vpop.permute.xlu0 %615
        %619 = vset.pattern.permute.xlu0 0
        %620 = vperm.xlu0 %619, %v611
        %v621 = vpop.permute.xlu0 %620
        %v624 = vlaneseq
        %v625 = vshrl.u32 %v624, 7
        %v626 = vsub.s32 0, %v625
        %v627 = vrot.slane %v612, %v626
        %v629 = vmul.f32 %v616, %v627
        %v630 = vmul.f32 %v621, %v627
        %v631 = vld [vmem:[%s2] sm:$0xff]
        %v632 = vld [vmem:[%s2 + $0x8] sm:$0xff]
        %v633 = vadd.f32 %v629, %v631
        %v634 = vadd.f32 %v630, %v632
        %v635 = vpack.c.bf16 %v634, %v633
        %v636 = vld [vmem:[#allocation3] sm:$0xf]
        %v637 = vld [vmem:[#allocation3 + $0x4] sm:$0xf]
        %v638 = vld [vmem:[#allocation3 + $0x8] sm:$0xf]
        %v639 = vld [vmem:[#allocation3 + $0xc] sm:$0xf]
        %v640 = vld [vmem:[#allocation3 + $0x10] sm:$0xf]
        %v641 = vld [vmem:[#allocation3 + $0x14] sm:$0xf]
        %v642 = vld [vmem:[#allocation3 + $0x18] sm:$0xf]
        %v643 = vld [vmem:[#allocation3 + $0x1c] sm:$0xf]
        %v644 = vld [vmem:[#allocation3 + $0x20] sm:$0xf]
        %v645 = vld [vmem:[#allocation3 + $0x24] sm:$0xf]
        %v646 = vld [vmem:[#allocation3 + $0x28] sm:$0xf]
        %v647 = vld [vmem:[#allocation3 + $0x2c] sm:$0xf]
        %v648 = vld [vmem:[#allocation3 + $0x30] sm:$0xf]
        %v649 = vld [vmem:[#allocation3 + $0x34] sm:$0xf]
        %v650 = vld [vmem:[#allocation3 + $0x38] sm:$0xf]
        %v651 = vld [vmem:[#allocation3 + $0x3c] sm:$0xf]
        %v668 = vunpack.c.l.b16 %v636
        %v669 = vunpack.c.l.b16 %v637
        %v670 = vunpack.c.l.b16 %v638
        %v671 = vunpack.c.l.b16 %v639
        %v672 = vunpack.c.l.b16 %v640
        %v673 = vunpack.c.l.b16 %v641
        %v674 = vunpack.c.l.b16 %v642
        %v675 = vunpack.c.l.b16 %v643
        %v676 = vunpack.c.l.b16 %v644
        %v677 = vunpack.c.l.b16 %v645
        %v678 = vunpack.c.l.b16 %v646
        %v679 = vunpack.c.l.b16 %v647
        %v680 = vunpack.c.l.b16 %v648
        %v681 = vunpack.c.l.b16 %v649
        %v682 = vunpack.c.l.b16 %v650
        %v683 = vunpack.c.l.b16 %v651
        %v684 = vpack.c.b16 %v669, %v668
        %v685 = vpack.c.b16 %v671, %v670
        %v686 = vpack.c.b16 %v673, %v672
        %v687 = vpack.c.b16 %v675, %v674
        %v688 = vpack.c.b16 %v677, %v676
        %v689 = vpack.c.b16 %v679, %v678
        %v690 = vpack.c.b16 %v681, %v680
        %v691 = vpack.c.b16 %v683, %v682
        %700 = vmatprep.subr.bf16.mxu0 0
        %701 = vmatpush1.bf16.msra.mxu0 %v691
        %702 = vmatprep.subr.bf16.mxu0 0
        %703 = vmatpush1.bf16.msra.mxu0 %v690
        %704 = vmatprep.subr.bf16.mxu0 0
        %705 = vmatpush1.bf16.msra.mxu0 %v689
        %706 = vmatprep.subr.bf16.mxu0 0
        %707 = vmatpush1.bf16.msra.mxu0 %v688
        %708 = vmatprep.subr.bf16.mxu0 0
        %709 = vmatpush1.bf16.msra.mxu0 %v687
        %710 = vmatprep.subr.bf16.mxu0 0
        %711 = vmatpush1.bf16.msra.mxu0 %v686
        %712 = vmatprep.subr.bf16.mxu0 0
        %713 = vmatpush1.bf16.msra.mxu0 %v685
        %714 = vmatprep.subr.bf16.mxu0 0
        %715 = vmatpush1.bf16.msra.mxu0 %v684
        %716 = vmatprep.subr.bf16.mxu0 0
        %717 = vmatpush2.bf16.msra.mxu0 0
        %718 = vmatprep.subr.bf16.mxu0 0
        %719 = vmatpush2.bf16.msra.mxu0 0
        %720 = vmatprep.subr.bf16.mxu0 0
        %721 = vmatpush2.bf16.msra.mxu0 0
        %722 = vmatprep.subr.bf16.mxu0 0
        %723 = vmatpush2.bf16.msra.mxu0 0
        %724 = vmatprep.subr.bf16.mxu0 0
        %725 = vmatpush2.bf16.msra.mxu0 0
        %726 = vmatprep.subr.bf16.mxu0 0
        %727 = vmatpush2.bf16.msra.mxu0 0
        %728 = vmatprep.subr.bf16.mxu0 0
        %729 = vmatpush2.bf16.msra.mxu0 0
        %730 = vmatprep.subr.bf16.mxu0 0
        %731 = vmatpush2.bf16.msra.mxu0 0
        %732 = vmatprep.mubr.bf16.mxu0 0
        %733 = vmatmul.mubr.bf16.gmra.mxu0 %v635
        %v734 = vpop.f32.mrf.mxu0
        %v735 = vadd.f32 0.0, %v734
        %v736 = vpop.f32.mrf.mxu0
        %v737 = vpop.f32.mrf.mxu0
        %v738 = vadd.f32 0.0, %v737
        %v739 = vpop.f32.mrf.mxu0
        %740 = vdwg.mxu0
        %v741 = vadd.f32 %v633, %v735
        %v742 = vadd.f32 %v634, %v738
        %v743 = vld [vmem:[%s4] sm:$0xff]
        %v744 = vld [vmem:[%s4 + $0x8] sm:$0xff]
        %v745 = vld [vmem:[#allocation6] sm:$0xff]
        %v746 = vld [vmem:[#allocation6 + $0x8] sm:$0xff]
        %747 = vadd.xlane.f32.xlu0 %v741
        %v748 = vpop.xlane.xlu0 %747
        %749 = vadd.xlane.f32.xlu0 %v742
        %v750 = vpop.xlane.xlu0 %749
        %v751 = vadd.f32 %v748, %v750
        %v752 = vrot.slane %v751, 4
        %v753 = vadd.f32 %v751, %v752
        %v754 = vrot.slane %v753, 2
        %v755 = vadd.f32 %v753, %v754
        %v756 = vrot.slane %v755, 1
        %v757 = vadd.f32 %v755, %v756
        %v758 = vrcp.pop 2048.0
        %v759 = vmul.f32 %v757, %v758
        %v760 = vsub.f32 %v741, %v759
        %v761 = vsub.f32 %v742, %v759
        %v762 = vmul.f32 %v760, %v760
        %v763 = vmul.f32 %v761, %v761
        %764 = vadd.xlane.f32.xlu0 %v762
        %v765 = vpop.xlane.xlu0 %764
        %766 = vadd.xlane.f32.xlu0 %v763
        %v767 = vpop.xlane.xlu0 %766
        %v768 = vadd.f32 %v765, %v767
        %v769 = vrot.slane %v768, 4
        %v770 = vadd.f32 %v768, %v769
        %v771 = vrot.slane %v770, 2
        %v772 = vadd.f32 %v770, %v771
        %v773 = vrot.slane %v772, 1
        %v774 = vadd.f32 %v772, %v773
        %v775 = vmul.f32 %v774, %v758
        %v776 = vadd.f32 %v775, 1e-05
        %v777 = vrsqrt.pop %v776
        %v778 = vmul.f32 %v760, %v777
        %v779 = vmul.f32 %v761, %v777
        %v780 = vmul.f32 %v778, %v743
        %v781 = vmul.f32 %v779, %v744
        %v782 = vadd.f32 %v780, %v745
        %v783 = vadd.f32 %v781, %v746
        %v784 = vpack.c.bf16 %v783, %v782
        %v785 = vld [vmem:[#allocation8] sm:$0xff]
        %v786 = vld [vmem:[#allocation8 + $0x8] sm:$0xff]
        %v787 = vld [vmem:[#allocation8 + $0x10] sm:$0xff]
        %v788 = vld [vmem:[#allocation8 + $0x18] sm:$0xff]
        %v789 = vld [vmem:[#allocation8 + $0x20] sm:$0xff]
        %v790 = vld [vmem:[#allocation8 + $0x28] sm:$0xff]
        %v791 = vld [vmem:[#allocation8 + $0x30] sm:$0xff]
        %v792 = vld [vmem:[#allocation8 + $0x38] sm:$0xff]
        %v793 = vld [vmem:[#allocation8 + $0x40] sm:$0xff]
        %v794 = vld [vmem:[#allocation8 + $0x48] sm:$0xff]
        %v795 = vld [vmem:[#allocation8 + $0x50] sm:$0xff]
        %v796 = vld [vmem:[#allocation8 + $0x58] sm:$0xff]
        %v797 = vld [vmem:[#allocation8 + $0x60] sm:$0xff]
        %v798 = vld [vmem:[#allocation8 + $0x68] sm:$0xff]
        %v799 = vld [vmem:[#allocation8 + $0x70] sm:$0xff]
        %v800 = vld [vmem:[#allocation8 + $0x78] sm:$0xff]
        %v801 = vld [vmem:[#allocation9] sm:$0x3]
        %v803 = vlaneseq
        %v804 = vshrl.u32 %v803, 7
        %v805 = vsub.s32 0, %v804
        %v806 = vrot.slane %v801, %v805
        %v807 = vlaneseq
        %v808 = vshrl.u32 %v807, 7
        %v809 = vsub.s32 1, %v808
        %v810 = vrot.slane %v801, %v809
        %v829 = vunpack.c.l.b16 %v785
        %v830 = vunpack.c.h.b16 %v785
        %v831 = vunpack.c.l.b16 %v786
        %v832 = vunpack.c.h.b16 %v786
        %v833 = vunpack.c.l.b16 %v787
        %v834 = vunpack.c.h.b16 %v787
        %v835 = vunpack.c.l.b16 %v788
        %v836 = vunpack.c.h.b16 %v788
        %v837 = vunpack.c.l.b16 %v789
        %v838 = vunpack.c.h.b16 %v789
        %v839 = vunpack.c.l.b16 %v790
        %v840 = vunpack.c.h.b16 %v790
        %v841 = vunpack.c.l.b16 %v791
        %v842 = vunpack.c.h.b16 %v791
        %v843 = vunpack.c.l.b16 %v792
        %v844 = vunpack.c.h.b16 %v792
        %v845 = vunpack.c.l.b16 %v793
        %v846 = vunpack.c.h.b16 %v793
        %v847 = vunpack.c.l.b16 %v794
        %v848 = vunpack.c.h.b16 %v794
        %v849 = vunpack.c.l.b16 %v795
        %v850 = vunpack.c.h.b16 %v795
        %v851 = vunpack.c.l.b16 %v796
        %v852 = vunpack.c.h.b16 %v796
        %v853 = vunpack.c.l.b16 %v797
        %v854 = vunpack.c.h.b16 %v797
        %v855 = vunpack.c.l.b16 %v798
        %v856 = vunpack.c.h.b16 %v798
        %v857 = vunpack.c.l.b16 %v799
        %v858 = vunpack.c.h.b16 %v799
        %v859 = vunpack.c.l.b16 %v800
        %v860 = vunpack.c.h.b16 %v800
        %v861 = vpack.c.b16 %v831, %v829
        %v862 = vpack.c.b16 %v832, %v830
        %v863 = vpack.c.b16 %v835, %v833
        %v864 = vpack.c.b16 %v836, %v834
        %v865 = vpack.c.b16 %v839, %v837
        %v866 = vpack.c.b16 %v840, %v838
        %v867 = vpack.c.b16 %v843, %v841
        %v868 = vpack.c.b16 %v844, %v842
        %v869 = vpack.c.b16 %v847, %v845
        %v870 = vpack.c.b16 %v848, %v846
        %v871 = vpack.c.b16 %v851, %v849
        %v872 = vpack.c.b16 %v852, %v850
        %v873 = vpack.c.b16 %v855, %v853
        %v874 = vpack.c.b16 %v856, %v854
        %v875 = vpack.c.b16 %v859, %v857
        %v876 = vpack.c.b16 %v860, %v858
        %893 = vmatprep.subr.bf16.mxu0 %v876
        %894 = vmatpush1.bf16.msra.mxu0 %v875
        %895 = vmatprep.subr.bf16.mxu0 %v874
        %896 = vmatpush1.bf16.msra.mxu0 %v873
        %897 = vmatprep.subr.bf16.mxu0 %v872
        %898 = vmatpush1.bf16.msra.mxu0 %v871
        %899 = vmatprep.subr.bf16.mxu0 %v870
        %900 = vmatpush1.bf16.msra.mxu0 %v869
        %901 = vmatprep.subr.bf16.mxu0 %v868
        %902 = vmatpush1.bf16.msra.mxu0 %v867
        %903 = vmatprep.subr.bf16.mxu0 %v866
        %904 = vmatpush1.bf16.msra.mxu0 %v865
        %905 = vmatprep.subr.bf16.mxu0 %v864
        %906 = vmatpush1.bf16.msra.mxu0 %v863
        %907 = vmatprep.subr.bf16.mxu0 %v862
        %908 = vmatpush1.bf16.msra.mxu0 %v861
        %909 = vmatprep.subr.bf16.mxu0 0
        %910 = vmatpush2.bf16.msra.mxu0 0
        %911 = vmatprep.subr.bf16.mxu0 0
        %912 = vmatpush2.bf16.msra.mxu0 0
        %913 = vmatprep.subr.bf16.mxu0 0
        %914 = vmatpush2.bf16.msra.mxu0 0
        %915 = vmatprep.subr.bf16.mxu0 0
        %916 = vmatpush2.bf16.msra.mxu0 0
        %917 = vmatprep.subr.bf16.mxu0 0
        %918 = vmatpush2.bf16.msra.mxu0 0
        %919 = vmatprep.subr.bf16.mxu0 0
        %920 = vmatpush2.bf16.msra.mxu0 0
        %921 = vmatprep.subr.bf16.mxu0 0
        %922 = vmatpush2.bf16.msra.mxu0 0
        %923 = vmatprep.subr.bf16.mxu0 0
        %924 = vmatpush2.bf16.msra.mxu0 0
        %925 = vmatprep.mubr.bf16.mxu0 0
        %926 = vmatmul.mubr.bf16.gmra.mxu0 %v784
        %v927 = vpop.f32.mrf.mxu0
        %v928 = vadd.f32 %v806, %v927
        %v929 = vpop.f32.mrf.mxu0
        %v930 = vadd.f32 %v810, %v929
        %v931 = vpop.f32.mrf.mxu0
        %v932 = vadd.f32 %v806, %v931
        %v933 = vpop.f32.mrf.mxu0
        %v934 = vadd.f32 %v810, %v933
        %935 = vdwg.mxu0
        %v936 = vmax.f32 %v928, 0.0
        %v937 = vmax.f32 %v930, 0.0
        %v938 = vmax.f32 %v932, 0.0
        %v939 = vmax.f32 %v934, 0.0
        %v940 = vpack.c.bf16 %v938, %v936
        %v941 = vpack.c.bf16 %v939, %v937
        %v942 = vld [vmem:[#allocation11] sm:$0xf]
        %v943 = vld [vmem:[#allocation11 + $0x4] sm:$0xf]
        %v944 = vld [vmem:[#allocation11 + $0x8] sm:$0xf]
        %v945 = vld [vmem:[#allocation11 + $0xc] sm:$0xf]
        %v946 = vld [vmem:[#allocation11 + $0x10] sm:$0xf]
        %v947 = vld [vmem:[#allocation11 + $0x14] sm:$0xf]
        %v948 = vld [vmem:[#allocation11 + $0x18] sm:$0xf]
        %v949 = vld [vmem:[#allocation11 + $0x1c] sm:$0xf]
        %v950 = vld [vmem:[#allocation11 + $0x20] sm:$0xf]
        %v951 = vld [vmem:[#allocation11 + $0x24] sm:$0xf]
        %v952 = vld [vmem:[#allocation11 + $0x28] sm:$0xf]
        %v953 = vld [vmem:[#allocation11 + $0x2c] sm:$0xf]
        %v954 = vld [vmem:[#allocation11 + $0x30] sm:$0xf]
        %v955 = vld [vmem:[#allocation11 + $0x34] sm:$0xf]
        %v956 = vld [vmem:[#allocation11 + $0x38] sm:$0xf]
        %v957 = vld [vmem:[#allocation11 + $0x3c] sm:$0xf]
        %v958 = vld [vmem:[#allocation11 + $0x40] sm:$0xf]
        %v959 = vld [vmem:[#allocation11 + $0x44] sm:$0xf]
        %v960 = vld [vmem:[#allocation11 + $0x48] sm:$0xf]
        %v961 = vld [vmem:[#allocation11 + $0x4c] sm:$0xf]
        %v962 = vld [vmem:[#allocation11 + $0x50] sm:$0xf]
        %v963 = vld [vmem:[#allocation11 + $0x54] sm:$0xf]
        %v964 = vld [vmem:[#allocation11 + $0x58] sm:$0xf]
        %v965 = vld [vmem:[#allocation11 + $0x5c] sm:$0xf]
        %v966 = vld [vmem:[#allocation11 + $0x60] sm:$0xf]
        %v967 = vld [vmem:[#allocation11 + $0x64] sm:$0xf]
        %v968 = vld [vmem:[#allocation11 + $0x68] sm:$0xf]
        %v969 = vld [vmem:[#allocation11 + $0x6c] sm:$0xf]
        %v970 = vld [vmem:[#allocation11 + $0x70] sm:$0xf]
        %v971 = vld [vmem:[#allocation11 + $0x74] sm:$0xf]
        %v972 = vld [vmem:[#allocation11 + $0x78] sm:$0xf]
        %v973 = vld [vmem:[#allocation11 + $0x7c] sm:$0xf]
        %v974 = vld [vmem:[#allocation12] sm:$0x1]
        %v976 = vlaneseq
        %v977 = vshrl.u32 %v976, 7
        %v978 = vsub.s32 0, %v977
        %v979 = vrot.slane %v974, %v978
        %v1013 = vunpack.c.l.b16 %v942
        %v1014 = vunpack.c.l.b16 %v943
        %v1015 = vunpack.c.l.b16 %v944
        %v1016 = vunpack.c.l.b16 %v945
        %v1017 = vunpack.c.l.b16 %v946
        %v1018 = vunpack.c.l.b16 %v947
        %v1019 = vunpack.c.l.b16 %v948
        %v1020 = vunpack.c.l.b16 %v949
        %v1021 = vunpack.c.l.b16 %v950
        %v1022 = vunpack.c.l.b16 %v951
        %v1023 = vunpack.c.l.b16 %v952
        %v1024 = vunpack.c.l.b16 %v953
        %v1025 = vunpack.c.l.b16 %v954
        %v1026 = vunpack.c.l.b16 %v955
        %v1027 = vunpack.c.l.b16 %v956
        %v1028 = vunpack.c.l.b16 %v957
        %v1029 = vunpack.c.l.b16 %v958
        %v1030 = vunpack.c.l.b16 %v959
        %v1031 = vunpack.c.l.b16 %v960
        %v1032 = vunpack.c.l.b16 %v961
        %v1033 = vunpack.c.l.b16 %v962
        %v1034 = vunpack.c.l.b16 %v963
        %v1035 = vunpack.c.l.b16 %v964
        %v1036 = vunpack.c.l.b16 %v965
        %v1037 = vunpack.c.l.b16 %v966
        %v1038 = vunpack.c.l.b16 %v967
        %v1039 = vunpack.c.l.b16 %v968
        %v1040 = vunpack.c.l.b16 %v969
        %v1041 = vunpack.c.l.b16 %v970
        %v1042 = vunpack.c.l.b16 %v971
        %v1043 = vunpack.c.l.b16 %v972
        %v1044 = vunpack.c.l.b16 %v973
        %v1045 = vpack.c.b16 %v1014, %v1013
        %v1046 = vpack.c.b16 %v1016, %v1015
        %v1047 = vpack.c.b16 %v1018, %v1017
        %v1048 = vpack.c.b16 %v1020, %v1019
        %v1049 = vpack.c.b16 %v1022, %v1021
        %v1050 = vpack.c.b16 %v1024, %v1023
        %v1051 = vpack.c.b16 %v1026, %v1025
        %v1052 = vpack.c.b16 %v1028, %v1027
        %v1053 = vpack.c.b16 %v1030, %v1029
        %v1054 = vpack.c.b16 %v1032, %v1031
        %v1055 = vpack.c.b16 %v1034, %v1033
        %v1056 = vpack.c.b16 %v1036, %v1035
        %v1057 = vpack.c.b16 %v1038, %v1037
        %v1058 = vpack.c.b16 %v1040, %v1039
        %v1059 = vpack.c.b16 %v1042, %v1041
        %v1060 = vpack.c.b16 %v1044, %v1043
        %1077 = vmatprep.subr.bf16.mxu0 0
        %1078 = vmatpush1.bf16.msra.mxu0 %v1052
        %1079 = vmatprep.subr.bf16.mxu0 0
        %1080 = vmatpush1.bf16.msra.mxu0 %v1051
        %1081 = vmatprep.subr.bf16.mxu0 0
        %1082 = vmatpush1.bf16.msra.mxu0 %v1050
        %1083 = vmatprep.subr.bf16.mxu0 0
        %1084 = vmatpush1.bf16.msra.mxu0 %v1049
        %1085 = vmatprep.subr.bf16.mxu0 0
        %1086 = vmatpush1.bf16.msra.mxu0 %v1048
        %1087 = vmatprep.subr.bf16.mxu0 0
        %1088 = vmatpush1.bf16.msra.mxu0 %v1047
        %1089 = vmatprep.subr.bf16.mxu0 0
        %1090 = vmatpush1.bf16.msra.mxu0 %v1046
        %1091 = vmatprep.subr.bf16.mxu0 0
        %1092 = vmatpush1.bf16.msra.mxu0 %v1045
        %1093 = vmatprep.subr.bf16.mxu0 0
        %1094 = vmatpush2.bf16.msra.mxu0 %v1060
        %1095 = vmatprep.subr.bf16.mxu0 0
        %1096 = vmatpush2.bf16.msra.mxu0 %v1059
        %1097 = vmatprep.subr.bf16.mxu0 0
        %1098 = vmatpush2.bf16.msra.mxu0 %v1058
        %1099 = vmatprep.subr.bf16.mxu0 0
        %1100 = vmatpush2.bf16.msra.mxu0 %v1057
        %1101 = vmatprep.subr.bf16.mxu0 0
        %1102 = vmatpush2.bf16.msra.mxu0 %v1056
        %1103 = vmatprep.subr.bf16.mxu0 0
        %1104 = vmatpush2.bf16.msra.mxu0 %v1055
        %1105 = vmatprep.subr.bf16.mxu0 0
        %1106 = vmatpush2.bf16.msra.mxu0 %v1054
        %1107 = vmatprep.subr.bf16.mxu0 0
        %1108 = vmatpush2.bf16.msra.mxu0 %v1053
        %1109 = vmatprep.mubr.bf16.mxu0 %v941
        %1110 = vmatmul.mubr.bf16.gmra.mxu0 %v940
        %v1111 = vpop.f32.mrf.mxu0
        %v1112 = vadd.f32 %v979, %v1111
        %v1113 = vpop.f32.mrf.mxu0
        %v1114 = vpop.f32.mrf.mxu0
        %v1115 = vadd.f32 %v979, %v1114
        %v1116 = vpop.f32.mrf.mxu0
        %1117 = vdwg.mxu0
        %v1118 = vadd.f32 %v782, %v1112
        %v1119 = vadd.f32 %v783, %v1115
        %v1120 = vld [vmem:[#allocation14] sm:$0xff]
        %v1121 = vld [vmem:[#allocation14 + $0x8] sm:$0xff]
        %v1122 = vld [vmem:[#allocation15] sm:$0xff]
        %v1123 = vld [vmem:[#allocation15 + $0x8] sm:$0xff]
        %1124 = vadd.xlane.f32.xlu0 %v1118
        %v1125 = vpop.xlane.xlu0 %1124
        %1126 = vadd.xlane.f32.xlu0 %v1119
        %v1127 = vpop.xlane.xlu0 %1126
        %v1128 = vadd.f32 %v1125, %v1127
        %v1129 = vrot.slane %v1128, 4
        %v1130 = vadd.f32 %v1128, %v1129
        %v1131 = vrot.slane %v1130, 2
        %v1132 = vadd.f32 %v1130, %v1131
        %v1133 = vrot.slane %v1132, 1
        %v1134 = vadd.f32 %v1132, %v1133
        %v1135 = vmul.f32 %v1134, %v758
        %v1136 = vsub.f32 %v1118, %v1135
        %v1137 = vsub.f32 %v1119, %v1135
        %v1138 = vmul.f32 %v1136, %v1136
        %v1139 = vmul.f32 %v1137, %v1137
        %1140 = vadd.xlane.f32.xlu0 %v1138
        %v1141 = vpop.xlane.xlu0 %1140
        %1142 = vadd.xlane.f32.xlu0 %v1139
        %v1143 = vpop.xlane.xlu0 %1142
        %v1144 = vadd.f32 %v1141, %v1143
        %v1145 = vrot.slane %v1144, 4
        %v1146 = vadd.f32 %v1144, %v1145
        %v1147 = vrot.slane %v1146, 2
        %v1148 = vadd.f32 %v1146, %v1147
        %v1149 = vrot.slane %v1148, 1
        %v1150 = vadd.f32 %v1148, %v1149
        %v1151 = vmul.f32 %v1150, %v758
        %v1152 = vadd.f32 %v1151, 1e-05
        %v1153 = vrsqrt.pop %v1152
        %v1154 = vmul.f32 %v1136, %v1153
        %v1155 = vmul.f32 %v1137, %v1153
        %v1156 = vmul.f32 %v1154, %v1120
        %v1157 = vmul.f32 %v1155, %v1121
        %v1158 = vadd.f32 %v1156, %v1122
        %v1159 = vadd.f32 %v1157, %v1123
        %v1160 = vpack.c.bf16 %v1159, %v1158
        %s1161 = scalar_lea.vmem [#allocation3], 64
        %v1162 = vld [vmem:[%s1161] sm:$0xf]
        %v1163 = vld [vmem:[%s1161 + $0x4] sm:$0xf]
        %v1164 = vld [vmem:[%s1161 + $0x8] sm:$0xf]
        %v1165 = vld [vmem:[%s1161 + $0xc] sm:$0xf]
        %v1166 = vld [vmem:[%s1161 + $0x10] sm:$0xf]
        %v1167 = vld [vmem:[%s1161 + $0x14] sm:$0xf]
        %v1168 = vld [vmem:[%s1161 + $0x18] sm:$0xf]
        %v1169 = vld [vmem:[%s1161 + $0x1c] sm:$0xf]
        %v1170 = vld [vmem:[%s1161 + $0x20] sm:$0xf]
        %v1171 = vld [vmem:[%s1161 + $0x24] sm:$0xf]
        %v1172 = vld [vmem:[%s1161 + $0x28] sm:$0xf]
        %v1173 = vld [vmem:[%s1161 + $0x2c] sm:$0xf]
        %v1174 = vld [vmem:[%s1161 + $0x30] sm:$0xf]
        %v1175 = vld [vmem:[%s1161 + $0x34] sm:$0xf]
        %v1176 = vld [vmem:[%s1161 + $0x38] sm:$0xf]
        %v1177 = vld [vmem:[%s1161 + $0x3c] sm:$0xf]
        %v1194 = vunpack.c.l.b16 %v1162
        %v1195 = vunpack.c.l.b16 %v1163
        %v1196 = vunpack.c.l.b16 %v1164
        %v1197 = vunpack.c.l.b16 %v1165
        %v1198 = vunpack.c.l.b16 %v1166
        %v1199 = vunpack.c.l.b16 %v1167
        %v1200 = vunpack.c.l.b16 %v1168
        %v1201 = vunpack.c.l.b16 %v1169
        %v1202 = vunpack.c.l.b16 %v1170
        %v1203 = vunpack.c.l.b16 %v1171
        %v1204 = vunpack.c.l.b16 %v1172
        %v1205 = vunpack.c.l.b16 %v1173
        %v1206 = vunpack.c.l.b16 %v1174
        %v1207 = vunpack.c.l.b16 %v1175
        %v1208 = vunpack.c.l.b16 %v1176
        %v1209 = vunpack.c.l.b16 %v1177
        %v1210 = vpack.c.b16 %v1195, %v1194
        %v1211 = vpack.c.b16 %v1197, %v1196
        %v1212 = vpack.c.b16 %v1199, %v1198
        %v1213 = vpack.c.b16 %v1201, %v1200
        %v1214 = vpack.c.b16 %v1203, %v1202
        %v1215 = vpack.c.b16 %v1205, %v1204
        %v1216 = vpack.c.b16 %v1207, %v1206
        %v1217 = vpack.c.b16 %v1209, %v1208
        %1226 = vmatprep.subr.bf16.mxu0 0
        %1227 = vmatpush1.bf16.msra.mxu0 %v1217
        %1228 = vmatprep.subr.bf16.mxu0 0
        %1229 = vmatpush1.bf16.msra.mxu0 %v1216
        %1230 = vmatprep.subr.bf16.mxu0 0
        %1231 = vmatpush1.bf16.msra.mxu0 %v1215
        %1232 = vmatprep.subr.bf16.mxu0 0
        %1233 = vmatpush1.bf16.msra.mxu0 %v1214
        %1234 = vmatprep.subr.bf16.mxu0 0
        %1235 = vmatpush1.bf16.msra.mxu0 %v1213
        %1236 = vmatprep.subr.bf16.mxu0 0
        %1237 = vmatpush1.bf16.msra.mxu0 %v1212
        %1238 = vmatprep.subr.bf16.mxu0 0
        %1239 = vmatpush1.bf16.msra.mxu0 %v1211
        %1240 = vmatprep.subr.bf16.mxu0 0
        %1241 = vmatpush1.bf16.msra.mxu0 %v1210
        %1242 = vmatprep.subr.bf16.mxu0 0
        %1243 = vmatpush2.bf16.msra.mxu0 0
        %1244 = vmatprep.subr.bf16.mxu0 0
        %1245 = vmatpush2.bf16.msra.mxu0 0
        %1246 = vmatprep.subr.bf16.mxu0 0
        %1247 = vmatpush2.bf16.msra.mxu0 0
        %1248 = vmatprep.subr.bf16.mxu0 0
        %1249 = vmatpush2.bf16.msra.mxu0 0
        %1250 = vmatprep.subr.bf16.mxu0 0
        %1251 = vmatpush2.bf16.msra.mxu0 0
        %1252 = vmatprep.subr.bf16.mxu0 0
        %1253 = vmatpush2.bf16.msra.mxu0 0
        %1254 = vmatprep.subr.bf16.mxu0 0
        %1255 = vmatpush2.bf16.msra.mxu0 0
        %1256 = vmatprep.subr.bf16.mxu0 0
        %1257 = vmatpush2.bf16.msra.mxu0 0
        %1258 = vmatprep.mubr.bf16.mxu0 0
        %1259 = vmatmul.mubr.bf16.gmra.mxu0 %v1160
        %v1260 = vpop.f32.mrf.mxu0
        %v1261 = vadd.f32 0.0, %v1260
        %v1262 = vpop.f32.mrf.mxu0
        %v1263 = vpop.f32.mrf.mxu0
        %v1264 = vadd.f32 0.0, %v1263
        %v1265 = vpop.f32.mrf.mxu0
        %1266 = vdwg.mxu0
        %v1267 = vadd.f32 %v1158, %v1261
        %v1268 = vadd.f32 %v1159, %v1264
        %s1269 = scalar_lea.vmem %s4, 16
        %v1270 = vld [vmem:[%s1269] sm:$0xff]
        %v1271 = vld [vmem:[%s1269 + $0x8] sm:$0xff]
        %s1272 = scalar_lea.vmem [#allocation6], 16
        %v1273 = vld [vmem:[%s1272] sm:$0xff]
        %v1274 = vld [vmem:[%s1272 + $0x8] sm:$0xff]
        %1275 = vadd.xlane.f32.xlu0 %v1267
        %v1276 = vpop.xlane.xlu0 %1275
        %1277 = vadd.xlane.f32.xlu0 %v1268
        %v1278 = vpop.xlane.xlu0 %1277
        %v1279 = vadd.f32 %v1276, %v1278
        %v1280 = vrot.slane %v1279, 4
        %v1281 = vadd.f32 %v1279, %v1280
        %v1282 = vrot.slane %v1281, 2
        %v1283 = vadd.f32 %v1281, %v1282
        %v1284 = vrot.slane %v1283, 1
        %v1285 = vadd.f32 %v1283, %v1284
        %v1286 = vmul.f32 %v1285, %v758
        %v1287 = vsub.f32 %v1267, %v1286
        %v1288 = vsub.f32 %v1268, %v1286
        %v1289 = vmul.f32 %v1287, %v1287
        %v1290 = vmul.f32 %v1288, %v1288
        %1291 = vadd.xlane.f32.xlu0 %v1289
        %v1292 = vpop.xlane.xlu0 %1291
        %1293 = vadd.xlane.f32.xlu0 %v1290
        %v1294 = vpop.xlane.xlu0 %1293
        %v1295 = vadd.f32 %v1292, %v1294
        %v1296 = vrot.slane %v1295, 4
        %v1297 = vadd.f32 %v1295, %v1296
        %v1298 = vrot.slane %v1297, 2
        %v1299 = vadd.f32 %v1297, %v1298
        %v1300 = vrot.slane %v1299, 1
        %v1301 = vadd.f32 %v1299, %v1300
        %v1302 = vmul.f32 %v1301, %v758
        %v1303 = vadd.f32 %v1302, 1e-05
        %v1304 = vrsqrt.pop %v1303
        %v1305 = vmul.f32 %v1287, %v1304
        %v1306 = vmul.f32 %v1288, %v1304
        %v1307 = vmul.f32 %v1305, %v1270
        %v1308 = vmul.f32 %v1306, %v1271
        %v1309 = vadd.f32 %v1307, %v1273
        %v1310 = vadd.f32 %v1308, %v1274
        %v1311 = vpack.c.bf16 %v1310, %v1309
        %s1312 = scalar_lea.vmem [#allocation8], 128
        %v1313 = vld [vmem:[%s1312] sm:$0xff]
        %v1314 = vld [vmem:[%s1312 + $0x8] sm:$0xff]
        %v1315 = vld [vmem:[%s1312 + $0x10] sm:$0xff]
        %v1316 = vld [vmem:[%s1312 + $0x18] sm:$0xff]
        %v1317 = vld [vmem:[%s1312 + $0x20] sm:$0xff]
        %v1318 = vld [vmem:[%s1312 + $0x28] sm:$0xff]
        %v1319 = vld [vmem:[%s1312 + $0x30] sm:$0xff]
        %v1320 = vld [vmem:[%s1312 + $0x38] sm:$0xff]
        %v1321 = vld [vmem:[%s1312 + $0x40] sm:$0xff]
        %v1322 = vld [vmem:[%s1312 + $0x48] sm:$0xff]
        %v1323 = vld [vmem:[%s1312 + $0x50] sm:$0xff]
        %v1324 = vld [vmem:[%s1312 + $0x58] sm:$0xff]
        %v1325 = vld [vmem:[%s1312 + $0x60] sm:$0xff]
        %v1326 = vld [vmem:[%s1312 + $0x68] sm:$0xff]
        %v1327 = vld [vmem:[%s1312 + $0x70] sm:$0xff]
        %v1328 = vld [vmem:[%s1312 + $0x78] sm:$0xff]
        %s1329 = scalar_lea.vmem [#allocation9], 2
        %v1330 = vld [vmem:[%s1329] sm:$0x3]
        %v1332 = vlaneseq
        %v1333 = vshrl.u32 %v1332, 7
        %v1334 = vsub.s32 0, %v1333
        %v1335 = vrot.slane %v1330, %v1334
        %v1336 = vlaneseq
        %v1337 = vshrl.u32 %v1336, 7
        %v1338 = vsub.s32 1, %v1337
        %v1339 = vrot.slane %v1330, %v1338
        %v1358 = vunpack.c.l.b16 %v1313
        %v1359 = vunpack.c.h.b16 %v1313
        %v1360 = vunpack.c.l.b16 %v1314
        %v1361 = vunpack.c.h.b16 %v1314
        %v1362 = vunpack.c.l.b16 %v1315
        %v1363 = vunpack.c.h.b16 %v1315
        %v1364 = vunpack.c.l.b16 %v1316
        %v1365 = vunpack.c.h.b16 %v1316
        %v1366 = vunpack.c.l.b16 %v1317
        %v1367 = vunpack.c.h.b16 %v1317
        %v1368 = vunpack.c.l.b16 %v1318
        %v1369 = vunpack.c.h.b16 %v1318
        %v1370 = vunpack.c.l.b16 %v1319
        %v1371 = vunpack.c.h.b16 %v1319
        %v1372 = vunpack.c.l.b16 %v1320
        %v1373 = vunpack.c.h.b16 %v1320
        %v1374 = vunpack.c.l.b16 %v1321
        %v1375 = vunpack.c.h.b16 %v1321
        %v1376 = vunpack.c.l.b16 %v1322
        %v1377 = vunpack.c.h.b16 %v1322
        %v1378 = vunpack.c.l.b16 %v1323
        %v1379 = vunpack.c.h.b16 %v1323
        %v1380 = vunpack.c.l.b16 %v1324
        %v1381 = vunpack.c.h.b16 %v1324
        %v1382 = vunpack.c.l.b16 %v1325
        %v1383 = vunpack.c.h.b16 %v1325
        %v1384 = vunpack.c.l.b16 %v1326
        %v1385 = vunpack.c.h.b16 %v1326
        %v1386 = vunpack.c.l.b16 %v1327
        %v1387 = vunpack.c.h.b16 %v1327
        %v1388 = vunpack.c.l.b16 %v1328
        %v1389 = vunpack.c.h.b16 %v1328
        %v1390 = vpack.c.b16 %v1360, %v1358
        %v1391 = vpack.c.b16 %v1361, %v1359
        %v1392 = vpack.c.b16 %v1364, %v1362
        %v1393 = vpack.c.b16 %v1365, %v1363
        %v1394 = vpack.c.b16 %v1368, %v1366
        %v1395 = vpack.c.b16 %v1369, %v1367
        %v1396 = vpack.c.b16 %v1372, %v1370
        %v1397 = vpack.c.b16 %v1373, %v1371
        %v1398 = vpack.c.b16 %v1376, %v1374
        %v1399 = vpack.c.b16 %v1377, %v1375
        %v1400 = vpack.c.b16 %v1380, %v1378
        %v1401 = vpack.c.b16 %v1381, %v1379
        %v1402 = vpack.c.b16 %v1384, %v1382
        %v1403 = vpack.c.b16 %v1385, %v1383
        %v1404 = vpack.c.b16 %v1388, %v1386
        %v1405 = vpack.c.b16 %v1389, %v1387
        %1422 = vmatprep.subr.bf16.mxu0 %v1405
        %1423 = vmatpush1.bf16.msra.mxu0 %v1404
        %1424 = vmatprep.subr.bf16.mxu0 %v1403
        %1425 = vmatpush1.bf16.msra.mxu0 %v1402
        %1426 = vmatprep.subr.bf16.mxu0 %v1401
        %1427 = vmatpush1.bf16.msra.mxu0 %v1400
        %1428 = vmatprep.subr.bf16.mxu0 %v1399
        %1429 = vmatpush1.bf16.msra.mxu0 %v1398
        %1430 = vmatprep.subr.bf16.mxu0 %v1397
        %1431 = vmatpush1.bf16.msra.mxu0 %v1396
        %1432 = vmatprep.subr.bf16.mxu0 %v1395
        %1433 = vmatpush1.bf16.msra.mxu0 %v1394
        %1434 = vmatprep.subr.bf16.mxu0 %v1393
        %1435 = vmatpush1.bf16.msra.mxu0 %v1392
        %1436 = vmatprep.subr.bf16.mxu0 %v1391
        %1437 = vmatpush1.bf16.msra.mxu0 %v1390
        %1438 = vmatprep.subr.bf16.mxu0 0
        %1439 = vmatpush2.bf16.msra.mxu0 0
        %1440 = vmatprep.subr.bf16.mxu0 0
        %1441 = vmatpush2.bf16.msra.mxu0 0
        %1442 = vmatprep.subr.bf16.mxu0 0
        %1443 = vmatpush2.bf16.msra.mxu0 0
        %1444 = vmatprep.subr.bf16.mxu0 0
        %1445 = vmatpush2.bf16.msra.mxu0 0
        %1446 = vmatprep.subr.bf16.mxu0 0
        %1447 = vmatpush2.bf16.msra.mxu0 0
        %1448 = vmatprep.subr.bf16.mxu0 0
        %1449 = vmatpush2.bf16.msra.mxu0 0
        %1450 = vmatprep.subr.bf16.mxu0 0
        %1451 = vmatpush2.bf16.msra.mxu0 0
        %1452 = vmatprep.subr.bf16.mxu0 0
        %1453 = vmatpush2.bf16.msra.mxu0 0
        %1454 = vmatprep.mubr.bf16.mxu0 0
        %1455 = vmatmul.mubr.bf16.gmra.mxu0 %v1311
        %v1456 = vpop.f32.mrf.mxu0
        %v1457 = vadd.f32 %v1335, %v1456
        %v1458 = vpop.f32.mrf.mxu0
        %v1459 = vadd.f32 %v1339, %v1458
        %v1460 = vpop.f32.mrf.mxu0
        %v1461 = vadd.f32 %v1335, %v1460
        %v1462 = vpop.f32.mrf.mxu0
        %v1463 = vadd.f32 %v1339, %v1462
        %1464 = vdwg.mxu0
        %v1465 = vmax.f32 %v1457, 0.0
        %v1466 = vmax.f32 %v1459, 0.0
        %v1467 = vmax.f32 %v1461, 0.0
        %v1468 = vmax.f32 %v1463, 0.0
        %v1469 = vpack.c.bf16 %v1467, %v1465
        %v1470 = vpack.c.bf16 %v1468, %v1466
        %s1471 = scalar_lea.vmem [#allocation11], 128
        %v1472 = vld [vmem:[%s1471] sm:$0xf]
        %v1473 = vld [vmem:[%s1471 + $0x4] sm:$0xf]
        %v1474 = vld [vmem:[%s1471 + $0x8] sm:$0xf]
        %v1475 = vld [vmem:[%s1471 + $0xc] sm:$0xf]
        %v1476 = vld [vmem:[%s1471 + $0x10] sm:$0xf]
        %v1477 = vld [vmem:[%s1471 + $0x14] sm:$0xf]
        %v1478 = vld [vmem:[%s1471 + $0x18] sm:$0xf]
        %v1479 = vld [vmem:[%s1471 + $0x1c] sm:$0xf]
        %v1480 = vld [vmem:[%s1471 + $0x20] sm:$0xf]
        %v1481 = vld [vmem:[%s1471 + $0x24] sm:$0xf]
        %v1482 = vld [vmem:[%s1471 + $0x28] sm:$0xf]
        %v1483 = vld [vmem:[%s1471 + $0x2c] sm:$0xf]
        %v1484 = vld [vmem:[%s1471 + $0x30] sm:$0xf]
        %v1485 = vld [vmem:[%s1471 + $0x34] sm:$0xf]
        %v1486 = vld [vmem:[%s1471 + $0x38] sm:$0xf]
        %v1487 = vld [vmem:[%s1471 + $0x3c] sm:$0xf]
        %v1488 = vld [vmem:[%s1471 + $0x40] sm:$0xf]
        %v1489 = vld [vmem:[%s1471 + $0x44] sm:$0xf]
        %v1490 = vld [vmem:[%s1471 + $0x48] sm:$0xf]
        %v1491 = vld [vmem:[%s1471 + $0x4c] sm:$0xf]
        %v1492 = vld [vmem:[%s1471 + $0x50] sm:$0xf]
        %v1493 = vld [vmem:[%s1471 + $0x54] sm:$0xf]
        %v1494 = vld [vmem:[%s1471 + $0x58] sm:$0xf]
        %v1495 = vld [vmem:[%s1471 + $0x5c] sm:$0xf]
        %v1496 = vld [vmem:[%s1471 + $0x60] sm:$0xf]
        %v1497 = vld [vmem:[%s1471 + $0x64] sm:$0xf]
        %v1498 = vld [vmem:[%s1471 + $0x68] sm:$0xf]
        %v1499 = vld [vmem:[%s1471 + $0x6c] sm:$0xf]
        %v1500 = vld [vmem:[%s1471 + $0x70] sm:$0xf]
        %v1501 = vld [vmem:[%s1471 + $0x74] sm:$0xf]
        %v1502 = vld [vmem:[%s1471 + $0x78] sm:$0xf]
        %v1503 = vld [vmem:[%s1471 + $0x7c] sm:$0xf]
        %s1504 = scalar_lea.vmem [#allocation12], 1
        %v1505 = vld [vmem:[%s1504] sm:$0x1]
        %v1507 = vlaneseq
        %v1508 = vshrl.u32 %v1507, 7
        %v1509 = vsub.s32 0, %v1508
        %v1510 = vrot.slane %v1505, %v1509
        %v1544 = vunpack.c.l.b16 %v1472
        %v1545 = vunpack.c.l.b16 %v1473
        %v1546 = vunpack.c.l.b16 %v1474
        %v1547 = vunpack.c.l.b16 %v1475
        %v1548 = vunpack.c.l.b16 %v1476
        %v1549 = vunpack.c.l.b16 %v1477
        %v1550 = vunpack.c.l.b16 %v1478
        %v1551 = vunpack.c.l.b16 %v1479
        %v1552 = vunpack.c.l.b16 %v1480
        %v1553 = vunpack.c.l.b16 %v1481
        %v1554 = vunpack.c.l.b16 %v1482
        %v1555 = vunpack.c.l.b16 %v1483
        %v1556 = vunpack.c.l.b16 %v1484
        %v1557 = vunpack.c.l.b16 %v1485
        %v1558 = vunpack.c.l.b16 %v1486
        %v1559 = vunpack.c.l.b16 %v1487
        %v1560 = vunpack.c.l.b16 %v1488
        %v1561 = vunpack.c.l.b16 %v1489
        %v1562 = vunpack.c.l.b16 %v1490
        %v1563 = vunpack.c.l.b16 %v1491
        %v1564 = vunpack.c.l.b16 %v1492
        %v1565 = vunpack.c.l.b16 %v1493
        %v1566 = vunpack.c.l.b16 %v1494
        %v1567 = vunpack.c.l.b16 %v1495
        %v1568 = vunpack.c.l.b16 %v1496
        %v1569 = vunpack.c.l.b16 %v1497
        %v1570 = vunpack.c.l.b16 %v1498
        %v1571 = vunpack.c.l.b16 %v1499
        %v1572 = vunpack.c.l.b16 %v1500
        %v1573 = vunpack.c.l.b16 %v1501
        %v1574 = vunpack.c.l.b16 %v1502
        %v1575 = vunpack.c.l.b16 %v1503
        %v1576 = vpack.c.b16 %v1545, %v1544
        %v1577 = vpack.c.b16 %v1547, %v1546
        %v1578 = vpack.c.b16 %v1549, %v1548
        %v1579 = vpack.c.b16 %v1551, %v1550
        %v1580 = vpack.c.b16 %v1553, %v1552
        %v1581 = vpack.c.b16 %v1555, %v1554
        %v1582 = vpack.c.b16 %v1557, %v1556
        %v1583 = vpack.c.b16 %v1559, %v1558
        %v1584 = vpack.c.b16 %v1561, %v1560
        %v1585 = vpack.c.b16 %v1563, %v1562
        %v1586 = vpack.c.b16 %v1565, %v1564
        %v1587 = vpack.c.b16 %v1567, %v1566
        %v1588 = vpack.c.b16 %v1569, %v1568
        %v1589 = vpack.c.b16 %v1571, %v1570
        %v1590 = vpack.c.b16 %v1573, %v1572
        %v1591 = vpack.c.b16 %v1575, %v1574
        %1608 = vmatprep.subr.bf16.mxu0 0
        %1609 = vmatpush1.bf16.msra.mxu0 %v1583
        %1610 = vmatprep.subr.bf16.mxu0 0
        %1611 = vmatpush1.bf16.msra.mxu0 %v1582
        %1612 = vmatprep.subr.bf16.mxu0 0
        %1613 = vmatpush1.bf16.msra.mxu0 %v1581
        %1614 = vmatprep.subr.bf16.mxu0 0
        %1615 = vmatpush1.bf16.msra.mxu0 %v1580
        %1616 = vmatprep.subr.bf16.mxu0 0
        %1617 = vmatpush1.bf16.msra.mxu0 %v1579
        %1618 = vmatprep.subr.bf16.mxu0 0
        %1619 = vmatpush1.bf16.msra.mxu0 %v1578
        %1620 = vmatprep.subr.bf16.mxu0 0
        %1621 = vmatpush1.bf16.msra.mxu0 %v1577
        %1622 = vmatprep.subr.bf16.mxu0 0
        %1623 = vmatpush1.bf16.msra.mxu0 %v1576
        %1624 = vmatprep.subr.bf16.mxu0 0
        %1625 = vmatpush2.bf16.msra.mxu0 %v1591
        %1626 = vmatprep.subr.bf16.mxu0 0
        %1627 = vmatpush2.bf16.msra.mxu0 %v1590
        %1628 = vmatprep.subr.bf16.mxu0 0
        %1629 = vmatpush2.bf16.msra.mxu0 %v1589
        %1630 = vmatprep.subr.bf16.mxu0 0
        %1631 = vmatpush2.bf16.msra.mxu0 %v1588
        %1632 = vmatprep.subr.bf16.mxu0 0
        %1633 = vmatpush2.bf16.msra.mxu0 %v1587
        %1634 = vmatprep.subr.bf16.mxu0 0
        %1635 = vmatpush2.bf16.msra.mxu0 %v1586
        %1636 = vmatprep.subr.bf16.mxu0 0
        %1637 = vmatpush2.bf16.msra.mxu0 %v1585
        %1638 = vmatprep.subr.bf16.mxu0 0
        %1639 = vmatpush2.bf16.msra.mxu0 %v1584
        %1640 = vmatprep.mubr.bf16.mxu0 %v1470
        %1641 = vmatmul.mubr.bf16.gmra.mxu0 %v1469
        %v1642 = vpop.f32.mrf.mxu0
        %v1643 = vadd.f32 %v1510, %v1642
        %v1644 = vpop.f32.mrf.mxu0
        %v1645 = vpop.f32.mrf.mxu0
        %v1646 = vadd.f32 %v1510, %v1645
        %v1647 = vpop.f32.mrf.mxu0
        %1648 = vdwg.mxu0
        %v1649 = vadd.f32 %v1309, %v1643
        %v1650 = vadd.f32 %v1310, %v1646
        %s1651 = scalar_lea.vmem [#allocation14], 16
        %v1652 = vld [vmem:[%s1651] sm:$0xff]
        %v1653 = vld [vmem:[%s1651 + $0x8] sm:$0xff]
        %s1654 = scalar_lea.vmem [#allocation15], 16
        %v1655 = vld [vmem:[%s1654] sm:$0xff]
        %v1656 = vld [vmem:[%s1654 + $0x8] sm:$0xff]
        %1657 = vadd.xlane.f32.xlu0 %v1649
        %v1658 = vpop.xlane.xlu0 %1657
        %1659 = vadd.xlane.f32.xlu0 %v1650
        %v1660 = vpop.xlane.xlu0 %1659
        %v1661 = vadd.f32 %v1658, %v1660
        %v1662 = vrot.slane %v1661, 4
        %v1663 = vadd.f32 %v1661, %v1662
        %v1664 = vrot.slane %v1663, 2
        %v1665 = vadd.f32 %v1663, %v1664
        %v1666 = vrot.slane %v1665, 1
        %v1667 = vadd.f32 %v1665, %v1666
        %v1668 = vmul.f32 %v1667, %v758
        %v1669 = vsub.f32 %v1649, %v1668
        %v1670 = vsub.f32 %v1650, %v1668
        %v1671 = vmul.f32 %v1669, %v1669
        %v1672 = vmul.f32 %v1670, %v1670
        %1673 = vadd.xlane.f32.xlu0 %v1671
        %v1674 = vpop.xlane.xlu0 %1673
        %1675 = vadd.xlane.f32.xlu0 %v1672
        %v1676 = vpop.xlane.xlu0 %1675
        %v1677 = vadd.f32 %v1674, %v1676
        %v1678 = vrot.slane %v1677, 4
        %v1679 = vadd.f32 %v1677, %v1678
        %v1680 = vrot.slane %v1679, 2
        %v1681 = vadd.f32 %v1679, %v1680
        %v1682 = vrot.slane %v1681, 1
        %v1683 = vadd.f32 %v1681, %v1682
        %v1684 = vmul.f32 %v1683, %v758
        %v1685 = vadd.f32 %v1684, 1e-05
        %v1686 = vrsqrt.pop %v1685
        %v1687 = vmul.f32 %v1669, %v1686
        %v1688 = vmul.f32 %v1670, %v1686
        %v1689 = vmul.f32 %v1687, %v1652
        %v1690 = vmul.f32 %v1688, %v1653
        %v1691 = vadd.f32 %v1689, %v1655
        %v1692 = vadd.f32 %v1690, %v1656
        %v1693 = vlaneseq
        %vm1694 = vcmp.ge.s32.totalorder %v1693, 0
        %vm1695 = vcmp.lt.s32.totalorder %v1693, 128
        %vm1696 = vmand %vm1694, %vm1695
        %1697 = vst.msk [vmem:[#allocation2] sm:$0x1] %vm1696, %v1691
        %v1700 = vunpack.c.l.s4 1966171168
        %v1701 = vunpack.c.0.s8 %v1700
        %v1702 = vlaneseq
        %v1703 = vshrl.u32 %v1702, 7
        %v1704 = vsub.s32 %v1701, %v1703
        %v1705 = vrot.slane %v1691, %v1704
        %v1706 = vcombine.high %v1705, %v1705
        %v1708 = vunpack.c.l.s4 1966171168
        %v1709 = vunpack.c.0.s8 %v1708
        %v1710 = vlaneseq
        %v1711 = vshrl.u32 %v1710, 7
        %v1712 = vsub.s32 %v1709, %v1711
        %v1713 = vrot.slane %v1705, %v1712
        %v1715 = vunpack.c.l.s4 1966171168
        %v1716 = vunpack.c.0.s8 %v1715
        %v1717 = vlaneseq
        %v1718 = vshrl.u32 %v1717, 7
        %v1719 = vsub.s32 %v1716, %v1718
        %v1720 = vrot.slane %v1706, %v1719
        %1722 = vst.msk [vmem:[#allocation2 + $0x1] sm:$0x1] %vm1696, %v1720
        %v1723 = vcombine.high %v1713, %v1713
        %1725 = vst.msk [vmem:[#allocation2 + $0x2] sm:$0x1] %vm1696, %v1723
        %v1726 = vcombine.high %v1720, %v1720
        %1728 = vst.msk [vmem:[#allocation2 + $0x3] sm:$0x1] %vm1696, %v1726
        %v1729 = vcombine.high %v1691, %v1691
        %v1731 = vunpack.c.l.s4 1966171168
        %v1732 = vunpack.c.0.s8 %v1731
        %v1733 = vlaneseq
        %v1734 = vshrl.u32 %v1733, 7
        %v1735 = vsub.s32 %v1732, %v1734
        %v1736 = vrot.slane %v1729, %v1735
        %v1738 = vunpack.c.l.s4 1966171168
        %v1739 = vunpack.c.0.s8 %v1738
        %v1740 = vlaneseq
        %v1741 = vshrl.u32 %v1740, 7
        %v1742 = vsub.s32 %v1739, %v1741
        %v1743 = vrot.slane %v1736, %v1742
        %1745 = vst.msk [vmem:[#allocation2 + $0x4] sm:$0x1] %vm1696, %v1743
        %v1746 = vcombine.high %v1736, %v1736
        %v1748 = vunpack.c.l.s4 1966171168
        %v1749 = vunpack.c.0.s8 %v1748
        %v1750 = vlaneseq
        %v1751 = vshrl.u32 %v1750, 7
        %v1752 = vsub.s32 %v1749, %v1751
        %v1753 = vrot.slane %v1746, %v1752
        %1755 = vst.msk [vmem:[#allocation2 + $0x5] sm:$0x1] %vm1696, %v1753
        %v1756 = vcombine.high %v1743, %v1743
        %1758 = vst.msk [vmem:[#allocation2 + $0x6] sm:$0x1] %vm1696, %v1756
        %v1759 = vcombine.high %v1753, %v1753
        %1761 = vst.msk [vmem:[#allocation2 + $0x7] sm:$0x1] %vm1696, %v1759
        %1762 = vst.msk [vmem:[#allocation2 + $0x8] sm:$0x1] %vm1696, %v1692
        %v1765 = vunpack.c.l.s4 1966171168
        %v1766 = vunpack.c.0.s8 %v1765
        %v1767 = vlaneseq
        %v1768 = vshrl.u32 %v1767, 7
        %v1769 = vsub.s32 %v1766, %v1768
        %v1770 = vrot.slane %v1692, %v1769
        %v1771 = vcombine.high %v1770, %v1770
        %v1773 = vunpack.c.l.s4 1966171168
        %v1774 = vunpack.c.0.s8 %v1773
        %v1775 = vlaneseq
        %v1776 = vshrl.u32 %v1775, 7
        %v1777 = vsub.s32 %v1774, %v1776
        %v1778 = vrot.slane %v1770, %v1777
        %v1780 = vunpack.c.l.s4 1966171168
        %v1781 = vunpack.c.0.s8 %v1780
        %v1782 = vlaneseq
        %v1783 = vshrl.u32 %v1782, 7
        %v1784 = vsub.s32 %v1781, %v1783
        %v1785 = vrot.slane %v1771, %v1784
        %1787 = vst.msk [vmem:[#allocation2 + $0x9] sm:$0x1] %vm1696, %v1785
        %v1788 = vcombine.high %v1778, %v1778
        %1790 = vst.msk [vmem:[#allocation2 + $0xa] sm:$0x1] %vm1696, %v1788
        %v1791 = vcombine.high %v1785, %v1785
        %1793 = vst.msk [vmem:[#allocation2 + $0xb] sm:$0x1] %vm1696, %v1791
        %v1794 = vcombine.high %v1692, %v1692
        %v1796 = vunpack.c.l.s4 1966171168
        %v1797 = vunpack.c.0.s8 %v1796
        %v1798 = vlaneseq
        %v1799 = vshrl.u32 %v1798, 7
        %v1800 = vsub.s32 %v1797, %v1799
        %v1801 = vrot.slane %v1794, %v1800
        %v1803 = vunpack.c.l.s4 1966171168
        %v1804 = vunpack.c.0.s8 %v1803
        %v1805 = vlaneseq
        %v1806 = vshrl.u32 %v1805, 7
        %v1807 = vsub.s32 %v1804, %v1806
        %v1808 = vrot.slane %v1801, %v1807
        %1810 = vst.msk [vmem:[#allocation2 + $0xc] sm:$0x1] %vm1696, %v1808
        %v1811 = vcombine.high %v1801, %v1801
        %v1813 = vunpack.c.l.s4 1966171168
        %v1814 = vunpack.c.0.s8 %v1813
        %v1815 = vlaneseq
        %v1816 = vshrl.u32 %v1815, 7
        %v1817 = vsub.s32 %v1814, %v1816
        %v1818 = vrot.slane %v1811, %v1817
        %1820 = vst.msk [vmem:[#allocation2 + $0xd] sm:$0x1] %vm1696, %v1818
        %v1821 = vcombine.high %v1808, %v1808
        %1823 = vst.msk [vmem:[#allocation2 + $0xe] sm:$0x1] %vm1696, %v1821
        %v1824 = vcombine.high %v1818, %v1818
        %1826 = vst.msk [vmem:[#allocation2 + $0xf] sm:$0x1] %vm1696, %v1824
        %v1827 = vld [vmem:[#allocation2] sm:$0xff]
        %v1828 = vld [vmem:[#allocation2 + $0x8] sm:$0xff]
        %v1831 = vlaneseq
        %v1832 = vshrl.u32 %v1831, 7
        %v1833 = vsub.s32 0, %v1832
        %v1834 = vrot.slane %v1827, %v1833
        %v1835 = vlaneseq
        %v1836 = vshrl.u32 %v1835, 7
        %v1837 = vsub.s32 1, %v1836
        %v1838 = vrot.slane %v1827, %v1837
        %v1839 = vlaneseq
        %v1840 = vshrl.u32 %v1839, 7
        %v1841 = vsub.s32 2, %v1840
        %v1842 = vrot.slane %v1827, %v1841
        %v1843 = vlaneseq
        %v1844 = vshrl.u32 %v1843, 7
        %v1845 = vsub.s32 3, %v1844
        %v1846 = vrot.slane %v1827, %v1845
        %v1847 = vlaneseq
        %v1848 = vshrl.u32 %v1847, 7
        %v1849 = vsub.s32 4, %v1848
        %v1850 = vrot.slane %v1827, %v1849
        %v1851 = vlaneseq
        %v1852 = vshrl.u32 %v1851, 7
        %v1853 = vsub.s32 5, %v1852
        %v1854 = vrot.slane %v1827, %v1853
        %v1855 = vlaneseq
        %v1856 = vshrl.u32 %v1855, 7
        %v1857 = vsub.s32 6, %v1856
        %v1858 = vrot.slane %v1827, %v1857
        %v1859 = vlaneseq
        %v1860 = vshrl.u32 %v1859, 7
        %v1861 = vsub.s32 7, %v1860
        %v1862 = vrot.slane %v1827, %v1861
        %v1863 = vlaneseq
        %v1864 = vshrl.u32 %v1863, 7
        %v1865 = vsub.s32 0, %v1864
        %v1866 = vrot.slane %v1828, %v1865
        %v1867 = vlaneseq
        %v1868 = vshrl.u32 %v1867, 7
        %v1869 = vsub.s32 1, %v1868
        %v1870 = vrot.slane %v1828, %v1869
        %v1871 = vlaneseq
        %v1872 = vshrl.u32 %v1871, 7
        %v1873 = vsub.s32 2, %v1872
        %v1874 = vrot.slane %v1828, %v1873
        %v1875 = vlaneseq
        %v1876 = vshrl.u32 %v1875, 7
        %v1877 = vsub.s32 3, %v1876
        %v1878 = vrot.slane %v1828, %v1877
        %v1879 = vlaneseq
        %v1880 = vshrl.u32 %v1879, 7
        %v1881 = vsub.s32 4, %v1880
        %v1882 = vrot.slane %v1828, %v1881
        %v1883 = vlaneseq
        %v1884 = vshrl.u32 %v1883, 7
        %v1885 = vsub.s32 5, %v1884
        %v1886 = vrot.slane %v1828, %v1885
        %v1887 = vlaneseq
        %v1888 = vshrl.u32 %v1887, 7
        %v1889 = vsub.s32 6, %v1888
        %v1890 = vrot.slane %v1828, %v1889
        %v1891 = vlaneseq
        %v1892 = vshrl.u32 %v1891, 7
        %v1893 = vsub.s32 7, %v1892
        %v1894 = vrot.slane %v1828, %v1893
        %v1911 = vpack.c.bf16 %v1834, %v1834
        %v1912 = vpack.c.bf16 %v1838, %v1838
        %v1913 = vpack.c.bf16 %v1842, %v1842
        %v1914 = vpack.c.bf16 %v1846, %v1846
        %v1915 = vpack.c.bf16 %v1850, %v1850
        %v1916 = vpack.c.bf16 %v1854, %v1854
        %v1917 = vpack.c.bf16 %v1858, %v1858
        %v1918 = vpack.c.bf16 %v1862, %v1862
        %v1919 = vpack.c.bf16 %v1866, %v1866
        %v1920 = vpack.c.bf16 %v1870, %v1870
        %v1921 = vpack.c.bf16 %v1874, %v1874
        %v1922 = vpack.c.bf16 %v1878, %v1878
        %v1923 = vpack.c.bf16 %v1882, %v1882
        %v1924 = vpack.c.bf16 %v1886, %v1886
        %v1925 = vpack.c.bf16 %v1890, %v1890
        %v1926 = vpack.c.bf16 %v1894, %v1894
        %v1927 = vld [vmem:[#allocation17] sm:$0xf]
        %v1928 = vld [vmem:[#allocation17 + $0x4] sm:$0xf]
        %v1929 = vld [vmem:[#allocation17 + $0x8] sm:$0xf]
        %v1930 = vld [vmem:[#allocation17 + $0xc] sm:$0xf]
        %v1931 = vld [vmem:[#allocation17 + $0x10] sm:$0xf]
        %v1932 = vld [vmem:[#allocation17 + $0x14] sm:$0xf]
        %v1933 = vld [vmem:[#allocation17 + $0x18] sm:$0xf]
        %v1934 = vld [vmem:[#allocation17 + $0x1c] sm:$0xf]
        %v1935 = vld [vmem:[#allocation17 + $0x20] sm:$0xf]
        %v1936 = vld [vmem:[#allocation17 + $0x24] sm:$0xf]
        %v1937 = vld [vmem:[#allocation17 + $0x28] sm:$0xf]
        %v1938 = vld [vmem:[#allocation17 + $0x2c] sm:$0xf]
        %v1939 = vld [vmem:[#allocation17 + $0x30] sm:$0xf]
        %v1940 = vld [vmem:[#allocation17 + $0x34] sm:$0xf]
        %v1941 = vld [vmem:[#allocation17 + $0x38] sm:$0xf]
        %v1942 = vld [vmem:[#allocation17 + $0x3c] sm:$0xf]
        %v1943 = vld [vmem:[#allocation17 + $0x40] sm:$0xf]
        %v1944 = vld [vmem:[#allocation17 + $0x44] sm:$0xf]
        %v1945 = vld [vmem:[#allocation17 + $0x48] sm:$0xf]
        %v1946 = vld [vmem:[#allocation17 + $0x4c] sm:$0xf]
        %v1947 = vld [vmem:[#allocation17 + $0x50] sm:$0xf]
        %v1948 = vld [vmem:[#allocation17 + $0x54] sm:$0xf]
        %v1949 = vld [vmem:[#allocation17 + $0x58] sm:$0xf]
        %v1950 = vld [vmem:[#allocation17 + $0x5c] sm:$0xf]
        %v1951 = vld [vmem:[#allocation17 + $0x60] sm:$0xf]
        %v1952 = vld [vmem:[#allocation17 + $0x64] sm:$0xf]
        %v1953 = vld [vmem:[#allocation17 + $0x68] sm:$0xf]
        %v1954 = vld [vmem:[#allocation17 + $0x6c] sm:$0xf]
        %v1955 = vld [vmem:[#allocation17 + $0x70] sm:$0xf]
        %v1956 = vld [vmem:[#allocation17 + $0x74] sm:$0xf]
        %v1957 = vld [vmem:[#allocation17 + $0x78] sm:$0xf]
        %v1958 = vld [vmem:[#allocation17 + $0x7c] sm:$0xf]
        %v1959 = vld [vmem:[#allocation17 + $0x80] sm:$0xf]
        %v1960 = vld [vmem:[#allocation17 + $0x84] sm:$0xf]
        %v1961 = vld [vmem:[#allocation17 + $0x88] sm:$0xf]
        %v1962 = vld [vmem:[#allocation17 + $0x8c] sm:$0xf]
        %v1963 = vld [vmem:[#allocation17 + $0x90] sm:$0xf]
        %v1964 = vld [vmem:[#allocation17 + $0x94] sm:$0xf]
        %v1965 = vld [vmem:[#allocation17 + $0x98] sm:$0xf]
        %v1966 = vld [vmem:[#allocation17 + $0x9c] sm:$0xf]
        %v1967 = vld [vmem:[#allocation17 + $0xa0] sm:$0xf]
        %v1968 = vld [vmem:[#allocation17 + $0xa4] sm:$0xf]
        %v1969 = vld [vmem:[#allocation17 + $0xa8] sm:$0xf]
        %v1970 = vld [vmem:[#allocation17 + $0xac] sm:$0xf]
        %v1971 = vld [vmem:[#allocation17 + $0xb0] sm:$0xf]
        %v1972 = vld [vmem:[#allocation17 + $0xb4] sm:$0xf]
        %v1973 = vld [vmem:[#allocation17 + $0xb8] sm:$0xf]
        %v1974 = vld [vmem:[#allocation17 + $0xbc] sm:$0xf]
        %v1975 = vld [vmem:[#allocation17 + $0xc0] sm:$0xf]
        %v1976 = vld [vmem:[#allocation17 + $0xc4] sm:$0xf]
        %v1977 = vld [vmem:[#allocation17 + $0xc8] sm:$0xf]
        %v1978 = vld [vmem:[#allocation17 + $0xcc] sm:$0xf]
        %v1979 = vld [vmem:[#allocation17 + $0xd0] sm:$0xf]
        %v1980 = vld [vmem:[#allocation17 + $0xd4] sm:$0xf]
        %v1981 = vld [vmem:[#allocation17 + $0xd8] sm:$0xf]
        %v1982 = vld [vmem:[#allocation17 + $0xdc] sm:$0xf]
        %v1983 = vld [vmem:[#allocation17 + $0xe0] sm:$0xf]
        %v1984 = vld [vmem:[#allocation17 + $0xe4] sm:$0xf]
        %v1985 = vld [vmem:[#allocation17 + $0xe8] sm:$0xf]
        %v1986 = vld [vmem:[#allocation17 + $0xec] sm:$0xf]
        %v1987 = vld [vmem:[#allocation17 + $0xf0] sm:$0xf]
        %v1988 = vld [vmem:[#allocation17 + $0xf4] sm:$0xf]
        %v1989 = vld [vmem:[#allocation17 + $0xf8] sm:$0xf]
        %v1990 = vld [vmem:[#allocation17 + $0xfc] sm:$0xf]
        %v1991 = vld [vmem:[#allocation17 + $0x100] sm:$0xf]
        %v1992 = vld [vmem:[#allocation17 + $0x104] sm:$0xf]
        %v1993 = vld [vmem:[#allocation17 + $0x108] sm:$0xf]
        %v1994 = vld [vmem:[#allocation17 + $0x10c] sm:$0xf]
        %v1995 = vld [vmem:[#allocation17 + $0x110] sm:$0xf]
        %v1996 = vld [vmem:[#allocation17 + $0x114] sm:$0xf]
        %v1997 = vld [vmem:[#allocation17 + $0x118] sm:$0xf]
        %v1998 = vld [vmem:[#allocation17 + $0x11c] sm:$0xf]
        %v1999 = vld [vmem:[#allocation17 + $0x120] sm:$0xf]
        %v2000 = vld [vmem:[#allocation17 + $0x124] sm:$0xf]
        %v2001 = vld [vmem:[#allocation17 + $0x128] sm:$0xf]
        %v2002 = vld [vmem:[#allocation17 + $0x12c] sm:$0xf]
        %v2003 = vld [vmem:[#allocation17 + $0x130] sm:$0xf]
        %v2004 = vld [vmem:[#allocation17 + $0x134] sm:$0xf]
        %v2005 = vld [vmem:[#allocation17 + $0x138] sm:$0xf]
        %v2006 = vld [vmem:[#allocation17 + $0x13c] sm:$0xf]
        %v2007 = vld [vmem:[#allocation17 + $0x140] sm:$0xf]
        %v2008 = vld [vmem:[#allocation17 + $0x144] sm:$0xf]
        %v2009 = vld [vmem:[#allocation17 + $0x148] sm:$0xf]
        %v2010 = vld [vmem:[#allocation17 + $0x14c] sm:$0xf]
        %v2011 = vld [vmem:[#allocation17 + $0x150] sm:$0xf]
        %v2012 = vld [vmem:[#allocation17 + $0x154] sm:$0xf]
        %v2013 = vld [vmem:[#allocation17 + $0x158] sm:$0xf]
        %v2014 = vld [vmem:[#allocation17 + $0x15c] sm:$0xf]
        %v2015 = vld [vmem:[#allocation17 + $0x160] sm:$0xf]
        %v2016 = vld [vmem:[#allocation17 + $0x164] sm:$0xf]
        %v2017 = vld [vmem:[#allocation17 + $0x168] sm:$0xf]
        %v2018 = vld [vmem:[#allocation17 + $0x16c] sm:$0xf]
        %v2019 = vld [vmem:[#allocation17 + $0x170] sm:$0xf]
        %v2020 = vld [vmem:[#allocation17 + $0x174] sm:$0xf]
        %v2021 = vld [vmem:[#allocation17 + $0x178] sm:$0xf]
        %v2022 = vld [vmem:[#allocation17 + $0x17c] sm:$0xf]
        %v2023 = vld [vmem:[#allocation17 + $0x180] sm:$0xf]
        %v2024 = vld [vmem:[#allocation17 + $0x184] sm:$0xf]
        %v2025 = vld [vmem:[#allocation17 + $0x188] sm:$0xf]
        %v2026 = vld [vmem:[#allocation17 + $0x18c] sm:$0xf]
        %v2027 = vld [vmem:[#allocation17 + $0x190] sm:$0xf]
        %v2028 = vld [vmem:[#allocation17 + $0x194] sm:$0xf]
        %v2029 = vld [vmem:[#allocation17 + $0x198] sm:$0xf]
        %v2030 = vld [vmem:[#allocation17 + $0x19c] sm:$0xf]
        %v2031 = vld [vmem:[#allocation17 + $0x1a0] sm:$0xf]
        %v2032 = vld [vmem:[#allocation17 + $0x1a4] sm:$0xf]
        %v2033 = vld [vmem:[#allocation17 + $0x1a8] sm:$0xf]
        %v2034 = vld [vmem:[#allocation17 + $0x1ac] sm:$0xf]
        %v2035 = vld [vmem:[#allocation17 + $0x1b0] sm:$0xf]
        %v2036 = vld [vmem:[#allocation17 + $0x1b4] sm:$0xf]
        %v2037 = vld [vmem:[#allocation17 + $0x1b8] sm:$0xf]
        %v2038 = vld [vmem:[#allocation17 + $0x1bc] sm:$0xf]
        %v2039 = vld [vmem:[#allocation17 + $0x1c0] sm:$0xf]
        %v2040 = vld [vmem:[#allocation17 + $0x1c4] sm:$0xf]
        %v2041 = vld [vmem:[#allocation17 + $0x1c8] sm:$0xf]
        %v2042 = vld [vmem:[#allocation17 + $0x1cc] sm:$0xf]
        %v2043 = vld [vmem:[#allocation17 + $0x1d0] sm:$0xf]
        %v2044 = vld [vmem:[#allocation17 + $0x1d4] sm:$0xf]
        %v2045 = vld [vmem:[#allocation17 + $0x1d8] sm:$0xf]
        %v2046 = vld [vmem:[#allocation17 + $0x1dc] sm:$0xf]
        %v2047 = vld [vmem:[#allocation17 + $0x1e0] sm:$0xf]
        %v2048 = vld [vmem:[#allocation17 + $0x1e4] sm:$0xf]
        %v2049 = vld [vmem:[#allocation17 + $0x1e8] sm:$0xf]
        %v2050 = vld [vmem:[#allocation17 + $0x1ec] sm:$0xf]
        %v2051 = vld [vmem:[#allocation17 + $0x1f0] sm:$0xf]
        %v2052 = vld [vmem:[#allocation17 + $0x1f4] sm:$0xf]
        %v2053 = vld [vmem:[#allocation17 + $0x1f8] sm:$0xf]
        %v2054 = vld [vmem:[#allocation17 + $0x1fc] sm:$0xf]
        %v2055 = vld [vmem:[#allocation17 + $0x200] sm:$0xf]
        %v2056 = vld [vmem:[#allocation17 + $0x204] sm:$0xf]
        %v2057 = vld [vmem:[#allocation17 + $0x208] sm:$0xf]
        %v2058 = vld [vmem:[#allocation17 + $0x20c] sm:$0xf]
        %v2059 = vld [vmem:[#allocation17 + $0x210] sm:$0xf]
        %v2060 = vld [vmem:[#allocation17 + $0x214] sm:$0xf]
        %v2061 = vld [vmem:[#allocation17 + $0x218] sm:$0xf]
        %v2062 = vld [vmem:[#allocation17 + $0x21c] sm:$0xf]
        %v2063 = vld [vmem:[#allocation17 + $0x220] sm:$0xf]
        %v2064 = vld [vmem:[#allocation17 + $0x224] sm:$0xf]
        %v2065 = vld [vmem:[#allocation17 + $0x228] sm:$0xf]
        %v2066 = vld [vmem:[#allocation17 + $0x22c] sm:$0xf]
        %v2067 = vld [vmem:[#allocation17 + $0x230] sm:$0xf]
        %v2068 = vld [vmem:[#allocation17 + $0x234] sm:$0xf]
        %v2069 = vld [vmem:[#allocation17 + $0x238] sm:$0xf]
        %v2070 = vld [vmem:[#allocation17 + $0x23c] sm:$0xf]
        %v2071 = vld [vmem:[#allocation17 + $0x240] sm:$0xf]
        %v2072 = vld [vmem:[#allocation17 + $0x244] sm:$0xf]
        %v2073 = vld [vmem:[#allocation17 + $0x248] sm:$0xf]
        %v2074 = vld [vmem:[#allocation17 + $0x24c] sm:$0xf]
        %v2075 = vld [vmem:[#allocation17 + $0x250] sm:$0xf]
        %v2076 = vld [vmem:[#allocation17 + $0x254] sm:$0xf]
        %v2077 = vld [vmem:[#allocation17 + $0x258] sm:$0xf]
        %v2078 = vld [vmem:[#allocation17 + $0x25c] sm:$0xf]
        %v2079 = vld [vmem:[#allocation17 + $0x260] sm:$0xf]
        %v2080 = vld [vmem:[#allocation17 + $0x264] sm:$0xf]
        %v2081 = vld [vmem:[#allocation17 + $0x268] sm:$0xf]
        %v2082 = vld [vmem:[#allocation17 + $0x26c] sm:$0xf]
        %v2083 = vld [vmem:[#allocation17 + $0x270] sm:$0xf]
        %v2084 = vld [vmem:[#allocation17 + $0x274] sm:$0xf]
        %v2085 = vld [vmem:[#allocation17 + $0x278] sm:$0xf]
        %v2086 = vld [vmem:[#allocation17 + $0x27c] sm:$0xf]
        %v2087 = vld [vmem:[#allocation17 + $0x280] sm:$0xf]
        %v2088 = vld [vmem:[#allocation17 + $0x284] sm:$0xf]
        %v2089 = vld [vmem:[#allocation17 + $0x288] sm:$0xf]
        %v2090 = vld [vmem:[#allocation17 + $0x28c] sm:$0xf]
        %v2091 = vld [vmem:[#allocation17 + $0x290] sm:$0xf]
        %v2092 = vld [vmem:[#allocation17 + $0x294] sm:$0xf]
        %v2093 = vld [vmem:[#allocation17 + $0x298] sm:$0xf]
        %v2094 = vld [vmem:[#allocation17 + $0x29c] sm:$0xf]
        %v2095 = vld [vmem:[#allocation17 + $0x2a0] sm:$0xf]
        %v2096 = vld [vmem:[#allocation17 + $0x2a4] sm:$0xf]
        %v2097 = vld [vmem:[#allocation17 + $0x2a8] sm:$0xf]
        %v2098 = vld [vmem:[#allocation17 + $0x2ac] sm:$0xf]
        %v2099 = vld [vmem:[#allocation17 + $0x2b0] sm:$0xf]
        %v2100 = vld [vmem:[#allocation17 + $0x2b4] sm:$0xf]
        %v2101 = vld [vmem:[#allocation17 + $0x2b8] sm:$0xf]
        %v2102 = vld [vmem:[#allocation17 + $0x2bc] sm:$0xf]
        %v2103 = vld [vmem:[#allocation17 + $0x2c0] sm:$0xf]
        %v2104 = vld [vmem:[#allocation17 + $0x2c4] sm:$0xf]
        %v2105 = vld [vmem:[#allocation17 + $0x2c8] sm:$0xf]
        %v2106 = vld [vmem:[#allocation17 + $0x2cc] sm:$0xf]
        %v2107 = vld [vmem:[#allocation17 + $0x2d0] sm:$0xf]
        %v2108 = vld [vmem:[#allocation17 + $0x2d4] sm:$0xf]
        %v2109 = vld [vmem:[#allocation17 + $0x2d8] sm:$0xf]
        %v2110 = vld [vmem:[#allocation17 + $0x2dc] sm:$0xf]
        %v2111 = vld [vmem:[#allocation17 + $0x2e0] sm:$0xf]
        %v2112 = vld [vmem:[#allocation17 + $0x2e4] sm:$0xf]
        %v2113 = vld [vmem:[#allocation17 + $0x2e8] sm:$0xf]
        %v2114 = vld [vmem:[#allocation17 + $0x2ec] sm:$0xf]
        %v2115 = vld [vmem:[#allocation17 + $0x2f0] sm:$0xf]
        %v2116 = vld [vmem:[#allocation17 + $0x2f4] sm:$0xf]
        %v2117 = vld [vmem:[#allocation17 + $0x2f8] sm:$0xf]
        %v2118 = vld [vmem:[#allocation17 + $0x2fc] sm:$0xf]
        %v2119 = vld [vmem:[#allocation17 + $0x300] sm:$0xf]
        %v2120 = vld [vmem:[#allocation17 + $0x304] sm:$0xf]
        %v2121 = vld [vmem:[#allocation17 + $0x308] sm:$0xf]
        %v2122 = vld [vmem:[#allocation17 + $0x30c] sm:$0xf]
        %v2123 = vld [vmem:[#allocation17 + $0x310] sm:$0xf]
        %v2124 = vld [vmem:[#allocation17 + $0x314] sm:$0xf]
        %v2125 = vld [vmem:[#allocation17 + $0x318] sm:$0xf]
        %v2126 = vld [vmem:[#allocation17 + $0x31c] sm:$0xf]
        %v2127 = vld [vmem:[#allocation17 + $0x320] sm:$0xf]
        %v2128 = vld [vmem:[#allocation17 + $0x324] sm:$0xf]
        %v2129 = vld [vmem:[#allocation17 + $0x328] sm:$0xf]
        %v2130 = vld [vmem:[#allocation17 + $0x32c] sm:$0xf]
        %v2131 = vld [vmem:[#allocation17 + $0x330] sm:$0xf]
        %v2132 = vld [vmem:[#allocation17 + $0x334] sm:$0xf]
        %v2133 = vld [vmem:[#allocation17 + $0x338] sm:$0xf]
        %v2134 = vld [vmem:[#allocation17 + $0x33c] sm:$0xf]
        %v2135 = vld [vmem:[#allocation17 + $0x340] sm:$0xf]
        %v2136 = vld [vmem:[#allocation17 + $0x344] sm:$0xf]
        %v2137 = vld [vmem:[#allocation17 + $0x348] sm:$0xf]
        %v2138 = vld [vmem:[#allocation17 + $0x34c] sm:$0xf]
        %v2139 = vld [vmem:[#allocation17 + $0x350] sm:$0xf]
        %v2140 = vld [vmem:[#allocation17 + $0x354] sm:$0xf]
        %v2141 = vld [vmem:[#allocation17 + $0x358] sm:$0xf]
        %v2142 = vld [vmem:[#allocation17 + $0x35c] sm:$0xf]
        %v2143 = vld [vmem:[#allocation17 + $0x360] sm:$0xf]
        %v2144 = vld [vmem:[#allocation17 + $0x364] sm:$0xf]
        %v2145 = vld [vmem:[#allocation17 + $0x368] sm:$0xf]
        %v2146 = vld [vmem:[#allocation17 + $0x36c] sm:$0xf]
        %v2147 = vld [vmem:[#allocation17 + $0x370] sm:$0xf]
        %v2148 = vld [vmem:[#allocation17 + $0x374] sm:$0xf]
        %v2149 = vld [vmem:[#allocation17 + $0x378] sm:$0xf]
        %v2150 = vld [vmem:[#allocation17 + $0x37c] sm:$0xf]
        %v2151 = vld [vmem:[#allocation17 + $0x380] sm:$0xf]
        %v2152 = vld [vmem:[#allocation17 + $0x384] sm:$0xf]
        %v2153 = vld [vmem:[#allocation17 + $0x388] sm:$0xf]
        %v2154 = vld [vmem:[#allocation17 + $0x38c] sm:$0xf]
        %v2155 = vld [vmem:[#allocation17 + $0x390] sm:$0xf]
        %v2156 = vld [vmem:[#allocation17 + $0x394] sm:$0xf]
        %v2157 = vld [vmem:[#allocation17 + $0x398] sm:$0xf]
        %v2158 = vld [vmem:[#allocation17 + $0x39c] sm:$0xf]
        %v2159 = vld [vmem:[#allocation17 + $0x3a0] sm:$0xf]
        %v2160 = vld [vmem:[#allocation17 + $0x3a4] sm:$0xf]
        %v2161 = vld [vmem:[#allocation17 + $0x3a8] sm:$0xf]
        %v2162 = vld [vmem:[#allocation17 + $0x3ac] sm:$0xf]
        %v2163 = vld [vmem:[#allocation17 + $0x3b0] sm:$0xf]
        %v2164 = vld [vmem:[#allocation17 + $0x3b4] sm:$0xf]
        %v2165 = vld [vmem:[#allocation17 + $0x3b8] sm:$0xf]
        %v2166 = vld [vmem:[#allocation17 + $0x3bc] sm:$0xf]
        %v2167 = vld [vmem:[#allocation17 + $0x3c0] sm:$0xf]
        %v2168 = vld [vmem:[#allocation17 + $0x3c4] sm:$0xf]
        %v2169 = vld [vmem:[#allocation17 + $0x3c8] sm:$0xf]
        %v2170 = vld [vmem:[#allocation17 + $0x3cc] sm:$0xf]
        %v2171 = vld [vmem:[#allocation17 + $0x3d0] sm:$0xf]
        %v2172 = vld [vmem:[#allocation17 + $0x3d4] sm:$0xf]
        %v2173 = vld [vmem:[#allocation17 + $0x3d8] sm:$0xf]
        %v2174 = vld [vmem:[#allocation17 + $0x3dc] sm:$0xf]
        %v2175 = vld [vmem:[#allocation17 + $0x3e0] sm:$0xf]
        %v2176 = vld [vmem:[#allocation17 + $0x3e4] sm:$0xf]
        %v2177 = vld [vmem:[#allocation17 + $0x3e8] sm:$0xf]
        %v2178 = vld [vmem:[#allocation17 + $0x3ec] sm:$0xf]
        %v2179 = vld [vmem:[#allocation17 + $0x3f0] sm:$0xf]
        %v2180 = vld [vmem:[#allocation17 + $0x3f4] sm:$0xf]
        %v2181 = vld [vmem:[#allocation17 + $0x3f8] sm:$0xf]
        %v2182 = vld [vmem:[#allocation17 + $0x3fc] sm:$0xf]
        %v2183 = vld [vmem:[#allocation18] sm:$0x1]
        %v2440 = vunpack.c.l.b16 %v1927
        %v2441 = vunpack.c.l.b16 %v1928
        %v2442 = vunpack.c.l.b16 %v1929
        %v2443 = vunpack.c.l.b16 %v1930
        %v2444 = vunpack.c.l.b16 %v1931
        %v2445 = vunpack.c.l.b16 %v1932
        %v2446 = vunpack.c.l.b16 %v1933
        %v2447 = vunpack.c.l.b16 %v1934
        %v2448 = vunpack.c.l.b16 %v1935
        %v2449 = vunpack.c.l.b16 %v1936
        %v2450 = vunpack.c.l.b16 %v1937
        %v2451 = vunpack.c.l.b16 %v1938
        %v2452 = vunpack.c.l.b16 %v1939
        %v2453 = vunpack.c.l.b16 %v1940
        %v2454 = vunpack.c.l.b16 %v1941
        %v2455 = vunpack.c.l.b16 %v1942
        %v2456 = vunpack.c.l.b16 %v1943
        %v2457 = vunpack.c.l.b16 %v1944
        %v2458 = vunpack.c.l.b16 %v1945
        %v2459 = vunpack.c.l.b16 %v1946
        %v2460 = vunpack.c.l.b16 %v1947
        %v2461 = vunpack.c.l.b16 %v1948
        %v2462 = vunpack.c.l.b16 %v1949
        %v2463 = vunpack.c.l.b16 %v1950
        %v2464 = vunpack.c.l.b16 %v1951
        %v2465 = vunpack.c.l.b16 %v1952
        %v2466 = vunpack.c.l.b16 %v1953
        %v2467 = vunpack.c.l.b16 %v1954
        %v2468 = vunpack.c.l.b16 %v1955
        %v2469 = vunpack.c.l.b16 %v1956
        %v2470 = vunpack.c.l.b16 %v1957
        %v2471 = vunpack.c.l.b16 %v1958
        %v2472 = vunpack.c.l.b16 %v1959
        %v2473 = vunpack.c.l.b16 %v1960
        %v2474 = vunpack.c.l.b16 %v1961
        %v2475 = vunpack.c.l.b16 %v1962
        %v2476 = vunpack.c.l.b16 %v1963
        %v2477 = vunpack.c.l.b16 %v1964
        %v2478 = vunpack.c.l.b16 %v1965
        %v2479 = vunpack.c.l.b16 %v1966
        %v2480 = vunpack.c.l.b16 %v1967
        %v2481 = vunpack.c.l.b16 %v1968
        %v2482 = vunpack.c.l.b16 %v1969
        %v2483 = vunpack.c.l.b16 %v1970
        %v2484 = vunpack.c.l.b16 %v1971
        %v2485 = vunpack.c.l.b16 %v1972
        %v2486 = vunpack.c.l.b16 %v1973
        %v2487 = vunpack.c.l.b16 %v1974
        %v2488 = vunpack.c.l.b16 %v1975
        %v2489 = vunpack.c.l.b16 %v1976
        %v2490 = vunpack.c.l.b16 %v1977
        %v2491 = vunpack.c.l.b16 %v1978
        %v2492 = vunpack.c.l.b16 %v1979
        %v2493 = vunpack.c.l.b16 %v1980
        %v2494 = vunpack.c.l.b16 %v1981
        %v2495 = vunpack.c.l.b16 %v1982
        %v2496 = vunpack.c.l.b16 %v1983
        %v2497 = vunpack.c.l.b16 %v1984
        %v2498 = vunpack.c.l.b16 %v1985
        %v2499 = vunpack.c.l.b16 %v1986
        %v2500 = vunpack.c.l.b16 %v1987
        %v2501 = vunpack.c.l.b16 %v1988
        %v2502 = vunpack.c.l.b16 %v1989
        %v2503 = vunpack.c.l.b16 %v1990
        %v2504 = vunpack.c.l.b16 %v1991
        %v2505 = vunpack.c.l.b16 %v1992
        %v2506 = vunpack.c.l.b16 %v1993
        %v2507 = vunpack.c.l.b16 %v1994
        %v2508 = vunpack.c.l.b16 %v1995
        %v2509 = vunpack.c.l.b16 %v1996
        %v2510 = vunpack.c.l.b16 %v1997
        %v2511 = vunpack.c.l.b16 %v1998
        %v2512 = vunpack.c.l.b16 %v1999
        %v2513 = vunpack.c.l.b16 %v2000
        %v2514 = vunpack.c.l.b16 %v2001
        %v2515 = vunpack.c.l.b16 %v2002
        %v2516 = vunpack.c.l.b16 %v2003
        %v2517 = vunpack.c.l.b16 %v2004
        %v2518 = vunpack.c.l.b16 %v2005
        %v2519 = vunpack.c.l.b16 %v2006
        %v2520 = vunpack.c.l.b16 %v2007
        %v2521 = vunpack.c.l.b16 %v2008
        %v2522 = vunpack.c.l.b16 %v2009
        %v2523 = vunpack.c.l.b16 %v2010
        %v2524 = vunpack.c.l.b16 %v2011
        %v2525 = vunpack.c.l.b16 %v2012
        %v2526 = vunpack.c.l.b16 %v2013
        %v2527 = vunpack.c.l.b16 %v2014
        %v2528 = vunpack.c.l.b16 %v2015
        %v2529 = vunpack.c.l.b16 %v2016
        %v2530 = vunpack.c.l.b16 %v2017
        %v2531 = vunpack.c.l.b16 %v2018
        %v2532 = vunpack.c.l.b16 %v2019
        %v2533 = vunpack.c.l.b16 %v2020
        %v2534 = vunpack.c.l.b16 %v2021
        %v2535 = vunpack.c.l.b16 %v2022
        %v2536 = vunpack.c.l.b16 %v2023
        %v2537 = vunpack.c.l.b16 %v2024
        %v2538 = vunpack.c.l.b16 %v2025
        %v2539 = vunpack.c.l.b16 %v2026
        %v2540 = vunpack.c.l.b16 %v2027
        %v2541 = vunpack.c.l.b16 %v2028
        %v2542 = vunpack.c.l.b16 %v2029
        %v2543 = vunpack.c.l.b16 %v2030
        %v2544 = vunpack.c.l.b16 %v2031
        %v2545 = vunpack.c.l.b16 %v2032
        %v2546 = vunpack.c.l.b16 %v2033
        %v2547 = vunpack.c.l.b16 %v2034
        %v2548 = vunpack.c.l.b16 %v2035
        %v2549 = vunpack.c.l.b16 %v2036
        %v2550 = vunpack.c.l.b16 %v2037
        %v2551 = vunpack.c.l.b16 %v2038
        %v2552 = vunpack.c.l.b16 %v2039
        %v2553 = vunpack.c.l.b16 %v2040
        %v2554 = vunpack.c.l.b16 %v2041
        %v2555 = vunpack.c.l.b16 %v2042
        %v2556 = vunpack.c.l.b16 %v2043
        %v2557 = vunpack.c.l.b16 %v2044
        %v2558 = vunpack.c.l.b16 %v2045
        %v2559 = vunpack.c.l.b16 %v2046
        %v2560 = vunpack.c.l.b16 %v2047
        %v2561 = vunpack.c.l.b16 %v2048
        %v2562 = vunpack.c.l.b16 %v2049
        %v2563 = vunpack.c.l.b16 %v2050
        %v2564 = vunpack.c.l.b16 %v2051
        %v2565 = vunpack.c.l.b16 %v2052
        %v2566 = vunpack.c.l.b16 %v2053
        %v2567 = vunpack.c.l.b16 %v2054
        %v2568 = vunpack.c.l.b16 %v2055
        %v2569 = vunpack.c.l.b16 %v2056
        %v2570 = vunpack.c.l.b16 %v2057
        %v2571 = vunpack.c.l.b16 %v2058
        %v2572 = vunpack.c.l.b16 %v2059
        %v2573 = vunpack.c.l.b16 %v2060
        %v2574 = vunpack.c.l.b16 %v2061
        %v2575 = vunpack.c.l.b16 %v2062
        %v2576 = vunpack.c.l.b16 %v2063
        %v2577 = vunpack.c.l.b16 %v2064
        %v2578 = vunpack.c.l.b16 %v2065
        %v2579 = vunpack.c.l.b16 %v2066
        %v2580 = vunpack.c.l.b16 %v2067
        %v2581 = vunpack.c.l.b16 %v2068
        %v2582 = vunpack.c.l.b16 %v2069
        %v2583 = vunpack.c.l.b16 %v2070
        %v2584 = vunpack.c.l.b16 %v2071
        %v2585 = vunpack.c.l.b16 %v2072
        %v2586 = vunpack.c.l.b16 %v2073
        %v2587 = vunpack.c.l.b16 %v2074
        %v2588 = vunpack.c.l.b16 %v2075
        %v2589 = vunpack.c.l.b16 %v2076
        %v2590 = vunpack.c.l.b16 %v2077
        %v2591 = vunpack.c.l.b16 %v2078
        %v2592 = vunpack.c.l.b16 %v2079
        %v2593 = vunpack.c.l.b16 %v2080
        %v2594 = vunpack.c.l.b16 %v2081
        %v2595 = vunpack.c.l.b16 %v2082
        %v2596 = vunpack.c.l.b16 %v2083
        %v2597 = vunpack.c.l.b16 %v2084
        %v2598 = vunpack.c.l.b16 %v2085
        %v2599 = vunpack.c.l.b16 %v2086
        %v2600 = vunpack.c.l.b16 %v2087
        %v2601 = vunpack.c.l.b16 %v2088
        %v2602 = vunpack.c.l.b16 %v2089
        %v2603 = vunpack.c.l.b16 %v2090
        %v2604 = vunpack.c.l.b16 %v2091
        %v2605 = vunpack.c.l.b16 %v2092
        %v2606 = vunpack.c.l.b16 %v2093
        %v2607 = vunpack.c.l.b16 %v2094
        %v2608 = vunpack.c.l.b16 %v2095
        %v2609 = vunpack.c.l.b16 %v2096
        %v2610 = vunpack.c.l.b16 %v2097
        %v2611 = vunpack.c.l.b16 %v2098
        %v2612 = vunpack.c.l.b16 %v2099
        %v2613 = vunpack.c.l.b16 %v2100
        %v2614 = vunpack.c.l.b16 %v2101
        %v2615 = vunpack.c.l.b16 %v2102
        %v2616 = vunpack.c.l.b16 %v2103
        %v2617 = vunpack.c.l.b16 %v2104
        %v2618 = vunpack.c.l.b16 %v2105
        %v2619 = vunpack.c.l.b16 %v2106
        %v2620 = vunpack.c.l.b16 %v2107
        %v2621 = vunpack.c.l.b16 %v2108
        %v2622 = vunpack.c.l.b16 %v2109
        %v2623 = vunpack.c.l.b16 %v2110
        %v2624 = vunpack.c.l.b16 %v2111
        %v2625 = vunpack.c.l.b16 %v2112
        %v2626 = vunpack.c.l.b16 %v2113
        %v2627 = vunpack.c.l.b16 %v2114
        %v2628 = vunpack.c.l.b16 %v2115
        %v2629 = vunpack.c.l.b16 %v2116
        %v2630 = vunpack.c.l.b16 %v2117
        %v2631 = vunpack.c.l.b16 %v2118
        %v2632 = vunpack.c.l.b16 %v2119
        %v2633 = vunpack.c.l.b16 %v2120
        %v2634 = vunpack.c.l.b16 %v2121
        %v2635 = vunpack.c.l.b16 %v2122
        %v2636 = vunpack.c.l.b16 %v2123
        %v2637 = vunpack.c.l.b16 %v2124
        %v2638 = vunpack.c.l.b16 %v2125
        %v2639 = vunpack.c.l.b16 %v2126
        %v2640 = vunpack.c.l.b16 %v2127
        %v2641 = vunpack.c.l.b16 %v2128
        %v2642 = vunpack.c.l.b16 %v2129
        %v2643 = vunpack.c.l.b16 %v2130
        %v2644 = vunpack.c.l.b16 %v2131
        %v2645 = vunpack.c.l.b16 %v2132
        %v2646 = vunpack.c.l.b16 %v2133
        %v2647 = vunpack.c.l.b16 %v2134
        %v2648 = vunpack.c.l.b16 %v2135
        %v2649 = vunpack.c.l.b16 %v2136
        %v2650 = vunpack.c.l.b16 %v2137
        %v2651 = vunpack.c.l.b16 %v2138
        %v2652 = vunpack.c.l.b16 %v2139
        %v2653 = vunpack.c.l.b16 %v2140
        %v2654 = vunpack.c.l.b16 %v2141
        %v2655 = vunpack.c.l.b16 %v2142
        %v2656 = vunpack.c.l.b16 %v2143
        %v2657 = vunpack.c.l.b16 %v2144
        %v2658 = vunpack.c.l.b16 %v2145
        %v2659 = vunpack.c.l.b16 %v2146
        %v2660 = vunpack.c.l.b16 %v2147
        %v2661 = vunpack.c.l.b16 %v2148
        %v2662 = vunpack.c.l.b16 %v2149
        %v2663 = vunpack.c.l.b16 %v2150
        %v2664 = vunpack.c.l.b16 %v2151
        %v2665 = vunpack.c.l.b16 %v2152
        %v2666 = vunpack.c.l.b16 %v2153
        %v2667 = vunpack.c.l.b16 %v2154
        %v2668 = vunpack.c.l.b16 %v2155
        %v2669 = vunpack.c.l.b16 %v2156
        %v2670 = vunpack.c.l.b16 %v2157
        %v2671 = vunpack.c.l.b16 %v2158
        %v2672 = vunpack.c.l.b16 %v2159
        %v2673 = vunpack.c.l.b16 %v2160
        %v2674 = vunpack.c.l.b16 %v2161
        %v2675 = vunpack.c.l.b16 %v2162
        %v2676 = vunpack.c.l.b16 %v2163
        %v2677 = vunpack.c.l.b16 %v2164
        %v2678 = vunpack.c.l.b16 %v2165
        %v2679 = vunpack.c.l.b16 %v2166
        %v2680 = vunpack.c.l.b16 %v2167
        %v2681 = vunpack.c.l.b16 %v2168
        %v2682 = vunpack.c.l.b16 %v2169
        %v2683 = vunpack.c.l.b16 %v2170
        %v2684 = vunpack.c.l.b16 %v2171
        %v2685 = vunpack.c.l.b16 %v2172
        %v2686 = vunpack.c.l.b16 %v2173
        %v2687 = vunpack.c.l.b16 %v2174
        %v2688 = vunpack.c.l.b16 %v2175
        %v2689 = vunpack.c.l.b16 %v2176
        %v2690 = vunpack.c.l.b16 %v2177
        %v2691 = vunpack.c.l.b16 %v2178
        %v2692 = vunpack.c.l.b16 %v2179
        %v2693 = vunpack.c.l.b16 %v2180
        %v2694 = vunpack.c.l.b16 %v2181
        %v2695 = vunpack.c.l.b16 %v2182
        %v2696 = vpack.c.b16 %v2441, %v2440
        %v2697 = vpack.c.b16 %v2443, %v2442
        %v2698 = vpack.c.b16 %v2445, %v2444
        %v2699 = vpack.c.b16 %v2447, %v2446
        %v2700 = vpack.c.b16 %v2449, %v2448
        %v2701 = vpack.c.b16 %v2451, %v2450
        %v2702 = vpack.c.b16 %v2453, %v2452
        %v2703 = vpack.c.b16 %v2455, %v2454
        %v2704 = vpack.c.b16 %v2457, %v2456
        %v2705 = vpack.c.b16 %v2459, %v2458
        %v2706 = vpack.c.b16 %v2461, %v2460
        %v2707 = vpack.c.b16 %v2463, %v2462
        %v2708 = vpack.c.b16 %v2465, %v2464
        %v2709 = vpack.c.b16 %v2467, %v2466
        %v2710 = vpack.c.b16 %v2469, %v2468
        %v2711 = vpack.c.b16 %v2471, %v2470
        %v2712 = vpack.c.b16 %v2473, %v2472
        %v2713 = vpack.c.b16 %v2475, %v2474
        %v2714 = vpack.c.b16 %v2477, %v2476
        %v2715 = vpack.c.b16 %v2479, %v2478
        %v2716 = vpack.c.b16 %v2481, %v2480
        %v2717 = vpack.c.b16 %v2483, %v2482
        %v2718 = vpack.c.b16 %v2485, %v2484
        %v2719 = vpack.c.b16 %v2487, %v2486
        %v2720 = vpack.c.b16 %v2489, %v2488
        %v2721 = vpack.c.b16 %v2491, %v2490
        %v2722 = vpack.c.b16 %v2493, %v2492
        %v2723 = vpack.c.b16 %v2495, %v2494
        %v2724 = vpack.c.b16 %v2497, %v2496
        %v2725 = vpack.c.b16 %v2499, %v2498
        %v2726 = vpack.c.b16 %v2501, %v2500
        %v2727 = vpack.c.b16 %v2503, %v2502
        %v2728 = vpack.c.b16 %v2505, %v2504
        %v2729 = vpack.c.b16 %v2507, %v2506
        %v2730 = vpack.c.b16 %v2509, %v2508
        %v2731 = vpack.c.b16 %v2511, %v2510
        %v2732 = vpack.c.b16 %v2513, %v2512
        %v2733 = vpack.c.b16 %v2515, %v2514
        %v2734 = vpack.c.b16 %v2517, %v2516
        %v2735 = vpack.c.b16 %v2519, %v2518
        %v2736 = vpack.c.b16 %v2521, %v2520
        %v2737 = vpack.c.b16 %v2523, %v2522
        %v2738 = vpack.c.b16 %v2525, %v2524
        %v2739 = vpack.c.b16 %v2527, %v2526
        %v2740 = vpack.c.b16 %v2529, %v2528
        %v2741 = vpack.c.b16 %v2531, %v2530
        %v2742 = vpack.c.b16 %v2533, %v2532
        %v2743 = vpack.c.b16 %v2535, %v2534
        %v2744 = vpack.c.b16 %v2537, %v2536
        %v2745 = vpack.c.b16 %v2539, %v2538
        %v2746 = vpack.c.b16 %v2541, %v2540
        %v2747 = vpack.c.b16 %v2543, %v2542
        %v2748 = vpack.c.b16 %v2545, %v2544
        %v2749 = vpack.c.b16 %v2547, %v2546
        %v2750 = vpack.c.b16 %v2549, %v2548
        %v2751 = vpack.c.b16 %v2551, %v2550
        %v2752 = vpack.c.b16 %v2553, %v2552
        %v2753 = vpack.c.b16 %v2555, %v2554
        %v2754 = vpack.c.b16 %v2557, %v2556
        %v2755 = vpack.c.b16 %v2559, %v2558
        %v2756 = vpack.c.b16 %v2561, %v2560
        %v2757 = vpack.c.b16 %v2563, %v2562
        %v2758 = vpack.c.b16 %v2565, %v2564
        %v2759 = vpack.c.b16 %v2567, %v2566
        %v2760 = vpack.c.b16 %v2569, %v2568
        %v2761 = vpack.c.b16 %v2571, %v2570
        %v2762 = vpack.c.b16 %v2573, %v2572
        %v2763 = vpack.c.b16 %v2575, %v2574
        %v2764 = vpack.c.b16 %v2577, %v2576
        %v2765 = vpack.c.b16 %v2579, %v2578
        %v2766 = vpack.c.b16 %v2581, %v2580
        %v2767 = vpack.c.b16 %v2583, %v2582
        %v2768 = vpack.c.b16 %v2585, %v2584
        %v2769 = vpack.c.b16 %v2587, %v2586
        %v2770 = vpack.c.b16 %v2589, %v2588
        %v2771 = vpack.c.b16 %v2591, %v2590
        %v2772 = vpack.c.b16 %v2593, %v2592
        %v2773 = vpack.c.b16 %v2595, %v2594
        %v2774 = vpack.c.b16 %v2597, %v2596
        %v2775 = vpack.c.b16 %v2599, %v2598
        %v2776 = vpack.c.b16 %v2601, %v2600
        %v2777 = vpack.c.b16 %v2603, %v2602
        %v2778 = vpack.c.b16 %v2605, %v2604
        %v2779 = vpack.c.b16 %v2607, %v2606
        %v2780 = vpack.c.b16 %v2609, %v2608
        %v2781 = vpack.c.b16 %v2611, %v2610
        %v2782 = vpack.c.b16 %v2613, %v2612
        %v2783 = vpack.c.b16 %v2615, %v2614
        %v2784 = vpack.c.b16 %v2617, %v2616
        %v2785 = vpack.c.b16 %v2619, %v2618
        %v2786 = vpack.c.b16 %v2621, %v2620
        %v2787 = vpack.c.b16 %v2623, %v2622
        %v2788 = vpack.c.b16 %v2625, %v2624
        %v2789 = vpack.c.b16 %v2627, %v2626
        %v2790 = vpack.c.b16 %v2629, %v2628
        %v2791 = vpack.c.b16 %v2631, %v2630
        %v2792 = vpack.c.b16 %v2633, %v2632
        %v2793 = vpack.c.b16 %v2635, %v2634
        %v2794 = vpack.c.b16 %v2637, %v2636
        %v2795 = vpack.c.b16 %v2639, %v2638
        %v2796 = vpack.c.b16 %v2641, %v2640
        %v2797 = vpack.c.b16 %v2643, %v2642
        %v2798 = vpack.c.b16 %v2645, %v2644
        %v2799 = vpack.c.b16 %v2647, %v2646
        %v2800 = vpack.c.b16 %v2649, %v2648
        %v2801 = vpack.c.b16 %v2651, %v2650
        %v2802 = vpack.c.b16 %v2653, %v2652
        %v2803 = vpack.c.b16 %v2655, %v2654
        %v2804 = vpack.c.b16 %v2657, %v2656
        %v2805 = vpack.c.b16 %v2659, %v2658
        %v2806 = vpack.c.b16 %v2661, %v2660
        %v2807 = vpack.c.b16 %v2663, %v2662
        %v2808 = vpack.c.b16 %v2665, %v2664
        %v2809 = vpack.c.b16 %v2667, %v2666
        %v2810 = vpack.c.b16 %v2669, %v2668
        %v2811 = vpack.c.b16 %v2671, %v2670
        %v2812 = vpack.c.b16 %v2673, %v2672
        %v2813 = vpack.c.b16 %v2675, %v2674
        %v2814 = vpack.c.b16 %v2677, %v2676
        %v2815 = vpack.c.b16 %v2679, %v2678
        %v2816 = vpack.c.b16 %v2681, %v2680
        %v2817 = vpack.c.b16 %v2683, %v2682
        %v2818 = vpack.c.b16 %v2685, %v2684
        %v2819 = vpack.c.b16 %v2687, %v2686
        %v2820 = vpack.c.b16 %v2689, %v2688
        %v2821 = vpack.c.b16 %v2691, %v2690
        %v2822 = vpack.c.b16 %v2693, %v2692
        %v2823 = vpack.c.b16 %v2695, %v2694
        %2952 = vmatprep.subr.bf16.mxu0 0
        %2953 = vmatpush1.bf16.msra.mxu0 %v2703
        %2954 = vmatprep.subr.bf16.mxu0 0
        %2955 = vmatpush1.bf16.msra.mxu0 %v2702
        %2956 = vmatprep.subr.bf16.mxu0 0
        %2957 = vmatpush1.bf16.msra.mxu0 %v2701
        %2958 = vmatprep.subr.bf16.mxu0 0
        %2959 = vmatpush1.bf16.msra.mxu0 %v2700
        %2960 = vmatprep.subr.bf16.mxu0 0
        %2961 = vmatpush1.bf16.msra.mxu0 %v2699
        %2962 = vmatprep.subr.bf16.mxu0 0
        %2963 = vmatpush1.bf16.msra.mxu0 %v2698
        %2964 = vmatprep.subr.bf16.mxu0 0
        %2965 = vmatpush1.bf16.msra.mxu0 %v2697
        %2966 = vmatprep.subr.bf16.mxu0 0
        %2967 = vmatpush1.bf16.msra.mxu0 %v2696
        %2968 = vmatprep.subr.bf16.mxu0 0
        %2969 = vmatpush2.bf16.msra.mxu0 %v2711
        %2970 = vmatprep.subr.bf16.mxu0 0
        %2971 = vmatpush2.bf16.msra.mxu0 %v2710
        %2972 = vmatprep.subr.bf16.mxu0 0
        %2973 = vmatpush2.bf16.msra.mxu0 %v2709
        %2974 = vmatprep.subr.bf16.mxu0 0
        %2975 = vmatpush2.bf16.msra.mxu0 %v2708
        %2976 = vmatprep.subr.bf16.mxu0 0
        %2977 = vmatpush2.bf16.msra.mxu0 %v2707
        %2978 = vmatprep.subr.bf16.mxu0 0
        %2979 = vmatpush2.bf16.msra.mxu0 %v2706
        %2980 = vmatprep.subr.bf16.mxu0 0
        %2981 = vmatpush2.bf16.msra.mxu0 %v2705
        %2982 = vmatprep.subr.bf16.mxu0 0
        %2983 = vmatpush2.bf16.msra.mxu0 %v2704
        %2984 = vmatprep.mubr.bf16.mxu0 %v1912
        %2985 = vmatmul.mubr.bf16.gmra.mxu0 %v1911
        %v2986 = vpop.f32.mrf.mxu0
        %v2987 = vadd.f32 %v2183, %v2986
        %v2988 = vpop.f32.mrf.mxu0
        %v2989 = vpop.f32.mrf.mxu0
        %v2990 = vpop.f32.mrf.mxu0
        %2991 = vdwg.mxu0
        %2992 = vmatprep.subr.bf16.mxu0 0
        %2993 = vmatpush1.bf16.msra.mxu0 %v2719
        %2994 = vmatprep.subr.bf16.mxu0 0
        %2995 = vmatpush1.bf16.msra.mxu0 %v2718
        %2996 = vmatprep.subr.bf16.mxu0 0
        %2997 = vmatpush1.bf16.msra.mxu0 %v2717
        %2998 = vmatprep.subr.bf16.mxu0 0
        %2999 = vmatpush1.bf16.msra.mxu0 %v2716
        %3000 = vmatprep.subr.bf16.mxu0 0
        %3001 = vmatpush1.bf16.msra.mxu0 %v2715
        %3002 = vmatprep.subr.bf16.mxu0 0
        %3003 = vmatpush1.bf16.msra.mxu0 %v2714
        %3004 = vmatprep.subr.bf16.mxu0 0
        %3005 = vmatpush1.bf16.msra.mxu0 %v2713
        %3006 = vmatprep.subr.bf16.mxu0 0
        %3007 = vmatpush1.bf16.msra.mxu0 %v2712
        %3008 = vmatprep.subr.bf16.mxu0 0
        %3009 = vmatpush2.bf16.msra.mxu0 %v2727
        %3010 = vmatprep.subr.bf16.mxu0 0
        %3011 = vmatpush2.bf16.msra.mxu0 %v2726
        %3012 = vmatprep.subr.bf16.mxu0 0
        %3013 = vmatpush2.bf16.msra.mxu0 %v2725
        %3014 = vmatprep.subr.bf16.mxu0 0
        %3015 = vmatpush2.bf16.msra.mxu0 %v2724
        %3016 = vmatprep.subr.bf16.mxu0 0
        %3017 = vmatpush2.bf16.msra.mxu0 %v2723
        %3018 = vmatprep.subr.bf16.mxu0 0
        %3019 = vmatpush2.bf16.msra.mxu0 %v2722
        %3020 = vmatprep.subr.bf16.mxu0 0
        %3021 = vmatpush2.bf16.msra.mxu0 %v2721
        %3022 = vmatprep.subr.bf16.mxu0 0
        %3023 = vmatpush2.bf16.msra.mxu0 %v2720
        %3024 = vmatprep.mubr.bf16.mxu0 %v1914
        %3025 = vmatmul.mubr.bf16.gmra.mxu0 %v1913
        %v3026 = vpop.f32.mrf.mxu0
        %v3027 = vadd.f32 %v2987, %v3026
        %v3028 = vpop.f32.mrf.mxu0
        %v3029 = vpop.f32.mrf.mxu0
        %v3030 = vpop.f32.mrf.mxu0
        %3031 = vdwg.mxu0
        %3032 = vmatprep.subr.bf16.mxu0 0
        %3033 = vmatpush1.bf16.msra.mxu0 %v2735
        %3034 = vmatprep.subr.bf16.mxu0 0
        %3035 = vmatpush1.bf16.msra.mxu0 %v2734
        %3036 = vmatprep.subr.bf16.mxu0 0
        %3037 = vmatpush1.bf16.msra.mxu0 %v2733
        %3038 = vmatprep.subr.bf16.mxu0 0
        %3039 = vmatpush1.bf16.msra.mxu0 %v2732
        %3040 = vmatprep.subr.bf16.mxu0 0
        %3041 = vmatpush1.bf16.msra.mxu0 %v2731
        %3042 = vmatprep.subr.bf16.mxu0 0
        %3043 = vmatpush1.bf16.msra.mxu0 %v2730
        %3044 = vmatprep.subr.bf16.mxu0 0
        %3045 = vmatpush1.bf16.msra.mxu0 %v2729
        %3046 = vmatprep.subr.bf16.mxu0 0
        %3047 = vmatpush1.bf16.msra.mxu0 %v2728
        %3048 = vmatprep.subr.bf16.mxu0 0
        %3049 = vmatpush2.bf16.msra.mxu0 %v2743
        %3050 = vmatprep.subr.bf16.mxu0 0
        %3051 = vmatpush2.bf16.msra.mxu0 %v2742
        %3052 = vmatprep.subr.bf16.mxu0 0
        %3053 = vmatpush2.bf16.msra.mxu0 %v2741
        %3054 = vmatprep.subr.bf16.mxu0 0
        %3055 = vmatpush2.bf16.msra.mxu0 %v2740
        %3056 = vmatprep.subr.bf16.mxu0 0
        %3057 = vmatpush2.bf16.msra.mxu0 %v2739
        %3058 = vmatprep.subr.bf16.mxu0 0
        %3059 = vmatpush2.bf16.msra.mxu0 %v2738
        %3060 = vmatprep.subr.bf16.mxu0 0
        %3061 = vmatpush2.bf16.msra.mxu0 %v2737
        %3062 = vmatprep.subr.bf16.mxu0 0
        %3063 = vmatpush2.bf16.msra.mxu0 %v2736
        %3064 = vmatprep.mubr.bf16.mxu0 %v1916
        %3065 = vmatmul.mubr.bf16.gmra.mxu0 %v1915
        %v3066 = vpop.f32.mrf.mxu0
        %v3067 = vadd.f32 %v3027, %v3066
        %v3068 = vpop.f32.mrf.mxu0
        %v3069 = vpop.f32.mrf.mxu0
        %v3070 = vpop.f32.mrf.mxu0
        %3071 = vdwg.mxu0
        %3072 = vmatprep.subr.bf16.mxu0 0
        %3073 = vmatpush1.bf16.msra.mxu0 %v2751
        %3074 = vmatprep.subr.bf16.mxu0 0
        %3075 = vmatpush1.bf16.msra.mxu0 %v2750
        %3076 = vmatprep.subr.bf16.mxu0 0
        %3077 = vmatpush1.bf16.msra.mxu0 %v2749
        %3078 = vmatprep.subr.bf16.mxu0 0
        %3079 = vmatpush1.bf16.msra.mxu0 %v2748
        %3080 = vmatprep.subr.bf16.mxu0 0
        %3081 = vmatpush1.bf16.msra.mxu0 %v2747
        %3082 = vmatprep.subr.bf16.mxu0 0
        %3083 = vmatpush1.bf16.msra.mxu0 %v2746
        %3084 = vmatprep.subr.bf16.mxu0 0
        %3085 = vmatpush1.bf16.msra.mxu0 %v2745
        %3086 = vmatprep.subr.bf16.mxu0 0
        %3087 = vmatpush1.bf16.msra.mxu0 %v2744
        %3088 = vmatprep.subr.bf16.mxu0 0
        %3089 = vmatpush2.bf16.msra.mxu0 %v2759
        %3090 = vmatprep.subr.bf16.mxu0 0
        %3091 = vmatpush2.bf16.msra.mxu0 %v2758
        %3092 = vmatprep.subr.bf16.mxu0 0
        %3093 = vmatpush2.bf16.msra.mxu0 %v2757
        %3094 = vmatprep.subr.bf16.mxu0 0
        %3095 = vmatpush2.bf16.msra.mxu0 %v2756
        %3096 = vmatprep.subr.bf16.mxu0 0
        %3097 = vmatpush2.bf16.msra.mxu0 %v2755
        %3098 = vmatprep.subr.bf16.mxu0 0
        %3099 = vmatpush2.bf16.msra.mxu0 %v2754
        %3100 = vmatprep.subr.bf16.mxu0 0
        %3101 = vmatpush2.bf16.msra.mxu0 %v2753
        %3102 = vmatprep.subr.bf16.mxu0 0
        %3103 = vmatpush2.bf16.msra.mxu0 %v2752
        %3104 = vmatprep.mubr.bf16.mxu0 %v1918
        %3105 = vmatmul.mubr.bf16.gmra.mxu0 %v1917
        %v3106 = vpop.f32.mrf.mxu0
        %v3107 = vadd.f32 %v3067, %v3106
        %v3108 = vpop.f32.mrf.mxu0
        %v3109 = vpop.f32.mrf.mxu0
        %v3110 = vpop.f32.mrf.mxu0
        %3111 = vdwg.mxu0
        %3112 = vmatprep.subr.bf16.mxu0 0
        %3113 = vmatpush1.bf16.msra.mxu0 %v2767
        %3114 = vmatprep.subr.bf16.mxu0 0
        %3115 = vmatpush1.bf16.msra.mxu0 %v2766
        %3116 = vmatprep.subr.bf16.mxu0 0
        %3117 = vmatpush1.bf16.msra.mxu0 %v2765
        %3118 = vmatprep.subr.bf16.mxu0 0
        %3119 = vmatpush1.bf16.msra.mxu0 %v2764
        %3120 = vmatprep.subr.bf16.mxu0 0
        %3121 = vmatpush1.bf16.msra.mxu0 %v2763
        %3122 = vmatprep.subr.bf16.mxu0 0
        %3123 = vmatpush1.bf16.msra.mxu0 %v2762
        %3124 = vmatprep.subr.bf16.mxu0 0
        %3125 = vmatpush1.bf16.msra.mxu0 %v2761
        %3126 = vmatprep.subr.bf16.mxu0 0
        %3127 = vmatpush1.bf16.msra.mxu0 %v2760
        %3128 = vmatprep.subr.bf16.mxu0 0
        %3129 = vmatpush2.bf16.msra.mxu0 %v2775
        %3130 = vmatprep.subr.bf16.mxu0 0
        %3131 = vmatpush2.bf16.msra.mxu0 %v2774
        %3132 = vmatprep.subr.bf16.mxu0 0
        %3133 = vmatpush2.bf16.msra.mxu0 %v2773
        %3134 = vmatprep.subr.bf16.mxu0 0
        %3135 = vmatpush2.bf16.msra.mxu0 %v2772
        %3136 = vmatprep.subr.bf16.mxu0 0
        %3137 = vmatpush2.bf16.msra.mxu0 %v2771
        %3138 = vmatprep.subr.bf16.mxu0 0
        %3139 = vmatpush2.bf16.msra.mxu0 %v2770
        %3140 = vmatprep.subr.bf16.mxu0 0
        %3141 = vmatpush2.bf16.msra.mxu0 %v2769
        %3142 = vmatprep.subr.bf16.mxu0 0
        %3143 = vmatpush2.bf16.msra.mxu0 %v2768
        %3144 = vmatprep.mubr.bf16.mxu0 %v1920
        %3145 = vmatmul.mubr.bf16.gmra.mxu0 %v1919
        %v3146 = vpop.f32.mrf.mxu0
        %v3147 = vadd.f32 %v3107, %v3146
        %v3148 = vpop.f32.mrf.mxu0
        %v3149 = vpop.f32.mrf.mxu0
        %v3150 = vpop.f32.mrf.mxu0
        %3151 = vdwg.mxu0
        %3152 = vmatprep.subr.bf16.mxu0 0
        %3153 = vmatpush1.bf16.msra.mxu0 %v2783
        %3154 = vmatprep.subr.bf16.mxu0 0
        %3155 = vmatpush1.bf16.msra.mxu0 %v2782
        %3156 = vmatprep.subr.bf16.mxu0 0
        %3157 = vmatpush1.bf16.msra.mxu0 %v2781
        %3158 = vmatprep.subr.bf16.mxu0 0
        %3159 = vmatpush1.bf16.msra.mxu0 %v2780
        %3160 = vmatprep.subr.bf16.mxu0 0
        %3161 = vmatpush1.bf16.msra.mxu0 %v2779
        %3162 = vmatprep.subr.bf16.mxu0 0
        %3163 = vmatpush1.bf16.msra.mxu0 %v2778
        %3164 = vmatprep.subr.bf16.mxu0 0
        %3165 = vmatpush1.bf16.msra.mxu0 %v2777
        %3166 = vmatprep.subr.bf16.mxu0 0
        %3167 = vmatpush1.bf16.msra.mxu0 %v2776
        %3168 = vmatprep.subr.bf16.mxu0 0
        %3169 = vmatpush2.bf16.msra.mxu0 %v2791
        %3170 = vmatprep.subr.bf16.mxu0 0
        %3171 = vmatpush2.bf16.msra.mxu0 %v2790
        %3172 = vmatprep.subr.bf16.mxu0 0
        %3173 = vmatpush2.bf16.msra.mxu0 %v2789
        %3174 = vmatprep.subr.bf16.mxu0 0
        %3175 = vmatpush2.bf16.msra.mxu0 %v2788
        %3176 = vmatprep.subr.bf16.mxu0 0
        %3177 = vmatpush2.bf16.msra.mxu0 %v2787
        %3178 = vmatprep.subr.bf16.mxu0 0
        %3179 = vmatpush2.bf16.msra.mxu0 %v2786
        %3180 = vmatprep.subr.bf16.mxu0 0
        %3181 = vmatpush2.bf16.msra.mxu0 %v2785
        %3182 = vmatprep.subr.bf16.mxu0 0
        %3183 = vmatpush2.bf16.msra.mxu0 %v2784
        %3184 = vmatprep.mubr.bf16.mxu0 %v1922
        %3185 = vmatmul.mubr.bf16.gmra.mxu0 %v1921
        %v3186 = vpop.f32.mrf.mxu0
        %v3187 = vadd.f32 %v3147, %v3186
        %v3188 = vpop.f32.mrf.mxu0
        %v3189 = vpop.f32.mrf.mxu0
        %v3190 = vpop.f32.mrf.mxu0
        %3191 = vdwg.mxu0
        %3192 = vmatprep.subr.bf16.mxu0 0
        %3193 = vmatpush1.bf16.msra.mxu0 %v2799
        %3194 = vmatprep.subr.bf16.mxu0 0
        %3195 = vmatpush1.bf16.msra.mxu0 %v2798
        %3196 = vmatprep.subr.bf16.mxu0 0
        %3197 = vmatpush1.bf16.msra.mxu0 %v2797
        %3198 = vmatprep.subr.bf16.mxu0 0
        %3199 = vmatpush1.bf16.msra.mxu0 %v2796
        %3200 = vmatprep.subr.bf16.mxu0 0
        %3201 = vmatpush1.bf16.msra.mxu0 %v2795
        %3202 = vmatprep.subr.bf16.mxu0 0
        %3203 = vmatpush1.bf16.msra.mxu0 %v2794
        %3204 = vmatprep.subr.bf16.mxu0 0
        %3205 = vmatpush1.bf16.msra.mxu0 %v2793
        %3206 = vmatprep.subr.bf16.mxu0 0
        %3207 = vmatpush1.bf16.msra.mxu0 %v2792
        %3208 = vmatprep.subr.bf16.mxu0 0
        %3209 = vmatpush2.bf16.msra.mxu0 %v2807
        %3210 = vmatprep.subr.bf16.mxu0 0
        %3211 = vmatpush2.bf16.msra.mxu0 %v2806
        %3212 = vmatprep.subr.bf16.mxu0 0
        %3213 = vmatpush2.bf16.msra.mxu0 %v2805
        %3214 = vmatprep.subr.bf16.mxu0 0
        %3215 = vmatpush2.bf16.msra.mxu0 %v2804
        %3216 = vmatprep.subr.bf16.mxu0 0
        %3217 = vmatpush2.bf16.msra.mxu0 %v2803
        %3218 = vmatprep.subr.bf16.mxu0 0
        %3219 = vmatpush2.bf16.msra.mxu0 %v2802
        %3220 = vmatprep.subr.bf16.mxu0 0
        %3221 = vmatpush2.bf16.msra.mxu0 %v2801
        %3222 = vmatprep.subr.bf16.mxu0 0
        %3223 = vmatpush2.bf16.msra.mxu0 %v2800
        %3224 = vmatprep.mubr.bf16.mxu0 %v1924
        %3225 = vmatmul.mubr.bf16.gmra.mxu0 %v1923
        %v3226 = vpop.f32.mrf.mxu0
        %v3227 = vadd.f32 %v3187, %v3226
        %v3228 = vpop.f32.mrf.mxu0
        %v3229 = vpop.f32.mrf.mxu0
        %v3230 = vpop.f32.mrf.mxu0
        %3231 = vdwg.mxu0
        %3232 = vmatprep.subr.bf16.mxu0 0
        %3233 = vmatpush1.bf16.msra.mxu0 %v2815
        %3234 = vmatprep.subr.bf16.mxu0 0
        %3235 = vmatpush1.bf16.msra.mxu0 %v2814
        %3236 = vmatprep.subr.bf16.mxu0 0
        %3237 = vmatpush1.bf16.msra.mxu0 %v2813
        %3238 = vmatprep.subr.bf16.mxu0 0
        %3239 = vmatpush1.bf16.msra.mxu0 %v2812
        %3240 = vmatprep.subr.bf16.mxu0 0
        %3241 = vmatpush1.bf16.msra.mxu0 %v2811
        %3242 = vmatprep.subr.bf16.mxu0 0
        %3243 = vmatpush1.bf16.msra.mxu0 %v2810
        %3244 = vmatprep.subr.bf16.mxu0 0
        %3245 = vmatpush1.bf16.msra.mxu0 %v2809
        %3246 = vmatprep.subr.bf16.mxu0 0
        %3247 = vmatpush1.bf16.msra.mxu0 %v2808
        %3248 = vmatprep.subr.bf16.mxu0 0
        %3249 = vmatpush2.bf16.msra.mxu0 %v2823
        %3250 = vmatprep.subr.bf16.mxu0 0
        %3251 = vmatpush2.bf16.msra.mxu0 %v2822
        %3252 = vmatprep.subr.bf16.mxu0 0
        %3253 = vmatpush2.bf16.msra.mxu0 %v2821
        %3254 = vmatprep.subr.bf16.mxu0 0
        %3255 = vmatpush2.bf16.msra.mxu0 %v2820
        %3256 = vmatprep.subr.bf16.mxu0 0
        %3257 = vmatpush2.bf16.msra.mxu0 %v2819
        %3258 = vmatprep.subr.bf16.mxu0 0
        %3259 = vmatpush2.bf16.msra.mxu0 %v2818
        %3260 = vmatprep.subr.bf16.mxu0 0
        %3261 = vmatpush2.bf16.msra.mxu0 %v2817
        %3262 = vmatprep.subr.bf16.mxu0 0
        %3263 = vmatpush2.bf16.msra.mxu0 %v2816
        %3264 = vmatprep.mubr.bf16.mxu0 %v1926
        %3265 = vmatmul.mubr.bf16.gmra.mxu0 %v1925
        %v3266 = vpop.f32.mrf.mxu0
        %v3267 = vadd.f32 %v3227, %v3266
        %v3268 = vpop.f32.mrf.mxu0
        %v3269 = vpop.f32.mrf.mxu0
        %v3270 = vpop.f32.mrf.mxu0
        %3271 = vdwg.mxu0
        %3272 = vst [vmem:[%s603] sm:$0x1] %v3267
        %s3273 = sand.u32 %s341, 1
        %s3274 = scalar_lea.sflag [#allocation5], %s3273
        %s3275 = sand.u32 %s341, 1
        %s3276 = scalar_lea.vmem [#allocation20], %s3275
        // Predicated region
        $region117: #{transformer_forward.1} parent=75 // pred_check
          %p3277 = pneg %p351
        $region118: #{transformer_forward.1} parent=75 // pred_check_branch
          %3279 = sbr.rel (%p3277) target = $region120
        $region119: #{transformer_forward.1} parent=75 // pred_region
          %s3281 = ssub.s32 16, 16
          %3282 = vsyncadd %s3274, %s3281
          %s3283 = smul.addr %s34, 16
          %s3284 = scalar_lea.hbm %s14, %s3283
          %s3286 = sshll.u32 %s3276, 4
          %s3287 = int_to_ptr.vmem [resolvable:$true] %s3286
          %3289 = dma.vmem_to_hbm [thread:$0]  %s3287, 16, %s3284, %s3274
        $region120: #{transformer_forward.1} parent=75 // pred_fallthru
          _
      $region76: #{transformer_forward.1} parent=5 // pred_fallthru
        _
      %p3290 = scmp.le.s32.totalorder 2, %s29
      // Predicated region
      $region121: #{transformer_forward.1} parent=5 // pred_check
        %p3291 = pneg %p3290
      $region122: #{transformer_forward.1} parent=5 // pred_check_branch
        %3293 = sbr.rel (%p3291) target = $region124
      $region123: #{transformer_forward.1} parent=5 // pred_region
        %s3294 = ssub.s32 %s29, 2
        // Predicated region
        $region125: #{transformer_forward.1} parent=123 // pred_check
          %p3295 = pneg %p357
        $region126: #{transformer_forward.1} parent=123 // pred_check_branch
          %3297 = sbr.rel (%p3295) target = $region128
        $region127: #{transformer_forward.1} parent=123 // pred_region
          %s3298 = sand.u32 %s342, 1
          %s3299 = scalar_lea.sflag [#allocation5], %s3298
          %s3300 = sand.u32 %s342, 1
          %s3301 = scalar_lea.vmem [#allocation20], %s3300
          %3302 = dma.done %s3299, 16
        $region128: #{transformer_forward.1} parent=123 // pred_fallthru
          _
      $region124: #{transformer_forward.1} parent=5 // pred_fallthru
        _
    $region6: #{transformer_forward.1} parent=1 // loop_footer
      %s33 = sadd.s32 1, %s29
    $region7: #{transformer_forward.1} parent=1 // loop_footer_branch
      %28 = sbr.rel target = $region3
    $region8: #{transformer_forward.1} parent=1 // loop_exit
      _
    %3303 = vsyncpa [#allocation4], 1
    %s3304 = scalar_lea.sflag [#allocation4], 1
    %3305 = vsyncpa %s3304, 1
    %3306 = vsyncpa [#allocation7], 1
    %3307 = vsyncpa [#allocation10], 1
    %3308 = vsyncpa [#allocation13], 1
    %3309 = vsyncpa [#allocation16], 1
    %3310 = vsyncpa [#allocation19], 1
    %3311 = vsyncpa [#allocation5], 1
    %s3312 = scalar_lea.sflag [#allocation5], 1
    %3313 = vsyncpa %s3312, 1

</llo_original>
